<compile_context>
chip_gen: v7x
topology: tpu7x:2x2x1
jax: 0.10.0
libtpu: 0.0.40
codegen_flags: <defaults>
</compile_context>

<pallas_src>
import functools

import jax
import jax.numpy as jnp
from jax import lax
from jax.experimental import pallas as pl
from jax.experimental.pallas import tpu as pltpu

BN_EPS = 1e-5
LANE = 128                        # TPU lane width; channels padded to this


def _round_up(x, m):
    return (x + m - 1) // m * m


def _tpu_generation():
    """Best-effort TPU generation (5/6/7); only selects elementwise dtype."""
    try:
        kind = jax.devices()[0].device_kind.lower()
    except Exception:
        return 6
    for g in (7, 6, 5, 4):
        if (f"v{g}" in kind) or (f"tpu{g}" in kind):
            return g
    return 6


def _vmem_limit_bytes():
    """~0.75x of the chip's VMEM (v5e/v6e ~96 MiB, v7x ~48 MiB)."""
    try:
        cap = getattr(pltpu.get_tpu_info(), "vmem_capacity_bytes", None)
        if cap:
            return int(min(cap * 3 // 4, 100 * 1024 * 1024))
    except Exception:
        pass
    return 48 * 1024 * 1024


# --------------------------- Pallas kernels ---------------------------------

def _conv_bn_stats_kernel(x_ref, s_ref, t_ref, w_ref, b_ref, h_ref, st_ref,
                          *, apply_affine, prologue_relu, compute_dtype):
    """Fused [input BN-affine + ReLU] -> 3x3 SAME conv -> per-sample BN stats.

    x_ref : (1, H, W, cp) bf16   previous feature map, lane-padded to cp=128
    s_ref : (1, cp), t_ref: (1, cp)  folded BN scale/shift of the input layer
    w_ref : (9*cp, cp) bf16      taps packed into the contraction dim
    b_ref : (1, cp) f32
    h_ref : (1, H*W, cp) bf16    raw conv output (pre-BN), lane-dense store
    st_ref: (1, 8, cp) f32       rows 0/1 = per-sample [sum, sum(x^2)]
    """
    _, H, W, cp = x_ref.shape

    x = x_ref[0]                                        # (H, W, cp) bf16
    if apply_affine:                                    # producer layer's BN
        xe = x.astype(compute_dtype)
        xe = xe * s_ref[0].astype(compute_dtype) + t_ref[0].astype(compute_dtype)
        if prologue_relu:
            xe = jnp.maximum(xe, 0.0)
        x = xe.astype(jnp.bfloat16)

    # 1-pixel zero halo built in VMEM, in bf16, at full 128-lane width.
    zrow = jnp.zeros((1, W, cp), jnp.bfloat16)
    zcol = jnp.zeros((H + 2, 1, cp), jnp.bfloat16)
    xp = jnp.concatenate([zrow, x, zrow], axis=0)       # (H+2, W,   cp)
    xp = jnp.concatenate([zcol, xp, zcol], axis=1)      # (H+2, W+2, cp)

    # im2col: 9 taps in the contraction dim -> one MXU matmul, K = 9*cp
    # (already a multiple of 128, so xcol is lane-dense).
    # TODO(synk): at large H/W, row-tile the grid (2-row halo) and/or switch
    # to 9 accumulating K=cp matmuls with pltpu.roll to avoid the 9x im2col
    # VMEM expansion (matters for the 64 MiB v7x budget).
    cols = [xp[dy:dy + H, dx:dx + W, :].reshape(H * W, cp)
            for dy in range(3) for dx in range(3)]
    xcol = jnp.concatenate(cols, axis=-1)               # (H*W, 9*cp) bf16

    acc = jnp.dot(xcol, w_ref[...], preferred_element_type=jnp.float32)
    h = acc + b_ref[0, :]                               # (H*W, cp) f32
    h_ref[...] = h.astype(jnp.bfloat16).reshape(1, H * W, cp)

    # per-sample BN partial statistics, f32, padded to a full (8,128) tile.
    ssum = jnp.sum(h, axis=0)                           # (cp,)
    ssq = jnp.sum(h * h, axis=0)                        # (cp,)
    st = jnp.concatenate([ssum[None, :], ssq[None, :],
                          jnp.zeros((6, cp), jnp.float32)], axis=0)
    st_ref[...] = st.reshape(1, 8, cp)


def _bn_add_pool_kernel(h1_ref, h3_ref, s1_ref, t1_ref, s3_ref, t3_ref, o_ref,
                        *, relu, compute_dtype):
    """out = MaxPool2x2( act( ReLU(BN1(h1)) + BN3(h3) ) ), lane-dense layout.

    h1_ref, h3_ref: (1, Ht, W//2, 2*cp) bf16  adjacent W columns packed in lanes
    s*_ref, t*_ref: (1, 2*cp) f32             per-channel scale/shift tiled x2
    o_ref         : (1, Ht//2, W//2, cp) f32
    """
    _, Ht, W2, C2 = h1_ref.shape
    C = C2 // 2
    h1 = h1_ref[...].astype(compute_dtype)
    h3 = h3_ref[...].astype(compute_dtype)
    s1 = s1_ref[0, :].astype(compute_dtype)
    t1 = t1_ref[0, :].astype(compute_dtype)
    s3 = s3_ref[0, :].astype(compute_dtype)
    t3 = t3_ref[0, :].astype(compute_dtype)

    y = jnp.maximum(h1 * s1 + t1, 0.0)                  # residual = ReLU(BN1(h1))
    z = y + h3 * s3 + t3
    if relu:
        z = jnp.maximum(z, 0.0)
    # pool along W: even-column lanes vs odd-column lanes (aligned lane slices)
    wmax = jnp.maximum(z[..., :C], z[..., C:])          # (1, Ht, W//2, cp)
    # pool along H: leading-dim split, minor (8,128)-tiled dims untouched
    wmax = wmax.reshape(1, Ht // 2, 2, W2, C)
    o_ref[...] = jnp.maximum(wmax[:, :, 0], wmax[:, :, 1]).astype(o_ref.dtype)


# --------------------------- wrappers ----------------------------------------

def conv_bn_stats(x_nhwc, s_in, t_in, w_col, b_row, *, apply_affine,
                  prologue_relu, compute_dtype, vmem_limit):
    """Fused prologue-affine + conv3x3 + per-sample BN stats for a batch."""
    N, H, W, cp = x_nhwc.shape
    k9, _ = w_col.shape
    kern = functools.partial(_conv_bn_stats_kernel,
                             apply_affine=apply_affine,
                             prologue_relu=prologue_relu,
                             compute_dtype=compute_dtype)
    return pl.pallas_call(
        kern,
        out_shape=(jax.ShapeDtypeStruct((N, H * W, cp), jnp.bfloat16),
                   jax.ShapeDtypeStruct((N, 8, cp), jnp.float32)),
        grid=(N,),
        in_specs=[
            pl.BlockSpec((1, H, W, cp), lambda n: (n, 0, 0, 0)),
            pl.BlockSpec((1, cp), lambda n: (0, 0)),
            pl.BlockSpec((1, cp), lambda n: (0, 0)),
            pl.BlockSpec((k9, cp), lambda n: (0, 0)),
            pl.BlockSpec((1, cp), lambda n: (0, 0)),
        ],
        out_specs=(pl.BlockSpec((1, H * W, cp), lambda n: (n, 0, 0)),
                   pl.BlockSpec((1, 8, cp), lambda n: (n, 0, 0))),
        compiler_params=pltpu.CompilerParams(
            dimension_semantics=("parallel",),     # per-sample stats -> safe
            vmem_limit_bytes=vmem_limit),
    )(x_nhwc, s_in, t_in, w_col, b_row)


def bn_add_pool(h1_flat, h3_flat, s1, t1, s3, t3, *, relu, H, W, cp,
                compute_dtype, vmem_limit):
    """out = MaxPool2d(2)( act( ReLU(BN1(h1)) + BN3(h3) ) )."""
    N = h1_flat.shape[0]
    # (N, H*W, cp) -> (N, H, W//2, 2*cp) is a pure metadata reshape; it packs
    # adjacent W columns into lanes so the 2x2 pool needs no strided access.
    x1 = h1_flat.reshape(N, H, W // 2, 2 * cp)
    x3 = h3_flat.reshape(N, H, W // 2, 2 * cp)
    s1w, t1w = jnp.tile(s1, (1, 2)), jnp.tile(t1, (1, 2))
    s3w, t3w = jnp.tile(s3, (1, 2)), jnp.tile(t3, (1, 2))
    # Even row-tile (2x2 pool never straddles a tile); deepens the grid so both
    # v7x TensorCores get several pipelined steps instead of one each.
    ht = 8 if (H % 8 == 0 and H > 8) else H
    kern = functools.partial(_bn_add_pool_kernel, relu=relu,
                             compute_dtype=compute_dtype)
    return pl.pallas_call(
        kern,
        out_shape=jax.ShapeDtypeStruct((N, H // 2, W // 2, cp), jnp.float32),
        grid=(N, H // ht),
        in_specs=[
            pl.BlockSpec((1, ht, W // 2, 2 * cp), lambda n, r: (n, r, 0, 0)),
            pl.BlockSpec((1, ht, W // 2, 2 * cp), lambda n, r: (n, r, 0, 0)),
            pl.BlockSpec((1, 2 * cp), lambda n, r: (0, 0)),
            pl.BlockSpec((1, 2 * cp), lambda n, r: (0, 0)),
            pl.BlockSpec((1, 2 * cp), lambda n, r: (0, 0)),
            pl.BlockSpec((1, 2 * cp), lambda n, r: (0, 0)),
        ],
        out_specs=pl.BlockSpec((1, ht // 2, W // 2, cp),
                               lambda n, r: (n, r, 0, 0)),
        compiler_params=pltpu.CompilerParams(
            dimension_semantics=("parallel", "parallel"),
            vmem_limit_bytes=vmem_limit),
    )(x1, x3, s1w, t1w, s3w, t3w)


def _prep_conv_weights(w, b, cp):
    """(3,3,Cin,Cout) HWIO -> (9*cp, cp) bf16 taps + (1, cp) f32 bias.

    Both the input-channel and output-channel dims are zero-padded to cp=128,
    so the kernel can keep every copy / matmul operand at full lane width and
    the packed K dim (9*cp) is already a multiple of 128.
    """
    kh, kw, cin, cout = w.shape
    wp = jnp.zeros((kh, kw, cp, cp), jnp.float32)
    wp = wp.at[:, :, :cin, :cout].set(w)
    w_col = wp.reshape(kh * kw * cp, cp).astype(jnp.bfloat16)
    b_row = jnp.zeros((1, cp), jnp.float32).at[0, :cout].set(b)
    return w_col, b_row


def _pad_vec(v, cp):
    # NOTE: padded lanes are 0.0 (including gamma) so the padded-lane BN scale
    # is exactly 0 and never amplifies bf16 rounding noise in padded lanes.
    return jnp.zeros((cp,), jnp.float32).at[:v.shape[0]].set(v)


def _finalize_bn(stats, gamma_p, beta_p, count, eps=BN_EPS):
    # TODO(synk): this (C,)-sized cross-batch moment finalize stays in plain
    # JAX; the per-element reductions feeding it run inside the conv kernels.
    # E[x^2]-E[x]^2 in f32 is fine at this scale; switch to a shifted/Welford
    # accumulation if N*H*W grows large.
    s = jnp.sum(stats, axis=0)                       # (8, cp); rows 0/1 used
    mean = s[0] / count
    var = jnp.maximum(s[1] / count - mean * mean, 0.0)   # biased (training) var
    scale = gamma_p * lax.rsqrt(var + eps)
    shift = beta_p - mean * scale
    return scale.reshape(1, -1), shift.reshape(1, -1)


def encoder_block_forward(x_nchw, params, *, last_layer=False):
    gen = _tpu_generation()
    compute_dtype = jnp.bfloat16 if gen >= 6 else jnp.float32  # v5e: f32 VALU
    vmem_limit = _vmem_limit_bytes()

    x = jnp.transpose(x_nchw, (0, 2, 3, 1)).astype(jnp.float32)   # NCHW -> NHWC
    N, H, W, Cin = x.shape
    Cout = params["w1"].shape[-1]
    cp = _round_up(Cout, LANE)              # lane-dense padded channel width
    count = N * H * W

    # conv1's input: lane-pad to cp and cast to bf16 once in HBM so every
    # kernel sees identical 128-lane bf16 feature maps.
    x_p = jnp.zeros((N, H, W, cp), jnp.bfloat16).at[..., :Cin].set(
        x.astype(jnp.bfloat16))

    w1, b1 = _prep_conv_weights(params["w1"], params["b1"], cp)
    w2, b2 = _prep_conv_weights(params["w2"], params["b2"], cp)
    w3, b3 = _prep_conv_weights(params["w3"], params["b3"], cp)
    g1, bb1 = _pad_vec(params["g1"], cp), _pad_vec(params["bb1"], cp)
    g2, bb2 = _pad_vec(params["g2"], cp), _pad_vec(params["bb2"], cp)
    g3, bb3 = _pad_vec(params["g3"], cp), _pad_vec(params["bb3"], cp)

    ones = jnp.ones((1, cp), jnp.float32)
    zeros = jnp.zeros((1, cp), jnp.float32)

    # conv1 (+ per-sample BN1 statistics)
    h1, st1 = conv_bn_stats(x_p, ones, zeros, w1, b1,
                            apply_affine=False, prologue_relu=False,
                            compute_dtype=compute_dtype, vmem_limit=vmem_limit)
    s1, t1 = _finalize_bn(st1, g1, bb1, count)

    # conv2 with BN1 + ReLU fused as its prologue (+ BN2 statistics)
    h2, st2 = conv_bn_stats(h1.reshape(N, H, W, cp), s1, t1, w2, b2,
                            apply_affine=True, prologue_relu=True,
                            compute_dtype=compute_dtype, vmem_limit=vmem_limit)
    s2, t2 = _finalize_bn(st2, g2, bb2, count)

    # conv3 with BN2 + ReLU fused as its prologue (+ BN3 statistics)
    h3, st3 = conv_bn_stats(h2.reshape(N, H, W, cp), s2, t2, w3, b3,
                            apply_affine=True, prologue_relu=True,
                            compute_dtype=compute_dtype, vmem_limit=vmem_limit)
    s3, t3 = _finalize_bn(st3, g3, bb3, count)

    # BN3 + residual(ReLU(BN1(h1))) + optional ReLU + 2x2 max pool, fused
    out = bn_add_pool(h1, h3, s1, t1, s3, t3, relu=not last_layer,
                      H=H, W=W, cp=cp, compute_dtype=compute_dtype,
                      vmem_limit=vmem_limit)
    out = out[..., :Cout]                           # drop lane padding
    return jnp.transpose(out, (0, 3, 1, 2))         # NHWC -> NCHW


# --------------------------- pure-JAX reference ------------------------------

def _conv_ref(x, w, b):
    return lax.conv_general_dilated(
        x, w, window_strides=(1, 1), padding="SAME",
        dimension_numbers=("NHWC", "HWIO", "NHWC"),
        precision=lax.Precision.HIGHEST) + b


def _bn_ref(x, gamma, beta, eps=BN_EPS):
    mean = jnp.mean(x, axis=(0, 1, 2))
    var = jnp.mean(jnp.square(x - mean), axis=(0, 1, 2))
    return (x - mean) * lax.rsqrt(var + eps) * gamma + beta


def encoder_block_reference(x_nchw, params, *, last_layer=False):
    x = jnp.transpose(x_nchw, (0, 2, 3, 1)).astype(jnp.float32)
    x = jax.nn.relu(_bn_ref(_conv_ref(x, params["w1"], params["b1"]),
                            params["g1"], params["bb1"]))
    y = x
    x = jax.nn.relu(_bn_ref(_conv_ref(x, params["w2"], params["b2"]),
                            params["g2"], params["bb2"]))
    x = _bn_ref(_conv_ref(x, params["w3"], params["b3"]),
                params["g3"], params["bb3"])
    x = y + x
    if not last_layer:
        x = jax.nn.relu(x)
    x = lax.reduce_window(x, -jnp.inf, lax.max, (1, 2, 2, 1), (1, 2, 2, 1),
                          "VALID")
    return jnp.transpose(x, (0, 3, 1, 2))


# --------------------------- main --------------------------------------------

if __name__ == "__main__":
    N, Cin, H, W = 2, 4, 16, 16
    Cout = 8

    key = jax.random.PRNGKey(0)
    ks = jax.random.split(key, 13)

    def conv_w(k, ci, co):
        return jax.random.normal(k, (3, 3, ci, co), jnp.float32) / jnp.sqrt(9.0 * ci)

    params = {
        "w1": conv_w(ks[0], Cin, Cout),
        "b1": 0.05 * jax.random.normal(ks[1], (Cout,), jnp.float32),
        "g1": 1.0 + 0.1 * jax.random.normal(ks[2], (Cout,), jnp.float32),
        "bb1": 0.1 * jax.random.normal(ks[3], (Cout,), jnp.float32),
        "w2": conv_w(ks[4], Cout, Cout),
        "b2": 0.05 * jax.random.normal(ks[5], (Cout,), jnp.float32),
        "g2": 1.0 + 0.1 * jax.random.normal(ks[6], (Cout,), jnp.float32),
        "bb2": 0.1 * jax.random.normal(ks[7], (Cout,), jnp.float32),
        "w3": conv_w(ks[8], Cout, Cout),
        "b3": 0.05 * jax.random.normal(ks[9], (Cout,), jnp.float32),
        "g3": 1.0 + 0.1 * jax.random.normal(ks[10], (Cout,), jnp.float32),
        "bb3": 0.1 * jax.random.normal(ks[11], (Cout,), jnp.float32),
    }

    x = jax.random.normal(ks[12], (N, Cin, H, W), jnp.float32)  # PyTorch NCHW

    fwd = jax.jit(functools.partial(encoder_block_forward, last_layer=False))
    out = jax.block_until_ready(fwd(x, params))

    ref = encoder_block_reference(x, params, last_layer=False)
    assert out.shape == (N, Cout, H // 2, W // 2), out.shape
    assert jnp.allclose(out, ref, rtol=5e-2, atol=5e-2), \
        float(jnp.max(jnp.abs(out - ref)))
    print("KERNEL_OK")
</pallas_src>

<mosaic_0001>
module attributes {stable_mosaic.version = 11 : i64} {
  func.func @_bn_add_pool_kernel(%arg0: i32, %arg1: i32, %arg2: memref<1x8x8x256xbf16, #tpu.memory_space<vmem>>, %arg3: memref<1x8x8x256xbf16, #tpu.memory_space<vmem>>, %arg4: memref<1x256xf32, #tpu.memory_space<vmem>>, %arg5: memref<1x256xf32, #tpu.memory_space<vmem>>, %arg6: memref<1x256xf32, #tpu.memory_space<vmem>>, %arg7: memref<1x256xf32, #tpu.memory_space<vmem>>, %arg8: memref<1x4x8x128xf32, #tpu.memory_space<vmem>>) attributes {dimension_semantics = [#tpu.dimension_semantics<parallel>, #tpu.dimension_semantics<parallel>], iteration_bounds = array<i64: 2, 2>, scalar_prefetch = 0 : i64, scratch_operands = 0 : i64, tpu.core_type = #tpu.core_type<tc>, window_params = [{transform_indices = @transform_0, window_bounds = array<i64: 1, 8, 8, 256>}, {transform_indices = @transform_1, window_bounds = array<i64: 1, 8, 8, 256>}, {pipeline_mode = #tpu.pipeline_mode<synchronous>, transform_indices = @transform_2, window_bounds = array<i64: 1, 256>}, {pipeline_mode = #tpu.pipeline_mode<synchronous>, transform_indices = @transform_3, window_bounds = array<i64: 1, 256>}, {pipeline_mode = #tpu.pipeline_mode<synchronous>, transform_indices = @transform_4, window_bounds = array<i64: 1, 256>}, {pipeline_mode = #tpu.pipeline_mode<synchronous>, transform_indices = @transform_5, window_bounds = array<i64: 1, 256>}, {transform_indices = @transform_6, window_bounds = array<i64: 1, 4, 8, 128>}]} {
    %c0 = arith.constant 0 : index
    %c0_0 = arith.constant 0 : index
    %c0_1 = arith.constant 0 : index
    %c0_2 = arith.constant 0 : index
    %0 = vector.load %arg2[%c0, %c0_0, %c0_1, %c0_2] : memref<1x8x8x256xbf16, #tpu.memory_space<vmem>>, vector<1x8x8x256xbf16>
    %c0_3 = arith.constant 0 : index
    %c0_4 = arith.constant 0 : index
    %c0_5 = arith.constant 0 : index
    %c0_6 = arith.constant 0 : index
    %1 = vector.load %arg3[%c0_3, %c0_4, %c0_5, %c0_6] : memref<1x8x8x256xbf16, #tpu.memory_space<vmem>>, vector<1x8x8x256xbf16>
    %c0_7 = arith.constant 0 : index
    %c0_8 = arith.constant 0 : index
    %2 = vector.load %arg4[%c0_7, %c0_8] : memref<1x256xf32, #tpu.memory_space<vmem>>, vector<1x256xf32>
    %3 = vector.shape_cast %2 : vector<1x256xf32> to vector<256xf32>
    %4 = arith.truncf %3 : vector<256xf32> to vector<256xbf16>
    %c0_9 = arith.constant 0 : index
    %c0_10 = arith.constant 0 : index
    %5 = vector.load %arg5[%c0_9, %c0_10] : memref<1x256xf32, #tpu.memory_space<vmem>>, vector<1x256xf32>
    %6 = vector.shape_cast %5 : vector<1x256xf32> to vector<256xf32>
    %7 = arith.truncf %6 : vector<256xf32> to vector<256xbf16>
    %c0_11 = arith.constant 0 : index
    %c0_12 = arith.constant 0 : index
    %8 = vector.load %arg6[%c0_11, %c0_12] : memref<1x256xf32, #tpu.memory_space<vmem>>, vector<1x256xf32>
    %9 = vector.shape_cast %8 : vector<1x256xf32> to vector<256xf32>
    %10 = arith.truncf %9 : vector<256xf32> to vector<256xbf16>
    %c0_13 = arith.constant 0 : index
    %c0_14 = arith.constant 0 : index
    %11 = vector.load %arg7[%c0_13, %c0_14] : memref<1x256xf32, #tpu.memory_space<vmem>>, vector<1x256xf32>
    %12 = vector.shape_cast %11 : vector<1x256xf32> to vector<256xf32>
    %13 = arith.truncf %12 : vector<256xf32> to vector<256xbf16>
    %14 = vector.shape_cast %4 : vector<256xbf16> to vector<1x1x1x256xbf16>
    %15 = vector.broadcast %14 : vector<1x1x1x256xbf16> to vector<1x8x8x256xbf16>
    %16 = arith.mulf %0, %15 : vector<1x8x8x256xbf16>
    %17 = vector.shape_cast %7 : vector<256xbf16> to vector<1x1x1x256xbf16>
    %18 = vector.broadcast %17 : vector<1x1x1x256xbf16> to vector<1x8x8x256xbf16>
    %19 = arith.addf %16, %18 : vector<1x8x8x256xbf16>
    %cst = arith.constant 0.000000e+00 : bf16
    %20 = vector.broadcast %cst : bf16 to vector<1x8x8x256xbf16>
    %21 = arith.maximumf %19, %20 : vector<1x8x8x256xbf16>
    %22 = vector.shape_cast %10 : vector<256xbf16> to vector<1x1x1x256xbf16>
    %23 = vector.broadcast %22 : vector<1x1x1x256xbf16> to vector<1x8x8x256xbf16>
    %24 = arith.mulf %1, %23 : vector<1x8x8x256xbf16>
    %25 = arith.addf %21, %24 : vector<1x8x8x256xbf16>
    %26 = vector.shape_cast %13 : vector<256xbf16> to vector<1x1x1x256xbf16>
    %27 = vector.broadcast %26 : vector<1x1x1x256xbf16> to vector<1x8x8x256xbf16>
    %28 = arith.addf %25, %27 : vector<1x8x8x256xbf16>
    %cst_15 = arith.constant 0.000000e+00 : bf16
    %29 = vector.broadcast %cst_15 : bf16 to vector<1x8x8x256xbf16>
    %30 = arith.maximumf %28, %29 : vector<1x8x8x256xbf16>
    %31 = vector.extract_strided_slice %30 {offsets = [0, 0, 0, 0], sizes = [1, 8, 8, 128], strides = [1, 1, 1, 1]} : vector<1x8x8x256xbf16> to vector<1x8x8x128xbf16>
    %32 = vector.extract_strided_slice %30 {offsets = [0, 0, 0, 128], sizes = [1, 8, 8, 128], strides = [1, 1, 1, 1]} : vector<1x8x8x256xbf16> to vector<1x8x8x128xbf16>
    %33 = arith.maximumf %31, %32 : vector<1x8x8x128xbf16>
    %34 = vector.shape_cast %33 : vector<1x8x8x128xbf16> to vector<1x4x2x8x128xbf16>
    %35 = vector.extract_strided_slice %34 {offsets = [0, 0, 0, 0, 0], sizes = [1, 4, 1, 8, 128], strides = [1, 1, 1, 1, 1]} : vector<1x4x2x8x128xbf16> to vector<1x4x1x8x128xbf16>
    %36 = vector.shape_cast %35 : vector<1x4x1x8x128xbf16> to vector<1x4x8x128xbf16>
    %37 = vector.extract_strided_slice %34 {offsets = [0, 0, 1, 0, 0], sizes = [1, 4, 1, 8, 128], strides = [1, 1, 1, 1, 1]} : vector<1x4x2x8x128xbf16> to vector<1x4x1x8x128xbf16>
    %38 = vector.shape_cast %37 : vector<1x4x1x8x128xbf16> to vector<1x4x8x128xbf16>
    %39 = arith.maximumf %36, %38 : vector<1x4x8x128xbf16>
    %40 = arith.extf %39 : vector<1x4x8x128xbf16> to vector<1x4x8x128xf32>
    %c0_16 = arith.constant 0 : index
    %c0_17 = arith.constant 0 : index
    %c0_18 = arith.constant 0 : index
    %c0_19 = arith.constant 0 : index
    %41 = vector.load %arg8[%c0_16, %c0_17, %c0_18, %c0_19] : memref<1x4x8x128xf32, #tpu.memory_space<vmem>>, vector<1x4x8x128xf32>
    tpu.vector_store %arg8[%c0_16, %c0_17, %c0_18, %c0_19], %40 {strides = array<i32>} : memref<1x4x8x128xf32, #tpu.memory_space<vmem>>, vector<1x4x8x128xf32>,
    return
  }
  func.func @transform_0(%arg0: i32, %arg1: i32) -> (i32, i32, i32, i32) {
    %c0_i32 = arith.constant 0 : i32
    %c0_i32_0 = arith.constant 0 : i32
    %c0_i32_1 = arith.constant 0 : i32
    return %arg0, %arg1, %c0_i32, %c0_i32_0 : i32, i32, i32, i32
  }
  func.func @transform_1(%arg0: i32, %arg1: i32) -> (i32, i32, i32, i32) {
    %c0_i32 = arith.constant 0 : i32
    %c0_i32_0 = arith.constant 0 : i32
    %c0_i32_1 = arith.constant 0 : i32
    return %arg0, %arg1, %c0_i32, %c0_i32_0 : i32, i32, i32, i32
  }
  func.func @transform_2(%arg0: i32, %arg1: i32) -> (i32, i32) {
    %c0_i32 = arith.constant 0 : i32
    %c0_i32_0 = arith.constant 0 : i32
    %c0_i32_1 = arith.constant 0 : i32
    return %c0_i32, %c0_i32_0 : i32, i32
  }
  func.func @transform_3(%arg0: i32, %arg1: i32) -> (i32, i32) {
    %c0_i32 = arith.constant 0 : i32
    %c0_i32_0 = arith.constant 0 : i32
    %c0_i32_1 = arith.constant 0 : i32
    return %c0_i32, %c0_i32_0 : i32, i32
  }
  func.func @transform_4(%arg0: i32, %arg1: i32) -> (i32, i32) {
    %c0_i32 = arith.constant 0 : i32
    %c0_i32_0 = arith.constant 0 : i32
    %c0_i32_1 = arith.constant 0 : i32
    return %c0_i32, %c0_i32_0 : i32, i32
  }
  func.func @transform_5(%arg0: i32, %arg1: i32) -> (i32, i32) {
    %c0_i32 = arith.constant 0 : i32
    %c0_i32_0 = arith.constant 0 : i32
    %c0_i32_1 = arith.constant 0 : i32
    return %c0_i32, %c0_i32_0 : i32, i32
  }
  func.func @transform_6(%arg0: i32, %arg1: i32) -> (i32, i32, i32, i32) {
    %c0_i32 = arith.constant 0 : i32
    %c0_i32_0 = arith.constant 0 : i32
    %c0_i32_1 = arith.constant 0 : i32
    return %arg0, %arg1, %c0_i32, %c0_i32_0 : i32, i32, i32, i32
  }
}

module attributes {stable_mosaic.version = 11 : i64} {
  func.func @_conv_bn_stats_kernel(%arg0: i32, %arg1: memref<1x16x16x128xbf16, #tpu.memory_space<vmem>>, %arg2: memref<1x128xf32, #tpu.memory_space<vmem>>, %arg3: memref<1x128xf32, #tpu.memory_space<vmem>>, %arg4: memref<1152x128xbf16, #tpu.memory_space<vmem>>, %arg5: memref<1x128xf32, #tpu.memory_space<vmem>>, %arg6: memref<1x256x128xbf16, #tpu.memory_space<vmem>>, %arg7: memref<1x8x128xf32, #tpu.memory_space<vmem>>) attributes {dimension_semantics = [#tpu.dimension_semantics<parallel>], iteration_bounds = array<i64: 2>, scalar_prefetch = 0 : i64, scratch_operands = 0 : i64, tpu.core_type = #tpu.core_type<tc>, window_params = [{transform_indices = @transform_0, window_bounds = array<i64: 1, 16, 16, 128>}, {pipeline_mode = #tpu.pipeline_mode<synchronous>, transform_indices = @transform_1, window_bounds = array<i64: 1, 128>}, {pipeline_mode = #tpu.pipeline_mode<synchronous>, transform_indices = @transform_2, window_bounds = array<i64: 1, 128>}, {pipeline_mode = #tpu.pipeline_mode<synchronous>, transform_indices = @transform_3, window_bounds = array<i64: 1152, 128>}, {pipeline_mode = #tpu.pipeline_mode<synchronous>, transform_indices = @transform_4, window_bounds = array<i64: 1, 128>}, {transform_indices = @transform_5, window_bounds = array<i64: 1, 256, 128>}, {transform_indices = @transform_6, window_bounds = array<i64: 1, 8, 128>}]} {
    %c0 = arith.constant 0 : index
    %c0_0 = arith.constant 0 : index
    %c0_1 = arith.constant 0 : index
    %c0_2 = arith.constant 0 : index
    %0 = vector.load %arg1[%c0, %c0_0, %c0_1, %c0_2] : memref<1x16x16x128xbf16, #tpu.memory_space<vmem>>, vector<1x16x16x128xbf16>
    %1 = vector.shape_cast %0 : vector<1x16x16x128xbf16> to vector<16x16x128xbf16>
    %cst = arith.constant 0.000000e+00 : bf16
    %2 = vector.broadcast %cst : bf16 to vector<1x16x128xbf16>
    %cst_3 = arith.constant 0.000000e+00 : bf16
    %3 = vector.broadcast %cst_3 : bf16 to vector<18x1x128xbf16>
    %4 = tpu.concatenate %2, %1, %2 in 0 : vector<1x16x128xbf16>, vector<16x16x128xbf16>, vector<1x16x128xbf16> -> vector<18x16x128xbf16>
    %5 = tpu.concatenate %3, %4, %3 in 1 : vector<18x1x128xbf16>, vector<18x16x128xbf16>, vector<18x1x128xbf16> -> vector<18x18x128xbf16>
    %6 = vector.extract_strided_slice %5 {offsets = [0, 0, 0], sizes = [16, 16, 128], strides = [1, 1, 1]} : vector<18x18x128xbf16> to vector<16x16x128xbf16>
    %7 = vector.shape_cast %6 : vector<16x16x128xbf16> to vector<256x128xbf16>
    %8 = vector.extract_strided_slice %5 {offsets = [0, 1, 0], sizes = [16, 16, 128], strides = [1, 1, 1]} : vector<18x18x128xbf16> to vector<16x16x128xbf16>
    %9 = vector.shape_cast %8 : vector<16x16x128xbf16> to vector<256x128xbf16>
    %10 = vector.extract_strided_slice %5 {offsets = [0, 2, 0], sizes = [16, 16, 128], strides = [1, 1, 1]} : vector<18x18x128xbf16> to vector<16x16x128xbf16>
    %11 = vector.shape_cast %10 : vector<16x16x128xbf16> to vector<256x128xbf16>
    %12 = vector.extract_strided_slice %5 {offsets = [1, 0, 0], sizes = [16, 16, 128], strides = [1, 1, 1]} : vector<18x18x128xbf16> to vector<16x16x128xbf16>
    %13 = vector.shape_cast %12 : vector<16x16x128xbf16> to vector<256x128xbf16>
    %14 = vector.extract_strided_slice %5 {offsets = [1, 1, 0], sizes = [16, 16, 128], strides = [1, 1, 1]} : vector<18x18x128xbf16> to vector<16x16x128xbf16>
    %15 = vector.shape_cast %14 : vector<16x16x128xbf16> to vector<256x128xbf16>
    %16 = vector.extract_strided_slice %5 {offsets = [1, 2, 0], sizes = [16, 16, 128], strides = [1, 1, 1]} : vector<18x18x128xbf16> to vector<16x16x128xbf16>
    %17 = vector.shape_cast %16 : vector<16x16x128xbf16> to vector<256x128xbf16>
    %18 = vector.extract_strided_slice %5 {offsets = [2, 0, 0], sizes = [16, 16, 128], strides = [1, 1, 1]} : vector<18x18x128xbf16> to vector<16x16x128xbf16>
    %19 = vector.shape_cast %18 : vector<16x16x128xbf16> to vector<256x128xbf16>
    %20 = vector.extract_strided_slice %5 {offsets = [2, 1, 0], sizes = [16, 16, 128], strides = [1, 1, 1]} : vector<18x18x128xbf16> to vector<16x16x128xbf16>
    %21 = vector.shape_cast %20 : vector<16x16x128xbf16> to vector<256x128xbf16>
    %22 = vector.extract_strided_slice %5 {offsets = [2, 2, 0], sizes = [16, 16, 128], strides = [1, 1, 1]} : vector<18x18x128xbf16> to vector<16x16x128xbf16>
    %23 = vector.shape_cast %22 : vector<16x16x128xbf16> to vector<256x128xbf16>
    %24 = tpu.concatenate %7, %9, %11, %13, %15, %17, %19, %21, %23 in 1 : vector<256x128xbf16>, vector<256x128xbf16>, vector<256x128xbf16>, vector<256x128xbf16>, vector<256x128xbf16>, vector<256x128xbf16>, vector<256x128xbf16>, vector<256x128xbf16>, vector<256x128xbf16> -> vector<256x1152xbf16>
    %c0_4 = arith.constant 0 : index
    %c0_5 = arith.constant 0 : index
    %25 = vector.load %arg4[%c0_4, %c0_5] : memref<1152x128xbf16, #tpu.memory_space<vmem>>, vector<1152x128xbf16>
    %cst_6 = arith.constant dense<0.000000e+00> : vector<256x128xf32>
    %26 = tpu.matmul %24, %25, %cst_6 {dimension_numbers = #tpu.dot_dimension_numbers<[1], [0], [0], [1], [0, 0, 1, 1], [], []>} : vector<256x1152xbf16>, vector<1152x128xbf16>, vector<256x128xf32> -> vector<256x128xf32>
    %c0_7 = arith.constant 0 : index
    %c0_8 = arith.constant 0 : index
    %27 = vector.load %arg5[%c0_7, %c0_8] : memref<1x128xf32, #tpu.memory_space<vmem>>, vector<1x128xf32>
    %28 = vector.shape_cast %27 : vector<1x128xf32> to vector<128xf32>
    %29 = vector.shape_cast %28 : vector<128xf32> to vector<1x128xf32>
    %30 = vector.broadcast %29 : vector<1x128xf32> to vector<256x128xf32>
    %31 = arith.addf %26, %30 : vector<256x128xf32>
    %32 = arith.truncf %31 : vector<256x128xf32> to vector<256x128xbf16>
    %33 = vector.shape_cast %32 : vector<256x128xbf16> to vector<1x256x128xbf16>
    %c0_9 = arith.constant 0 : index
    %c0_10 = arith.constant 0 : index
    %c0_11 = arith.constant 0 : index
    %34 = vector.load %arg6[%c0_9, %c0_10, %c0_11] : memref<1x256x128xbf16, #tpu.memory_space<vmem>>, vector<1x256x128xbf16>
    tpu.vector_store %arg6[%c0_9, %c0_10, %c0_11], %33 {strides = array<i32>} : memref<1x256x128xbf16, #tpu.memory_space<vmem>>, vector<1x256x128xbf16>,
    %cst_12 = arith.constant dense<0.000000e+00> : vector<128xf32>
    %35 = vector.multi_reduction <add>, %31, %cst_12 [0] : vector<256x128xf32> to vector<128xf32>
    %36 = arith.mulf %31, %31 : vector<256x128xf32>
    %cst_13 = arith.constant dense<0.000000e+00> : vector<128xf32>
    %37 = vector.multi_reduction <add>, %36, %cst_13 [0] : vector<256x128xf32> to vector<128xf32>
    %38 = vector.shape_cast %35 : vector<128xf32> to vector<1x128xf32>
    %39 = vector.shape_cast %37 : vector<128xf32> to vector<1x128xf32>
    %cst_14 = arith.constant 0.000000e+00 : f32
    %40 = vector.broadcast %cst_14 : f32 to vector<6x128xf32>
    %41 = tpu.concatenate %38, %39, %40 in 0 : vector<1x128xf32>, vector<1x128xf32>, vector<6x128xf32> -> vector<8x128xf32>
    %42 = vector.shape_cast %41 : vector<8x128xf32> to vector<1x8x128xf32>
    %c0_15 = arith.constant 0 : index
    %c0_16 = arith.constant 0 : index
    %c0_17 = arith.constant 0 : index
    %43 = vector.load %arg7[%c0_15, %c0_16, %c0_17] : memref<1x8x128xf32, #tpu.memory_space<vmem>>, vector<1x8x128xf32>
    tpu.vector_store %arg7[%c0_15, %c0_16, %c0_17], %42 {strides = array<i32>} : memref<1x8x128xf32, #tpu.memory_space<vmem>>, vector<1x8x128xf32>,
    return
  }
  func.func @transform_0(%arg0: i32) -> (i32, i32, i32, i32) {
    %c0_i32 = arith.constant 0 : i32
    %c0_i32_0 = arith.constant 0 : i32
    %c0_i32_1 = arith.constant 0 : i32
    %c0_i32_2 = arith.constant 0 : i32
    return %arg0, %c0_i32, %c0_i32_0, %c0_i32_1 : i32, i32, i32, i32
  }
  func.func @transform_1(%arg0: i32) -> (i32, i32) {
    %c0_i32 = arith.constant 0 : i32
    %c0_i32_0 = arith.constant 0 : i32
    %c0_i32_1 = arith.constant 0 : i32
    return %c0_i32, %c0_i32_0 : i32, i32
  }
  func.func @transform_2(%arg0: i32) -> (i32, i32) {
    %c0_i32 = arith.constant 0 : i32
    %c0_i32_0 = arith.constant 0 : i32
    %c0_i32_1 = arith.constant 0 : i32
    return %c0_i32, %c0_i32_0 : i32, i32
  }
  func.func @transform_3(%arg0: i32) -> (i32, i32) {
    %c0_i32 = arith.constant 0 : i32
    %c0_i32_0 = arith.constant 0 : i32
    %c0_i32_1 = arith.constant 0 : i32
    return %c0_i32, %c0_i32_0 : i32, i32
  }
  func.func @transform_4(%arg0: i32) -> (i32, i32) {
    %c0_i32 = arith.constant 0 : i32
    %c0_i32_0 = arith.constant 0 : i32
    %c0_i32_1 = arith.constant 0 : i32
    return %c0_i32, %c0_i32_0 : i32, i32
  }
  func.func @transform_5(%arg0: i32) -> (i32, i32, i32) {
    %c0_i32 = arith.constant 0 : i32
    %c0_i32_0 = arith.constant 0 : i32
    %c0_i32_1 = arith.constant 0 : i32
    return %arg0, %c0_i32, %c0_i32_0 : i32, i32, i32
  }
  func.func @transform_6(%arg0: i32) -> (i32, i32, i32) {
    %c0_i32 = arith.constant 0 : i32
    %c0_i32_0 = arith.constant 0 : i32
    %c0_i32_1 = arith.constant 0 : i32
    return %arg0, %c0_i32, %c0_i32_0 : i32, i32, i32
  }
}

module attributes {stable_mosaic.version = 11 : i64} {
  func.func @_conv_bn_stats_kernel(%arg0: i32, %arg1: memref<1x16x16x128xbf16, #tpu.memory_space<vmem>>, %arg2: memref<1x128xf32, #tpu.memory_space<vmem>>, %arg3: memref<1x128xf32, #tpu.memory_space<vmem>>, %arg4: memref<1152x128xbf16, #tpu.memory_space<vmem>>, %arg5: memref<1x128xf32, #tpu.memory_space<vmem>>, %arg6: memref<1x256x128xbf16, #tpu.memory_space<vmem>>, %arg7: memref<1x8x128xf32, #tpu.memory_space<vmem>>) attributes {dimension_semantics = [#tpu.dimension_semantics<parallel>], iteration_bounds = array<i64: 2>, scalar_prefetch = 0 : i64, scratch_operands = 0 : i64, tpu.core_type = #tpu.core_type<tc>, window_params = [{transform_indices = @transform_0, window_bounds = array<i64: 1, 16, 16, 128>}, {pipeline_mode = #tpu.pipeline_mode<synchronous>, transform_indices = @transform_1, window_bounds = array<i64: 1, 128>}, {pipeline_mode = #tpu.pipeline_mode<synchronous>, transform_indices = @transform_2, window_bounds = array<i64: 1, 128>}, {pipeline_mode = #tpu.pipeline_mode<synchronous>, transform_indices = @transform_3, window_bounds = array<i64: 1152, 128>}, {pipeline_mode = #tpu.pipeline_mode<synchronous>, transform_indices = @transform_4, window_bounds = array<i64: 1, 128>}, {transform_indices = @transform_5, window_bounds = array<i64: 1, 256, 128>}, {transform_indices = @transform_6, window_bounds = array<i64: 1, 8, 128>}]} {
    %c0 = arith.constant 0 : index
    %c0_0 = arith.constant 0 : index
    %c0_1 = arith.constant 0 : index
    %c0_2 = arith.constant 0 : index
    %0 = vector.load %arg1[%c0, %c0_0, %c0_1, %c0_2] : memref<1x16x16x128xbf16, #tpu.memory_space<vmem>>, vector<1x16x16x128xbf16>
    %1 = vector.shape_cast %0 : vector<1x16x16x128xbf16> to vector<16x16x128xbf16>
    %c0_3 = arith.constant 0 : index
    %c0_4 = arith.constant 0 : index
    %2 = vector.load %arg2[%c0_3, %c0_4] : memref<1x128xf32, #tpu.memory_space<vmem>>, vector<1x128xf32>
    %3 = vector.shape_cast %2 : vector<1x128xf32> to vector<128xf32>
    %4 = arith.truncf %3 : vector<128xf32> to vector<128xbf16>
    %5 = vector.shape_cast %4 : vector<128xbf16> to vector<1x1x128xbf16>
    %6 = vector.broadcast %5 : vector<1x1x128xbf16> to vector<16x16x128xbf16>
    %7 = arith.mulf %1, %6 : vector<16x16x128xbf16>
    %c0_5 = arith.constant 0 : index
    %c0_6 = arith.constant 0 : index
    %8 = vector.load %arg3[%c0_5, %c0_6] : memref<1x128xf32, #tpu.memory_space<vmem>>, vector<1x128xf32>
    %9 = vector.shape_cast %8 : vector<1x128xf32> to vector<128xf32>
    %10 = arith.truncf %9 : vector<128xf32> to vector<128xbf16>
    %11 = vector.shape_cast %10 : vector<128xbf16> to vector<1x1x128xbf16>
    %12 = vector.broadcast %11 : vector<1x1x128xbf16> to vector<16x16x128xbf16>
    %13 = arith.addf %7, %12 : vector<16x16x128xbf16>
    %cst = arith.constant 0.000000e+00 : bf16
    %14 = vector.broadcast %cst : bf16 to vector<16x16x128xbf16>
    %15 = arith.maximumf %13, %14 : vector<16x16x128xbf16>
    %cst_7 = arith.constant 0.000000e+00 : bf16
    %16 = vector.broadcast %cst_7 : bf16 to vector<1x16x128xbf16>
    %cst_8 = arith.constant 0.000000e+00 : bf16
    %17 = vector.broadcast %cst_8 : bf16 to vector<18x1x128xbf16>
    %18 = tpu.concatenate %16, %15, %16 in 0 : vector<1x16x128xbf16>, vector<16x16x128xbf16>, vector<1x16x128xbf16> -> vector<18x16x128xbf16>
    %19 = tpu.concatenate %17, %18, %17 in 1 : vector<18x1x128xbf16>, vector<18x16x128xbf16>, vector<18x1x128xbf16> -> vector<18x18x128xbf16>
    %20 = vector.extract_strided_slice %19 {offsets = [0, 0, 0], sizes = [16, 16, 128], strides = [1, 1, 1]} : vector<18x18x128xbf16> to vector<16x16x128xbf16>
    %21 = vector.shape_cast %20 : vector<16x16x128xbf16> to vector<256x128xbf16>
    %22 = vector.extract_strided_slice %19 {offsets = [0, 1, 0], sizes = [16, 16, 128], strides = [1, 1, 1]} : vector<18x18x128xbf16> to vector<16x16x128xbf16>
    %23 = vector.shape_cast %22 : vector<16x16x128xbf16> to vector<256x128xbf16>
    %24 = vector.extract_strided_slice %19 {offsets = [0, 2, 0], sizes = [16, 16, 128], strides = [1, 1, 1]} : vector<18x18x128xbf16> to vector<16x16x128xbf16>
    %25 = vector.shape_cast %24 : vector<16x16x128xbf16> to vector<256x128xbf16>
    %26 = vector.extract_strided_slice %19 {offsets = [1, 0, 0], sizes = [16, 16, 128], strides = [1, 1, 1]} : vector<18x18x128xbf16> to vector<16x16x128xbf16>
    %27 = vector.shape_cast %26 : vector<16x16x128xbf16> to vector<256x128xbf16>
    %28 = vector.extract_strided_slice %19 {offsets = [1, 1, 0], sizes = [16, 16, 128], strides = [1, 1, 1]} : vector<18x18x128xbf16> to vector<16x16x128xbf16>
    %29 = vector.shape_cast %28 : vector<16x16x128xbf16> to vector<256x128xbf16>
    %30 = vector.extract_strided_slice %19 {offsets = [1, 2, 0], sizes = [16, 16, 128], strides = [1, 1, 1]} : vector<18x18x128xbf16> to vector<16x16x128xbf16>
    %31 = vector.shape_cast %30 : vector<16x16x128xbf16> to vector<256x128xbf16>
    %32 = vector.extract_strided_slice %19 {offsets = [2, 0, 0], sizes = [16, 16, 128], strides = [1, 1, 1]} : vector<18x18x128xbf16> to vector<16x16x128xbf16>
    %33 = vector.shape_cast %32 : vector<16x16x128xbf16> to vector<256x128xbf16>
    %34 = vector.extract_strided_slice %19 {offsets = [2, 1, 0], sizes = [16, 16, 128], strides = [1, 1, 1]} : vector<18x18x128xbf16> to vector<16x16x128xbf16>
    %35 = vector.shape_cast %34 : vector<16x16x128xbf16> to vector<256x128xbf16>
    %36 = vector.extract_strided_slice %19 {offsets = [2, 2, 0], sizes = [16, 16, 128], strides = [1, 1, 1]} : vector<18x18x128xbf16> to vector<16x16x128xbf16>
    %37 = vector.shape_cast %36 : vector<16x16x128xbf16> to vector<256x128xbf16>
    %38 = tpu.concatenate %21, %23, %25, %27, %29, %31, %33, %35, %37 in 1 : vector<256x128xbf16>, vector<256x128xbf16>, vector<256x128xbf16>, vector<256x128xbf16>, vector<256x128xbf16>, vector<256x128xbf16>, vector<256x128xbf16>, vector<256x128xbf16>, vector<256x128xbf16> -> vector<256x1152xbf16>
    %c0_9 = arith.constant 0 : index
    %c0_10 = arith.constant 0 : index
    %39 = vector.load %arg4[%c0_9, %c0_10] : memref<1152x128xbf16, #tpu.memory_space<vmem>>, vector<1152x128xbf16>
    %cst_11 = arith.constant dense<0.000000e+00> : vector<256x128xf32>
    %40 = tpu.matmul %38, %39, %cst_11 {dimension_numbers = #tpu.dot_dimension_numbers<[1], [0], [0], [1], [0, 0, 1, 1], [], []>} : vector<256x1152xbf16>, vector<1152x128xbf16>, vector<256x128xf32> -> vector<256x128xf32>
    %c0_12 = arith.constant 0 : index
    %c0_13 = arith.constant 0 : index
    %41 = vector.load %arg5[%c0_12, %c0_13] : memref<1x128xf32, #tpu.memory_space<vmem>>, vector<1x128xf32>
    %42 = vector.shape_cast %41 : vector<1x128xf32> to vector<128xf32>
    %43 = vector.shape_cast %42 : vector<128xf32> to vector<1x128xf32>
    %44 = vector.broadcast %43 : vector<1x128xf32> to vector<256x128xf32>
    %45 = arith.addf %40, %44 : vector<256x128xf32>
    %46 = arith.truncf %45 : vector<256x128xf32> to vector<256x128xbf16>
    %47 = vector.shape_cast %46 : vector<256x128xbf16> to vector<1x256x128xbf16>
    %c0_14 = arith.constant 0 : index
    %c0_15 = arith.constant 0 : index
    %c0_16 = arith.constant 0 : index
    %48 = vector.load %arg6[%c0_14, %c0_15, %c0_16] : memref<1x256x128xbf16, #tpu.memory_space<vmem>>, vector<1x256x128xbf16>
    tpu.vector_store %arg6[%c0_14, %c0_15, %c0_16], %47 {strides = array<i32>} : memref<1x256x128xbf16, #tpu.memory_space<vmem>>, vector<1x256x128xbf16>,
    %cst_17 = arith.constant dense<0.000000e+00> : vector<128xf32>
    %49 = vector.multi_reduction <add>, %45, %cst_17 [0] : vector<256x128xf32> to vector<128xf32>
    %50 = arith.mulf %45, %45 : vector<256x128xf32>
    %cst_18 = arith.constant dense<0.000000e+00> : vector<128xf32>
    %51 = vector.multi_reduction <add>, %50, %cst_18 [0] : vector<256x128xf32> to vector<128xf32>
    %52 = vector.shape_cast %49 : vector<128xf32> to vector<1x128xf32>
    %53 = vector.shape_cast %51 : vector<128xf32> to vector<1x128xf32>
    %cst_19 = arith.constant 0.000000e+00 : f32
    %54 = vector.broadcast %cst_19 : f32 to vector<6x128xf32>
    %55 = tpu.concatenate %52, %53, %54 in 0 : vector<1x128xf32>, vector<1x128xf32>, vector<6x128xf32> -> vector<8x128xf32>
    %56 = vector.shape_cast %55 : vector<8x128xf32> to vector<1x8x128xf32>
    %c0_20 = arith.constant 0 : index
    %c0_21 = arith.constant 0 : index
    %c0_22 = arith.constant 0 : index
    %57 = vector.load %arg7[%c0_20, %c0_21, %c0_22] : memref<1x8x128xf32, #tpu.memory_space<vmem>>, vector<1x8x128xf32>
    tpu.vector_store %arg7[%c0_20, %c0_21, %c0_22], %56 {strides = array<i32>} : memref<1x8x128xf32, #tpu.memory_space<vmem>>, vector<1x8x128xf32>,
    return
  }
  func.func @transform_0(%arg0: i32) -> (i32, i32, i32, i32) {
    %c0_i32 = arith.constant 0 : i32
    %c0_i32_0 = arith.constant 0 : i32
    %c0_i32_1 = arith.constant 0 : i32
    %c0_i32_2 = arith.constant 0 : i32
    return %arg0, %c0_i32, %c0_i32_0, %c0_i32_1 : i32, i32, i32, i32
  }
  func.func @transform_1(%arg0: i32) -> (i32, i32) {
    %c0_i32 = arith.constant 0 : i32
    %c0_i32_0 = arith.constant 0 : i32
    %c0_i32_1 = arith.constant 0 : i32
    return %c0_i32, %c0_i32_0 : i32, i32
  }
  func.func @transform_2(%arg0: i32) -> (i32, i32) {
    %c0_i32 = arith.constant 0 : i32
    %c0_i32_0 = arith.constant 0 : i32
    %c0_i32_1 = arith.constant 0 : i32
    return %c0_i32, %c0_i32_0 : i32, i32
  }
  func.func @transform_3(%arg0: i32) -> (i32, i32) {
    %c0_i32 = arith.constant 0 : i32
    %c0_i32_0 = arith.constant 0 : i32
    %c0_i32_1 = arith.constant 0 : i32
    return %c0_i32, %c0_i32_0 : i32, i32
  }
  func.func @transform_4(%arg0: i32) -> (i32, i32) {
    %c0_i32 = arith.constant 0 : i32
    %c0_i32_0 = arith.constant 0 : i32
    %c0_i32_1 = arith.constant 0 : i32
    return %c0_i32, %c0_i32_0 : i32, i32
  }
  func.func @transform_5(%arg0: i32) -> (i32, i32, i32) {
    %c0_i32 = arith.constant 0 : i32
    %c0_i32_0 = arith.constant 0 : i32
    %c0_i32_1 = arith.constant 0 : i32
    return %arg0, %c0_i32, %c0_i32_0 : i32, i32, i32
  }
  func.func @transform_6(%arg0: i32) -> (i32, i32, i32) {
    %c0_i32 = arith.constant 0 : i32
    %c0_i32_0 = arith.constant 0 : i32
    %c0_i32_1 = arith.constant 0 : i32
    return %arg0, %c0_i32, %c0_i32_0 : i32, i32, i32
  }
}

</mosaic_0001>

<llo_original>
// kernel: encoder_block_forward.7
$region0: #{encoder_block_forward.7}
  #allocation0 [shape = 'u32[]', space=smem, size = 0x4, offset = 0x4, fixed_abs, tag = 'smem constant byte address 0x4 - core index']
  #allocation1 [shape = 'u32[144,128]{1,0:T(1,128)}', space=vmem, size = 0x12000, scoped, tag = 'internal scratch']
  %s0 = inlined_call_operand.vmem [shape: bf16[2,16,8,256], index: 0, kind: input, shape index: {}]
  %s1 = inlined_call_operand.vmem [shape: bf16[2,16,8,256], index: 1, kind: input, shape index: {}]
  %s2 = inlined_call_operand.vmem [shape: f32[1,256], index: 2, kind: input, shape index: {}]
  %s3 = inlined_call_operand.vmem [shape: f32[1,256], index: 3, kind: input, shape index: {}]
  %s4 = inlined_call_operand.vmem [shape: f32[1,256], index: 4, kind: input, shape index: {}]
  %s5 = inlined_call_operand.vmem [shape: f32[1,256], index: 5, kind: input, shape index: {}]
  %s6 = inlined_call_operand.vmem [shape: f32[2,8,8,128], index: 6, kind: output, shape index: {}]
  %s7 = sld [smem:[#allocation0]]
  $region57: #{encoder_block_forward.7} parent=0
    _
  %s9 = ssub.s32 1, %s7
  %s10 = scalar_select 0, %s9, %s7
  loop: start=0, step=1, limit=6
  $region2: #{encoder_block_forward.7} parent=0 // loop_pre_header
    _
  $region3: #{encoder_block_forward.7} parent=0 // loop_header
    %s12 = sphi 0, %s16
    %p13 = scmp.ge.s32.totalorder %s12, 6
    %s19 = sphi 0, %s31
    %s20 = sphi 0, %s27
    %s21 = sphi 0, %s19
    %s22 = sphi 0, %s20
    %s23 = sphi 0, %s21
    %s24 = sphi 0, %s22
    %s36 = sphi 0, %s38
    %s39 = sphi 0, %s36
    %s40 = sphi 0, %s39
    %s56 = sphi 0, %s40
    %s64 = sphi 0, %s66
    %s67 = sphi 0, %s64
    %s68 = sphi 0, %s67
    %s84 = sphi 0, %s68
    %s88 = sphi 0, %s88
    %s90 = sphi 0, %s88
    %s91 = sphi 0, %s90
    %s105 = sphi 0, %s91
    %s109 = sphi 0, %s109
    %s111 = sphi 0, %s109
    %s112 = sphi 0, %s111
    %s126 = sphi 0, %s112
    %s130 = sphi 0, %s130
    %s132 = sphi 0, %s130
    %s133 = sphi 0, %s132
    %s147 = sphi 0, %s133
    %s151 = sphi 0, %s151
    %s153 = sphi 0, %s151
    %s154 = sphi 0, %s153
    %s168 = sphi 0, %s154
    %s176 = sphi 0, %s178
    %s179 = sphi 0, %s176
    %s180 = sphi 0, %s179
    %s196 = sphi 0, %s180
  $region4: #{encoder_block_forward.7} parent=0 // loop_header_branch
    %15 = sbr.rel (%p13) target = $region8
  $region5: #{encoder_block_forward.7} parent=0 // loop_body
    %s17 = ssub.s32 %s12, 1
    %s18 = ssub.s32 %s12, 2
    %s25 = sadd.s32 1, %s20
    %p26 = scmp.ge.s32.totalorder %s25, 2
    %s27 = scalar_select %p26, 0, %s25
    %s28 = sadd.s32 1, %s19
    %s29 = scalar_select %p26, %s28, %s19
    %p30 = scmp.ge.s32.totalorder %s29, 2
    %s31 = scalar_select %p30, 0, %s29
    %s32 = ssub.s32 %s19, %s31
    %s33 = ssub.s32 %s20, %s27
    %s34 = sor.u32 %s32, %s33
    %p35 = scmp.eq.s32.totalorder %s34, 0
    %s37 = sadd.s32 %s36, 1
    %s38 = scalar_select %p35, %s36, %s37
    %p41 = pneg %p35
    %p42 = scmp.eq.s32.totalorder %s12, 3
    %p43 = por %p41, %p42
    %p44 = scmp.ne.s32.totalorder %s36, %s39
    %p45 = scmp.eq.s32.totalorder %s12, 0
    %p46 = por %p44, %p45
    %p47 = scmp.ne.s32.totalorder %s36, %s39
    %p48 = scmp.eq.s32.totalorder %s17, 3
    %p49 = por %p47, %p48
    %p50 = scmp.ne.s32.totalorder %s39, %s40
    %p51 = scmp.eq.s32.totalorder %s17, 0
    %p52 = por %p50, %p51
    %p53 = scmp.ne.s32.totalorder %s39, %s40
    %p54 = scmp.eq.s32.totalorder %s18, 3
    %p55 = por %p53, %p54
    %p57 = scmp.ne.s32.totalorder %s40, %s56
    %p58 = scmp.eq.s32.totalorder %s18, 0
    %p59 = por %p57, %p58
    %s60 = ssub.s32 %s19, %s31
    %s61 = ssub.s32 %s20, %s27
    %s62 = sor.u32 %s60, %s61
    %p63 = scmp.eq.s32.totalorder %s62, 0
    %s65 = sadd.s32 %s64, 1
    %s66 = scalar_select %p63, %s64, %s65
    %p69 = pneg %p63
    %p70 = scmp.eq.s32.totalorder %s12, 3
    %p71 = por %p69, %p70
    %p72 = scmp.ne.s32.totalorder %s64, %s67
    %p73 = scmp.eq.s32.totalorder %s12, 0
    %p74 = por %p72, %p73
    %p75 = scmp.ne.s32.totalorder %s64, %s67
    %p76 = scmp.eq.s32.totalorder %s17, 3
    %p77 = por %p75, %p76
    %p78 = scmp.ne.s32.totalorder %s67, %s68
    %p79 = scmp.eq.s32.totalorder %s17, 0
    %p80 = por %p78, %p79
    %p81 = scmp.ne.s32.totalorder %s67, %s68
    %p82 = scmp.eq.s32.totalorder %s18, 3
    %p83 = por %p81, %p82
    %p85 = scmp.ne.s32.totalorder %s68, %s84
    %p86 = scmp.eq.s32.totalorder %s18, 0
    %p87 = por %p85, %p86
    %s89 = sadd.s32 %s88, 1
    %p92 = scmp.eq.s32.totalorder %s12, 3
    %p93 = scmp.ne.s32.totalorder %s88, %s90
    %p94 = scmp.eq.s32.totalorder %s12, 0
    %p95 = por %p93, %p94
    %p96 = scmp.ne.s32.totalorder %s88, %s90
    %p97 = scmp.eq.s32.totalorder %s17, 3
    %p98 = por %p96, %p97
    %p99 = scmp.ne.s32.totalorder %s90, %s91
    %p100 = scmp.eq.s32.totalorder %s17, 0
    %p101 = por %p99, %p100
    %p102 = scmp.ne.s32.totalorder %s90, %s91
    %p103 = scmp.eq.s32.totalorder %s18, 3
    %p104 = por %p102, %p103
    %p106 = scmp.ne.s32.totalorder %s91, %s105
    %p107 = scmp.eq.s32.totalorder %s18, 0
    %p108 = por %p106, %p107
    %s110 = sadd.s32 %s109, 1
    %p113 = scmp.eq.s32.totalorder %s12, 3
    %p114 = scmp.ne.s32.totalorder %s109, %s111
    %p115 = scmp.eq.s32.totalorder %s12, 0
    %p116 = por %p114, %p115
    %p117 = scmp.ne.s32.totalorder %s109, %s111
    %p118 = scmp.eq.s32.totalorder %s17, 3
    %p119 = por %p117, %p118
    %p120 = scmp.ne.s32.totalorder %s111, %s112
    %p121 = scmp.eq.s32.totalorder %s17, 0
    %p122 = por %p120, %p121
    %p123 = scmp.ne.s32.totalorder %s111, %s112
    %p124 = scmp.eq.s32.totalorder %s18, 3
    %p125 = por %p123, %p124
    %p127 = scmp.ne.s32.totalorder %s112, %s126
    %p128 = scmp.eq.s32.totalorder %s18, 0
    %p129 = por %p127, %p128
    %s131 = sadd.s32 %s130, 1
    %p134 = scmp.eq.s32.totalorder %s12, 3
    %p135 = scmp.ne.s32.totalorder %s130, %s132
    %p136 = scmp.eq.s32.totalorder %s12, 0
    %p137 = por %p135, %p136
    %p138 = scmp.ne.s32.totalorder %s130, %s132
    %p139 = scmp.eq.s32.totalorder %s17, 3
    %p140 = por %p138, %p139
    %p141 = scmp.ne.s32.totalorder %s132, %s133
    %p142 = scmp.eq.s32.totalorder %s17, 0
    %p143 = por %p141, %p142
    %p144 = scmp.ne.s32.totalorder %s132, %s133
    %p145 = scmp.eq.s32.totalorder %s18, 3
    %p146 = por %p144, %p145
    %p148 = scmp.ne.s32.totalorder %s133, %s147
    %p149 = scmp.eq.s32.totalorder %s18, 0
    %p150 = por %p148, %p149
    %s152 = sadd.s32 %s151, 1
    %p155 = scmp.eq.s32.totalorder %s12, 3
    %p156 = scmp.ne.s32.totalorder %s151, %s153
    %p157 = scmp.eq.s32.totalorder %s12, 0
    %p158 = por %p156, %p157
    %p159 = scmp.ne.s32.totalorder %s151, %s153
    %p160 = scmp.eq.s32.totalorder %s17, 3
    %p161 = por %p159, %p160
    %p162 = scmp.ne.s32.totalorder %s153, %s154
    %p163 = scmp.eq.s32.totalorder %s17, 0
    %p164 = por %p162, %p163
    %p165 = scmp.ne.s32.totalorder %s153, %s154
    %p166 = scmp.eq.s32.totalorder %s18, 3
    %p167 = por %p165, %p166
    %p169 = scmp.ne.s32.totalorder %s154, %s168
    %p170 = scmp.eq.s32.totalorder %s18, 0
    %p171 = por %p169, %p170
    %s172 = ssub.s32 %s19, %s31
    %s173 = ssub.s32 %s20, %s27
    %s174 = sor.u32 %s172, %s173
    %p175 = scmp.eq.s32.totalorder %s174, 0
    %s177 = sadd.s32 %s176, 1
    %s178 = scalar_select %p175, %s176, %s177
    %p181 = pneg %p175
    %p182 = scmp.eq.s32.totalorder %s12, 3
    %p183 = por %p181, %p182
    %p184 = scmp.ne.s32.totalorder %s176, %s179
    %p185 = scmp.eq.s32.totalorder %s12, 0
    %p186 = por %p184, %p185
    %p187 = scmp.ne.s32.totalorder %s176, %s179
    %p188 = scmp.eq.s32.totalorder %s17, 3
    %p189 = por %p187, %p188
    %p190 = scmp.ne.s32.totalorder %s179, %s180
    %p191 = scmp.eq.s32.totalorder %s17, 0
    %p192 = por %p190, %p191
    %p193 = scmp.ne.s32.totalorder %s179, %s180
    %p194 = scmp.eq.s32.totalorder %s18, 3
    %p195 = por %p193, %p194
    %p197 = scmp.ne.s32.totalorder %s180, %s196
    %p198 = scmp.eq.s32.totalorder %s18, 0
    %p199 = por %p197, %p198
    %p200 = scmp.le.s32.totalorder 1, %s12
    %p201 = scmp.lt.s32.totalorder %s12, 5
    %p202 = pnand %p200, %p201
    %p203 = pneg %p202
    // Predicated region
    $region9: #{encoder_block_forward.7} parent=5 // pred_check
      _
    $region10: #{encoder_block_forward.7} parent=5 // pred_check_branch
      %205 = sbr.rel (%p202) target = $region12
    $region11: #{encoder_block_forward.7} parent=5 // pred_region
      %s206 = ssub.s32 %s12, 1
      // Predicated region
      $region13: #{encoder_block_forward.7} parent=11 // pred_check
        %p207 = pneg %p101
      $region14: #{encoder_block_forward.7} parent=11 // pred_check_branch
        %209 = sbr.rel (%p207) target = $region16
      $region15: #{encoder_block_forward.7} parent=11 // pred_region
        _
      $region16: #{encoder_block_forward.7} parent=11 // pred_fallthru
        _
      // Predicated region
      $region17: #{encoder_block_forward.7} parent=11 // pred_check
        %p210 = pneg %p122
      $region18: #{encoder_block_forward.7} parent=11 // pred_check_branch
        %212 = sbr.rel (%p210) target = $region20
      $region19: #{encoder_block_forward.7} parent=11 // pred_region
        _
      $region20: #{encoder_block_forward.7} parent=11 // pred_fallthru
        _
      // Predicated region
      $region21: #{encoder_block_forward.7} parent=11 // pred_check
        %p213 = pneg %p143
      $region22: #{encoder_block_forward.7} parent=11 // pred_check_branch
        %215 = sbr.rel (%p213) target = $region24
      $region23: #{encoder_block_forward.7} parent=11 // pred_region
        _
      $region24: #{encoder_block_forward.7} parent=11 // pred_fallthru
        _
      // Predicated region
      $region25: #{encoder_block_forward.7} parent=11 // pred_check
        %p216 = pneg %p164
      $region26: #{encoder_block_forward.7} parent=11 // pred_check_branch
        %218 = sbr.rel (%p216) target = $region28
      $region27: #{encoder_block_forward.7} parent=11 // pred_region
        _
      $region28: #{encoder_block_forward.7} parent=11 // pred_fallthru
        _
    $region12: #{encoder_block_forward.7} parent=5 // pred_fallthru
      _
    %p219 = scmp.lt.s32.totalorder %s12, 4
    // Predicated region
    $region29: #{encoder_block_forward.7} parent=5 // pred_check
      %p220 = pneg %p219
    $region30: #{encoder_block_forward.7} parent=5 // pred_check_branch
      %222 = sbr.rel (%p220) target = $region32
    $region31: #{encoder_block_forward.7} parent=5 // pred_region
      // Predicated region
      $region33: #{encoder_block_forward.7} parent=31 // pred_check
        %p223 = pneg %p46
      $region34: #{encoder_block_forward.7} parent=31 // pred_check_branch
        %225 = sbr.rel (%p223) target = $region36
      $region35: #{encoder_block_forward.7} parent=31 // pred_region
        %s226 = smul.u32 8, %s20
        %p227 = scmp.lt.s32.totalorder %s19, 1
        %s228 = scalar_select %p227, %s19, 1
        %p229 = scmp.lt.s32.totalorder %s226, 15
        %s230 = scalar_select %p229, %s226, 15
        %s231 = smul.addr %s230, 2
        %s232 = smul.addr %s228, 32
        %s233 = sadd.s32 %s231, %s232
        %s234 = smul.addr %s233, 4
        %s235 = scalar_lea.vmem %s0, %s234
        %s236 = smul.u32 8, %s20
      $region36: #{encoder_block_forward.7} parent=31 // pred_fallthru
        _
      // Predicated region
      $region37: #{encoder_block_forward.7} parent=31 // pred_check
        %p237 = pneg %p74
      $region38: #{encoder_block_forward.7} parent=31 // pred_check_branch
        %239 = sbr.rel (%p237) target = $region40
      $region39: #{encoder_block_forward.7} parent=31 // pred_region
        %s240 = smul.u32 8, %s20
        %p241 = scmp.lt.s32.totalorder %s19, 1
        %s242 = scalar_select %p241, %s19, 1
        %p243 = scmp.lt.s32.totalorder %s240, 15
        %s244 = scalar_select %p243, %s240, 15
        %s245 = smul.addr %s244, 2
        %s246 = smul.addr %s242, 32
        %s247 = sadd.s32 %s245, %s246
        %s248 = smul.addr %s247, 4
        %s249 = scalar_lea.vmem %s1, %s248
        %s250 = smul.u32 8, %s20
      $region40: #{encoder_block_forward.7} parent=31 // pred_fallthru
        _
    $region32: #{encoder_block_forward.7} parent=5 // pred_fallthru
      _
    %p251 = scmp.le.s32.totalorder 1, %s12
    %p252 = scmp.lt.s32.totalorder %s12, 5
    %p253 = pnand %p251, %p252
    %p254 = pneg %p253
    // Predicated region
    $region41: #{encoder_block_forward.7} parent=5 // pred_check
      _
    $region42: #{encoder_block_forward.7} parent=5 // pred_check_branch
      %256 = sbr.rel (%p253) target = $region44
    $region43: #{encoder_block_forward.7} parent=5 // pred_region
      %s257 = ssub.s32 %s12, 1
      %s258 = smul.u32 8, %s22
      %p259 = scmp.lt.s32.totalorder %s21, 1
      %s260 = scalar_select %p259, %s21, 1
      %p261 = scmp.lt.s32.totalorder %s258, 15
      %s262 = scalar_select %p261, %s258, 15
      %s263 = smul.addr %s262, 2
      %s264 = smul.addr %s260, 32
      %s265 = sadd.s32 %s263, %s264
      %s266 = smul.addr %s265, 4
      %s267 = scalar_lea.vmem %s0, %s266
      %p268 = pneg %p52
      %p269 = pneg %p49
      %s270 = smul.u32 8, %s22
      %p271 = scmp.lt.s32.totalorder %s21, 1
      %s272 = scalar_select %p271, %s21, 1
      %p273 = scmp.lt.s32.totalorder %s270, 15
      %s274 = scalar_select %p273, %s270, 15
      %s275 = smul.addr %s274, 2
      %s276 = smul.addr %s272, 32
      %s277 = sadd.s32 %s275, %s276
      %s278 = smul.addr %s277, 4
      %s279 = scalar_lea.vmem %s1, %s278
      %p280 = pneg %p80
      %p281 = pneg %p77
      %p282 = pneg %p101
      %p283 = pneg %p98
      %p284 = pneg %p122
      %p285 = pneg %p119
      %p286 = pneg %p143
      %p287 = pneg %p140
      %p288 = pneg %p164
      %p289 = pneg %p161
      %p290 = pneg %p192
      %p291 = pneg %p189
      %s292 = smul.u32 4, %s22
      %p293 = scmp.lt.s32.totalorder %s21, 1
      %s294 = scalar_select %p293, %s21, 1
      %p295 = scmp.lt.s32.totalorder %s292, 7
      %s296 = scalar_select %p295, %s292, 7
      %s297 = smul.addr %s294, 8
      %s298 = sadd.s32 %s296, %s297
      %s299 = smul.addr %s298, 8
      %s300 = scalar_lea.vmem %s6, %s299
      %s301 = smul.u32 8, %s22
      %p302 = scmp.lt.s32.totalorder %s21, 1
      %s303 = scalar_select %p302, %s21, 1
      %p304 = scmp.lt.s32.totalorder %s301, 15
      %s305 = scalar_select %p304, %s301, 15
      %s306 = smul.addr %s305, 2
      %s307 = smul.addr %s303, 32
      %s308 = sadd.s32 %s306, %s307
      %s309 = smul.addr %s308, 4
      %s310 = scalar_lea.vmem %s0, %s309
      %s311 = smul.u32 8, %s22
      %s312 = smul.u32 8, %s22
      %p313 = scmp.lt.s32.totalorder %s21, 1
      %s314 = scalar_select %p313, %s21, 1
      %p315 = scmp.lt.s32.totalorder %s312, 15
      %s316 = scalar_select %p315, %s312, 15
      %s317 = smul.addr %s316, 2
      %s318 = smul.addr %s314, 32
      %s319 = sadd.s32 %s317, %s318
      %s320 = smul.addr %s319, 4
      %s321 = scalar_lea.vmem %s1, %s320
      %s322 = smul.u32 8, %s22
      %s323 = smul.u32 4, %s22
      %p324 = scmp.lt.s32.totalorder %s21, 1
      %s325 = scalar_select %p324, %s21, 1
      %p326 = scmp.lt.s32.totalorder %s323, 7
      %s327 = scalar_select %p326, %s323, 7
      %s328 = smul.addr %s325, 8
      %s329 = sadd.s32 %s327, %s328
      %s330 = smul.addr %s329, 8
      %s331 = scalar_lea.vmem %s6, %s330
      %s332 = smul.u32 4, %s22
      %v334 = vld [vmem:[%s310] sm:$0xff]
      %v335 = vld [vmem:[%s310 + $0x8] sm:$0xff]
      %v336 = vld [vmem:[%s310 + $0x10] sm:$0xff]
      %v337 = vld [vmem:[%s310 + $0x18] sm:$0xff]
      %v338 = vld [vmem:[%s310 + $0x20] sm:$0xff]
      %v339 = vld [vmem:[%s310 + $0x28] sm:$0xff]
      %v340 = vld [vmem:[%s310 + $0x30] sm:$0xff]
      %v341 = vld [vmem:[%s310 + $0x38] sm:$0xff]
      %v342 = vld [vmem:[%s321] sm:$0xff]
      %v343 = vld [vmem:[%s321 + $0x8] sm:$0xff]
      %v344 = vld [vmem:[%s321 + $0x10] sm:$0xff]
      %v345 = vld [vmem:[%s321 + $0x18] sm:$0xff]
      %v346 = vld [vmem:[%s321 + $0x20] sm:$0xff]
      %v347 = vld [vmem:[%s321 + $0x28] sm:$0xff]
      %v348 = vld [vmem:[%s321 + $0x30] sm:$0xff]
      %v349 = vld [vmem:[%s321 + $0x38] sm:$0xff]
      %v350 = vld [vmem:[%s2] sm:$0x3]
      %v352 = vlaneseq
      %v353 = vshrl.u32 %v352, 7
      %v354 = vsub.s32 0, %v353
      %v355 = vrot.slane %v350, %v354
      %v356 = vlaneseq
      %v357 = vshrl.u32 %v356, 7
      %v358 = vsub.s32 1, %v357
      %v359 = vrot.slane %v350, %v358
      %v362 = vpack.c.bf16 %v355, %v355
      %v363 = vpack.c.bf16 %v359, %v359
      %v364 = vld [vmem:[%s3] sm:$0x3]
      %v366 = vlaneseq
      %v367 = vshrl.u32 %v366, 7
      %v368 = vsub.s32 0, %v367
      %v369 = vrot.slane %v364, %v368
      %v370 = vlaneseq
      %v371 = vshrl.u32 %v370, 7
      %v372 = vsub.s32 1, %v371
      %v373 = vrot.slane %v364, %v372
      %v376 = vpack.c.bf16 %v369, %v369
      %v377 = vpack.c.bf16 %v373, %v373
      %v378 = vld [vmem:[%s4] sm:$0x3]
      %v380 = vlaneseq
      %v381 = vshrl.u32 %v380, 7
      %v382 = vsub.s32 0, %v381
      %v383 = vrot.slane %v378, %v382
      %v384 = vlaneseq
      %v385 = vshrl.u32 %v384, 7
      %v386 = vsub.s32 1, %v385
      %v387 = vrot.slane %v378, %v386
      %v390 = vpack.c.bf16 %v383, %v383
      %v391 = vpack.c.bf16 %v387, %v387
      %v392 = vld [vmem:[%s5] sm:$0x3]
      %v394 = vlaneseq
      %v395 = vshrl.u32 %v394, 7
      %v396 = vsub.s32 0, %v395
      %v397 = vrot.slane %v392, %v396
      %v398 = vlaneseq
      %v399 = vshrl.u32 %v398, 7
      %v400 = vsub.s32 1, %v399
      %v401 = vrot.slane %v392, %v400
      %v404 = vpack.c.bf16 %v397, %v397
      %v405 = vpack.c.bf16 %v401, %v401
      %v407 = vpack.i.b16 %v362, %v362
      %v409 = vlaneseq
      %v410 = vshrl.u32 %v409, 7
      %v411 = vsub.s32 0, %v410
      %v412 = vrot.slane %v407, %v411
      %v414 = vpack.i.b16 %v363, %v363
      %v416 = vlaneseq
      %v417 = vshrl.u32 %v416, 7
      %v418 = vsub.s32 0, %v417
      %v419 = vrot.slane %v414, %v418
      %v422 = vunpack.c.l.b16 %v412
      %v423 = vunpack.c.l.b16 %v419
      %v424 = vpack.c.b16 %v423, %v422
      %v426 = vmul.bf16 %v334, %v424
      %v427 = vmul.bf16 %v335, %v424
      %v428 = vmul.bf16 %v336, %v424
      %v429 = vmul.bf16 %v337, %v424
      %v430 = vmul.bf16 %v338, %v424
      %v431 = vmul.bf16 %v339, %v424
      %v432 = vmul.bf16 %v340, %v424
      %v433 = vmul.bf16 %v341, %v424
      %v435 = vpack.i.b16 %v376, %v376
      %v437 = vlaneseq
      %v438 = vshrl.u32 %v437, 7
      %v439 = vsub.s32 0, %v438
      %v440 = vrot.slane %v435, %v439
      %v442 = vpack.i.b16 %v377, %v377
      %v444 = vlaneseq
      %v445 = vshrl.u32 %v444, 7
      %v446 = vsub.s32 0, %v445
      %v447 = vrot.slane %v442, %v446
      %v450 = vunpack.c.l.b16 %v440
      %v451 = vunpack.c.l.b16 %v447
      %v452 = vpack.c.b16 %v451, %v450
      %v454 = vadd.bf16 %v426, %v452
      %v455 = vadd.bf16 %v427, %v452
      %v456 = vadd.bf16 %v428, %v452
      %v457 = vadd.bf16 %v429, %v452
      %v458 = vadd.bf16 %v430, %v452
      %v459 = vadd.bf16 %v431, %v452
      %v460 = vadd.bf16 %v432, %v452
      %v461 = vadd.bf16 %v433, %v452
      %v462 = vmax.bf16 %v454, 0
      %v463 = vmax.bf16 %v455, 0
      %v464 = vmax.bf16 %v456, 0
      %v465 = vmax.bf16 %v457, 0
      %v466 = vmax.bf16 %v458, 0
      %v467 = vmax.bf16 %v459, 0
      %v468 = vmax.bf16 %v460, 0
      %v469 = vmax.bf16 %v461, 0
      %v471 = vpack.i.b16 %v390, %v390
      %v473 = vlaneseq
      %v474 = vshrl.u32 %v473, 7
      %v475 = vsub.s32 0, %v474
      %v476 = vrot.slane %v471, %v475
      %v478 = vpack.i.b16 %v391, %v391
      %v480 = vlaneseq
      %v481 = vshrl.u32 %v480, 7
      %v482 = vsub.s32 0, %v481
      %v483 = vrot.slane %v478, %v482
      %v486 = vunpack.c.l.b16 %v476
      %v487 = vunpack.c.l.b16 %v483
      %v488 = vpack.c.b16 %v487, %v486
      %v490 = vmul.bf16 %v342, %v488
      %v491 = vmul.bf16 %v343, %v488
      %v492 = vmul.bf16 %v344, %v488
      %v493 = vmul.bf16 %v345, %v488
      %v494 = vmul.bf16 %v346, %v488
      %v495 = vmul.bf16 %v347, %v488
      %v496 = vmul.bf16 %v348, %v488
      %v497 = vmul.bf16 %v349, %v488
      %v498 = vadd.bf16 %v462, %v490
      %v499 = vadd.bf16 %v463, %v491
      %v500 = vadd.bf16 %v464, %v492
      %v501 = vadd.bf16 %v465, %v493
      %v502 = vadd.bf16 %v466, %v494
      %v503 = vadd.bf16 %v467, %v495
      %v504 = vadd.bf16 %v468, %v496
      %v505 = vadd.bf16 %v469, %v497
      %v507 = vpack.i.b16 %v404, %v404
      %v509 = vlaneseq
      %v510 = vshrl.u32 %v509, 7
      %v511 = vsub.s32 0, %v510
      %v512 = vrot.slane %v507, %v511
      %v514 = vpack.i.b16 %v405, %v405
      %v516 = vlaneseq
      %v517 = vshrl.u32 %v516, 7
      %v518 = vsub.s32 0, %v517
      %v519 = vrot.slane %v514, %v518
      %v522 = vunpack.c.l.b16 %v512
      %v523 = vunpack.c.l.b16 %v519
      %v524 = vpack.c.b16 %v523, %v522
      %v526 = vadd.bf16 %v498, %v524
      %v527 = vadd.bf16 %v499, %v524
      %v528 = vadd.bf16 %v500, %v524
      %v529 = vadd.bf16 %v501, %v524
      %v530 = vadd.bf16 %v502, %v524
      %v531 = vadd.bf16 %v503, %v524
      %v532 = vadd.bf16 %v504, %v524
      %v533 = vadd.bf16 %v505, %v524
      %v534 = vmax.bf16 %v526, 0
      %v535 = vmax.bf16 %v527, 0
      %v536 = vmax.bf16 %v528, 0
      %v537 = vmax.bf16 %v529, 0
      %v538 = vmax.bf16 %v530, 0
      %v539 = vmax.bf16 %v531, 0
      %v540 = vmax.bf16 %v532, 0
      %v541 = vmax.bf16 %v533, 0
      %v550 = vrot.slane %v534, 4
      %v551 = vrot.slane %v535, 4
      %v552 = vrot.slane %v536, 4
      %v553 = vrot.slane %v537, 4
      %v554 = vrot.slane %v538, 4
      %v555 = vrot.slane %v539, 4
      %v556 = vrot.slane %v540, 4
      %v557 = vrot.slane %v541, 4
      %v566 = vmax.bf16 %v534, %v550
      %v567 = vmax.bf16 %v535, %v551
      %v568 = vmax.bf16 %v536, %v552
      %v569 = vmax.bf16 %v537, %v553
      %v570 = vmax.bf16 %v538, %v554
      %v571 = vmax.bf16 %v539, %v555
      %v572 = vmax.bf16 %v540, %v556
      %v573 = vmax.bf16 %v541, %v557
      %v574 = vmax.bf16 %v566, %v567
      %v575 = vmax.bf16 %v568, %v569
      %v576 = vmax.bf16 %v570, %v571
      %v577 = vmax.bf16 %v572, %v573
      %v578 = vunpack.c.l.bf16 %v574
      %v579 = vunpack.c.l.bf16 %v575
      %v580 = vunpack.c.l.bf16 %v576
      %v581 = vunpack.c.l.bf16 %v577
      %582 = vst [vmem:[%s331] sm:$0xff] %v578
      %583 = vst [vmem:[%s331 + $0x8] sm:$0xff] %v579
      %584 = vst [vmem:[%s331 + $0x10] sm:$0xff] %v580
      %585 = vst [vmem:[%s331 + $0x18] sm:$0xff] %v581
      %s586 = smul.u32 4, %s22
      %p587 = scmp.lt.s32.totalorder %s21, 1
      %s588 = scalar_select %p587, %s21, 1
      %p589 = scmp.lt.s32.totalorder %s586, 7
      %s590 = scalar_select %p589, %s586, 7
      %s591 = smul.addr %s588, 8
      %s592 = sadd.s32 %s590, %s591
      %s593 = smul.addr %s592, 8
      %s594 = scalar_lea.vmem %s6, %s593
      // Predicated region
      $region45: #{encoder_block_forward.7} parent=43 // pred_check
        %p595 = pneg %p189
      $region46: #{encoder_block_forward.7} parent=43 // pred_check_branch
        %597 = sbr.rel (%p595) target = $region48
      $region47: #{encoder_block_forward.7} parent=43 // pred_region
        %s598 = smul.u32 4, %s22
      $region48: #{encoder_block_forward.7} parent=43 // pred_fallthru
        _
    $region44: #{encoder_block_forward.7} parent=5 // pred_fallthru
      _
    %p599 = scmp.le.s32.totalorder 2, %s12
    // Predicated region
    $region49: #{encoder_block_forward.7} parent=5 // pred_check
      %p600 = pneg %p599
    $region50: #{encoder_block_forward.7} parent=5 // pred_check_branch
      %602 = sbr.rel (%p600) target = $region52
    $region51: #{encoder_block_forward.7} parent=5 // pred_region
      %s603 = ssub.s32 %s12, 2
      // Predicated region
      $region53: #{encoder_block_forward.7} parent=51 // pred_check
        %p604 = pneg %p195
      $region54: #{encoder_block_forward.7} parent=51 // pred_check_branch
        %606 = sbr.rel (%p604) target = $region56
      $region55: #{encoder_block_forward.7} parent=51 // pred_region
        %s607 = smul.u32 4, %s24
        %p608 = scmp.lt.s32.totalorder %s23, 1
        %s609 = scalar_select %p608, %s23, 1
        %p610 = scmp.lt.s32.totalorder %s607, 7
        %s611 = scalar_select %p610, %s607, 7
        %s612 = smul.addr %s609, 8
        %s613 = sadd.s32 %s611, %s612
        %s614 = smul.addr %s613, 8
        %s615 = scalar_lea.vmem %s6, %s614
      $region56: #{encoder_block_forward.7} parent=51 // pred_fallthru
        _
    $region52: #{encoder_block_forward.7} parent=5 // pred_fallthru
      _
  $region6: #{encoder_block_forward.7} parent=0 // loop_footer
    %s16 = sadd.s32 1, %s12
  $region7: #{encoder_block_forward.7} parent=0 // loop_footer_branch
    %11 = sbr.rel target = $region3
  $region8: #{encoder_block_forward.7} parent=0 // loop_exit
    _

// kernel: encoder_block_forward.5
$region0: #{encoder_block_forward.5}
  #allocation0 [shape = 'u32[]', space=smem, size = 0x4, offset = 0x4, fixed_abs, tag = 'smem constant byte address 0x4 - core index']
  #allocation1 [shape = 'u32[144,128]{1,0:T(1,128)}', space=vmem, size = 0x12000, scoped, tag = 'internal scratch']
  %s0 = inlined_call_operand.vmem [shape: bf16[2,16,16,128], index: 0, kind: input, shape index: {}]
  %s1 = inlined_call_operand.vmem [shape: f32[1,128], index: 1, kind: input, shape index: {}]
  %s2 = inlined_call_operand.vmem [shape: f32[1,128], index: 2, kind: input, shape index: {}]
  %s3 = inlined_call_operand.vmem [shape: bf16[1152,128], index: 3, kind: input, shape index: {}]
  %s4 = inlined_call_operand.vmem [shape: f32[1,128], index: 4, kind: input, shape index: {}]
  %s5 = inlined_call_operand.vmem [shape: bf16[2,256,128], index: 5, kind: output, shape index: {0}]
  %s6 = inlined_call_operand.vmem [shape: f32[2,8,128], index: 6, kind: output, shape index: {1}]
  %7 = xla_tuple %s5, %s6
  %s8 = sld [smem:[#allocation0]]
  $region61: #{encoder_block_forward.5} parent=0
    _
  %s10 = ssub.s32 1, %s8
  %s11 = scalar_select 0, %s10, %s8
  loop: start=0, step=1, limit=4
  $region2: #{encoder_block_forward.5} parent=0 // loop_pre_header
    _
  $region3: #{encoder_block_forward.5} parent=0 // loop_header
    %s13 = sphi 0, %s17
    %p14 = scmp.ge.s32.totalorder %s13, 4
    %s23 = sphi 0, %s25
    %s26 = sphi 0, %s23
    %s27 = sphi 0, %s26
    %s43 = sphi 0, %s27
    %s47 = sphi 0, %s47
    %s49 = sphi 0, %s47
    %s50 = sphi 0, %s49
    %s64 = sphi 0, %s50
    %s68 = sphi 0, %s68
    %s70 = sphi 0, %s68
    %s71 = sphi 0, %s70
    %s85 = sphi 0, %s71
    %s89 = sphi 0, %s89
    %s91 = sphi 0, %s89
    %s92 = sphi 0, %s91
    %s106 = sphi 0, %s92
    %s110 = sphi 0, %s110
    %s112 = sphi 0, %s110
    %s113 = sphi 0, %s112
    %s127 = sphi 0, %s113
    %s133 = sphi 0, %s135
    %s136 = sphi 0, %s133
    %s137 = sphi 0, %s136
    %s153 = sphi 0, %s137
    %s159 = sphi 0, %s161
    %s162 = sphi 0, %s159
    %s163 = sphi 0, %s162
    %s179 = sphi 0, %s163
  $region4: #{encoder_block_forward.5} parent=0 // loop_header_branch
    %16 = sbr.rel (%p14) target = $region8
  $region5: #{encoder_block_forward.5} parent=0 // loop_body
    %s18 = ssub.s32 %s13, 1
    %s19 = ssub.s32 %s13, 2
    %s20 = sadd.s32 %s13, 1
    %s21 = ssub.s32 %s13, %s20
    %p22 = scmp.eq.s32.totalorder %s21, 0
    %s24 = sadd.s32 %s23, 1
    %s25 = scalar_select %p22, %s23, %s24
    %p28 = pneg %p22
    %p29 = scmp.eq.s32.totalorder %s13, 1
    %p30 = por %p28, %p29
    %p31 = scmp.ne.s32.totalorder %s23, %s26
    %p32 = scmp.eq.s32.totalorder %s13, 0
    %p33 = por %p31, %p32
    %p34 = scmp.ne.s32.totalorder %s23, %s26
    %p35 = scmp.eq.s32.totalorder %s18, 1
    %p36 = por %p34, %p35
    %p37 = scmp.ne.s32.totalorder %s26, %s27
    %p38 = scmp.eq.s32.totalorder %s18, 0
    %p39 = por %p37, %p38
    %p40 = scmp.ne.s32.totalorder %s26, %s27
    %p41 = scmp.eq.s32.totalorder %s19, 1
    %p42 = por %p40, %p41
    %p44 = scmp.ne.s32.totalorder %s27, %s43
    %p45 = scmp.eq.s32.totalorder %s19, 0
    %p46 = por %p44, %p45
    %s48 = sadd.s32 %s47, 1
    %p51 = scmp.eq.s32.totalorder %s13, 1
    %p52 = scmp.ne.s32.totalorder %s47, %s49
    %p53 = scmp.eq.s32.totalorder %s13, 0
    %p54 = por %p52, %p53
    %p55 = scmp.ne.s32.totalorder %s47, %s49
    %p56 = scmp.eq.s32.totalorder %s18, 1
    %p57 = por %p55, %p56
    %p58 = scmp.ne.s32.totalorder %s49, %s50
    %p59 = scmp.eq.s32.totalorder %s18, 0
    %p60 = por %p58, %p59
    %p61 = scmp.ne.s32.totalorder %s49, %s50
    %p62 = scmp.eq.s32.totalorder %s19, 1
    %p63 = por %p61, %p62
    %p65 = scmp.ne.s32.totalorder %s50, %s64
    %p66 = scmp.eq.s32.totalorder %s19, 0
    %p67 = por %p65, %p66
    %s69 = sadd.s32 %s68, 1
    %p72 = scmp.eq.s32.totalorder %s13, 1
    %p73 = scmp.ne.s32.totalorder %s68, %s70
    %p74 = scmp.eq.s32.totalorder %s13, 0
    %p75 = por %p73, %p74
    %p76 = scmp.ne.s32.totalorder %s68, %s70
    %p77 = scmp.eq.s32.totalorder %s18, 1
    %p78 = por %p76, %p77
    %p79 = scmp.ne.s32.totalorder %s70, %s71
    %p80 = scmp.eq.s32.totalorder %s18, 0
    %p81 = por %p79, %p80
    %p82 = scmp.ne.s32.totalorder %s70, %s71
    %p83 = scmp.eq.s32.totalorder %s19, 1
    %p84 = por %p82, %p83
    %p86 = scmp.ne.s32.totalorder %s71, %s85
    %p87 = scmp.eq.s32.totalorder %s19, 0
    %p88 = por %p86, %p87
    %s90 = sadd.s32 %s89, 1
    %p93 = scmp.eq.s32.totalorder %s13, 1
    %p94 = scmp.ne.s32.totalorder %s89, %s91
    %p95 = scmp.eq.s32.totalorder %s13, 0
    %p96 = por %p94, %p95
    %p97 = scmp.ne.s32.totalorder %s89, %s91
    %p98 = scmp.eq.s32.totalorder %s18, 1
    %p99 = por %p97, %p98
    %p100 = scmp.ne.s32.totalorder %s91, %s92
    %p101 = scmp.eq.s32.totalorder %s18, 0
    %p102 = por %p100, %p101
    %p103 = scmp.ne.s32.totalorder %s91, %s92
    %p104 = scmp.eq.s32.totalorder %s19, 1
    %p105 = por %p103, %p104
    %p107 = scmp.ne.s32.totalorder %s92, %s106
    %p108 = scmp.eq.s32.totalorder %s19, 0
    %p109 = por %p107, %p108
    %s111 = sadd.s32 %s110, 1
    %p114 = scmp.eq.s32.totalorder %s13, 1
    %p115 = scmp.ne.s32.totalorder %s110, %s112
    %p116 = scmp.eq.s32.totalorder %s13, 0
    %p117 = por %p115, %p116
    %p118 = scmp.ne.s32.totalorder %s110, %s112
    %p119 = scmp.eq.s32.totalorder %s18, 1
    %p120 = por %p118, %p119
    %p121 = scmp.ne.s32.totalorder %s112, %s113
    %p122 = scmp.eq.s32.totalorder %s18, 0
    %p123 = por %p121, %p122
    %p124 = scmp.ne.s32.totalorder %s112, %s113
    %p125 = scmp.eq.s32.totalorder %s19, 1
    %p126 = por %p124, %p125
    %p128 = scmp.ne.s32.totalorder %s113, %s127
    %p129 = scmp.eq.s32.totalorder %s19, 0
    %p130 = por %p128, %p129
    %s131 = ssub.s32 %s13, %s20
    %p132 = scmp.eq.s32.totalorder %s131, 0
    %s134 = sadd.s32 %s133, 1
    %s135 = scalar_select %p132, %s133, %s134
    %p138 = pneg %p132
    %p139 = scmp.eq.s32.totalorder %s13, 1
    %p140 = por %p138, %p139
    %p141 = scmp.ne.s32.totalorder %s133, %s136
    %p142 = scmp.eq.s32.totalorder %s13, 0
    %p143 = por %p141, %p142
    %p144 = scmp.ne.s32.totalorder %s133, %s136
    %p145 = scmp.eq.s32.totalorder %s18, 1
    %p146 = por %p144, %p145
    %p147 = scmp.ne.s32.totalorder %s136, %s137
    %p148 = scmp.eq.s32.totalorder %s18, 0
    %p149 = por %p147, %p148
    %p150 = scmp.ne.s32.totalorder %s136, %s137
    %p151 = scmp.eq.s32.totalorder %s19, 1
    %p152 = por %p150, %p151
    %p154 = scmp.ne.s32.totalorder %s137, %s153
    %p155 = scmp.eq.s32.totalorder %s19, 0
    %p156 = por %p154, %p155
    %s157 = ssub.s32 %s13, %s20
    %p158 = scmp.eq.s32.totalorder %s157, 0
    %s160 = sadd.s32 %s159, 1
    %s161 = scalar_select %p158, %s159, %s160
    %p164 = pneg %p158
    %p165 = scmp.eq.s32.totalorder %s13, 1
    %p166 = por %p164, %p165
    %p167 = scmp.ne.s32.totalorder %s159, %s162
    %p168 = scmp.eq.s32.totalorder %s13, 0
    %p169 = por %p167, %p168
    %p170 = scmp.ne.s32.totalorder %s159, %s162
    %p171 = scmp.eq.s32.totalorder %s18, 1
    %p172 = por %p170, %p171
    %p173 = scmp.ne.s32.totalorder %s162, %s163
    %p174 = scmp.eq.s32.totalorder %s18, 0
    %p175 = por %p173, %p174
    %p176 = scmp.ne.s32.totalorder %s162, %s163
    %p177 = scmp.eq.s32.totalorder %s19, 1
    %p178 = por %p176, %p177
    %p180 = scmp.ne.s32.totalorder %s163, %s179
    %p181 = scmp.eq.s32.totalorder %s19, 0
    %p182 = por %p180, %p181
    %p183 = scmp.le.s32.totalorder 1, %s13
    %p184 = scmp.lt.s32.totalorder %s13, 3
    %p185 = pnand %p183, %p184
    %p186 = pneg %p185
    // Predicated region
    $region9: #{encoder_block_forward.5} parent=5 // pred_check
      _
    $region10: #{encoder_block_forward.5} parent=5 // pred_check_branch
      %188 = sbr.rel (%p185) target = $region12
    $region11: #{encoder_block_forward.5} parent=5 // pred_region
      %s189 = ssub.s32 %s13, 1
      // Predicated region
      $region13: #{encoder_block_forward.5} parent=11 // pred_check
        %p190 = pneg %p60
      $region14: #{encoder_block_forward.5} parent=11 // pred_check_branch
        %192 = sbr.rel (%p190) target = $region16
      $region15: #{encoder_block_forward.5} parent=11 // pred_region
        _
      $region16: #{encoder_block_forward.5} parent=11 // pred_fallthru
        _
      // Predicated region
      $region17: #{encoder_block_forward.5} parent=11 // pred_check
        %p193 = pneg %p81
      $region18: #{encoder_block_forward.5} parent=11 // pred_check_branch
        %195 = sbr.rel (%p193) target = $region20
      $region19: #{encoder_block_forward.5} parent=11 // pred_region
        _
      $region20: #{encoder_block_forward.5} parent=11 // pred_fallthru
        _
      // Predicated region
      $region21: #{encoder_block_forward.5} parent=11 // pred_check
        %p196 = pneg %p102
      $region22: #{encoder_block_forward.5} parent=11 // pred_check_branch
        %198 = sbr.rel (%p196) target = $region24
      $region23: #{encoder_block_forward.5} parent=11 // pred_region
        _
      $region24: #{encoder_block_forward.5} parent=11 // pred_fallthru
        _
      // Predicated region
      $region25: #{encoder_block_forward.5} parent=11 // pred_check
        %p199 = pneg %p123
      $region26: #{encoder_block_forward.5} parent=11 // pred_check_branch
        %201 = sbr.rel (%p199) target = $region28
      $region27: #{encoder_block_forward.5} parent=11 // pred_region
        _
      $region28: #{encoder_block_forward.5} parent=11 // pred_fallthru
        _
    $region12: #{encoder_block_forward.5} parent=5 // pred_fallthru
      _
    %p202 = scmp.lt.s32.totalorder %s13, 2
    // Predicated region
    $region29: #{encoder_block_forward.5} parent=5 // pred_check
      %p203 = pneg %p202
    $region30: #{encoder_block_forward.5} parent=5 // pred_check_branch
      %205 = sbr.rel (%p203) target = $region32
    $region31: #{encoder_block_forward.5} parent=5 // pred_region
      // Predicated region
      $region33: #{encoder_block_forward.5} parent=31 // pred_check
        %p206 = pneg %p33
      $region34: #{encoder_block_forward.5} parent=31 // pred_check_branch
        %208 = sbr.rel (%p206) target = $region36
      $region35: #{encoder_block_forward.5} parent=31 // pred_region
        %p209 = scmp.lt.s32.totalorder %s13, 1
        %s210 = scalar_select %p209, %s13, 1
        %s211 = smul.addr %s210, 32
        %s212 = smul.addr %s211, 4
        %s213 = scalar_lea.vmem %s0, %s212
      $region36: #{encoder_block_forward.5} parent=31 // pred_fallthru
        _
    $region32: #{encoder_block_forward.5} parent=5 // pred_fallthru
      _
    %p214 = scmp.le.s32.totalorder 1, %s13
    %p215 = scmp.lt.s32.totalorder %s13, 3
    %p216 = pnand %p214, %p215
    %p217 = pneg %p216
    // Predicated region
    $region37: #{encoder_block_forward.5} parent=5 // pred_check
      _
    $region38: #{encoder_block_forward.5} parent=5 // pred_check_branch
      %219 = sbr.rel (%p216) target = $region40
    $region39: #{encoder_block_forward.5} parent=5 // pred_region
      %s220 = ssub.s32 %s13, 1
      %p221 = scmp.lt.s32.totalorder %s18, 1
      %s222 = scalar_select %p221, %s18, 1
      %s223 = smul.addr %s222, 32
      %s224 = smul.addr %s223, 4
      %s225 = scalar_lea.vmem %s0, %s224
      %p226 = pneg %p39
      %p227 = pneg %p36
      %p228 = pneg %p60
      %p229 = pneg %p57
      %p230 = pneg %p81
      %p231 = pneg %p78
      %p232 = pneg %p102
      %p233 = pneg %p99
      %p234 = pneg %p123
      %p235 = pneg %p120
      %p236 = pneg %p149
      %p237 = pneg %p146
      %p238 = scmp.lt.s32.totalorder %s18, 1
      %s239 = scalar_select %p238, %s18, 1
      %s240 = smul.addr %s239, 32
      %s241 = smul.addr %s240, 4
      %s242 = scalar_lea.vmem %s5, %s241
      %p243 = pneg %p175
      %p244 = pneg %p172
      %p245 = scmp.lt.s32.totalorder %s18, 1
      %s246 = scalar_select %p245, %s18, 1
      %s247 = smul.addr %s246, 8
      %s248 = scalar_lea.vmem %s6, %s247
      %p249 = scmp.lt.s32.totalorder %s18, 1
      %s250 = scalar_select %p249, %s18, 1
      %s251 = smul.addr %s250, 32
      %s252 = smul.addr %s251, 4
      %s253 = scalar_lea.vmem %s0, %s252
      %p254 = scmp.lt.s32.totalorder %s18, 1
      %s255 = scalar_select %p254, %s18, 1
      %s256 = smul.addr %s255, 32
      %s257 = smul.addr %s256, 4
      %s258 = scalar_lea.vmem %s5, %s257
      %p259 = scmp.lt.s32.totalorder %s18, 1
      %s260 = scalar_select %p259, %s18, 1
      %s261 = smul.addr %s260, 8
      %s262 = scalar_lea.vmem %s6, %s261
      %v264 = vld [vmem:[%s253] sm:$0xf]
      %v265 = vld [vmem:[%s253 + $0x4] sm:$0xf]
      %v266 = vld [vmem:[%s253 + $0x8] sm:$0xf]
      %v267 = vld [vmem:[%s253 + $0xc] sm:$0xf]
      %v268 = vld [vmem:[%s253 + $0x10] sm:$0xf]
      %v269 = vld [vmem:[%s253 + $0x14] sm:$0xf]
      %v270 = vld [vmem:[%s253 + $0x18] sm:$0xf]
      %v271 = vld [vmem:[%s253 + $0x1c] sm:$0xf]
      %v272 = vld [vmem:[%s253 + $0x20] sm:$0xf]
      %v273 = vld [vmem:[%s253 + $0x24] sm:$0xf]
      %v274 = vld [vmem:[%s253 + $0x28] sm:$0xf]
      %v275 = vld [vmem:[%s253 + $0x2c] sm:$0xf]
      %v276 = vld [vmem:[%s253 + $0x30] sm:$0xf]
      %v277 = vld [vmem:[%s253 + $0x34] sm:$0xf]
      %v278 = vld [vmem:[%s253 + $0x38] sm:$0xf]
      %v279 = vld [vmem:[%s253 + $0x3c] sm:$0xf]
      %v280 = vld [vmem:[%s253 + $0x40] sm:$0xf]
      %v281 = vld [vmem:[%s253 + $0x44] sm:$0xf]
      %v282 = vld [vmem:[%s253 + $0x48] sm:$0xf]
      %v283 = vld [vmem:[%s253 + $0x4c] sm:$0xf]
      %v284 = vld [vmem:[%s253 + $0x50] sm:$0xf]
      %v285 = vld [vmem:[%s253 + $0x54] sm:$0xf]
      %v286 = vld [vmem:[%s253 + $0x58] sm:$0xf]
      %v287 = vld [vmem:[%s253 + $0x5c] sm:$0xf]
      %v288 = vld [vmem:[%s253 + $0x60] sm:$0xf]
      %v289 = vld [vmem:[%s253 + $0x64] sm:$0xf]
      %v290 = vld [vmem:[%s253 + $0x68] sm:$0xf]
      %v291 = vld [vmem:[%s253 + $0x6c] sm:$0xf]
      %v292 = vld [vmem:[%s253 + $0x70] sm:$0xf]
      %v293 = vld [vmem:[%s253 + $0x74] sm:$0xf]
      %v294 = vld [vmem:[%s253 + $0x78] sm:$0xf]
      %v295 = vld [vmem:[%s253 + $0x7c] sm:$0xf]
      %v296 = vld [vmem:[%s1] sm:$0x1]
      %v297 = vpack.c.bf16 %v296, %v296
      %v299 = vpack.i.b16 %v297, %v297
      %v301 = vlaneseq
      %v302 = vshrl.u32 %v301, 7
      %v303 = vsub.s32 0, %v302
      %v304 = vrot.slane %v299, %v303
      %v306 = vunpack.c.l.b16 %v304
      %v307 = vpack.c.b16 %v306, %v306
      %v309 = vmul.bf16 %v264, %v307
      %v310 = vmul.bf16 %v265, %v307
      %v311 = vmul.bf16 %v266, %v307
      %v312 = vmul.bf16 %v267, %v307
      %v313 = vmul.bf16 %v268, %v307
      %v314 = vmul.bf16 %v269, %v307
      %v315 = vmul.bf16 %v270, %v307
      %v316 = vmul.bf16 %v271, %v307
      %v317 = vmul.bf16 %v272, %v307
      %v318 = vmul.bf16 %v273, %v307
      %v319 = vmul.bf16 %v274, %v307
      %v320 = vmul.bf16 %v275, %v307
      %v321 = vmul.bf16 %v276, %v307
      %v322 = vmul.bf16 %v277, %v307
      %v323 = vmul.bf16 %v278, %v307
      %v324 = vmul.bf16 %v279, %v307
      %v325 = vmul.bf16 %v280, %v307
      %v326 = vmul.bf16 %v281, %v307
      %v327 = vmul.bf16 %v282, %v307
      %v328 = vmul.bf16 %v283, %v307
      %v329 = vmul.bf16 %v284, %v307
      %v330 = vmul.bf16 %v285, %v307
      %v331 = vmul.bf16 %v286, %v307
      %v332 = vmul.bf16 %v287, %v307
      %v333 = vmul.bf16 %v288, %v307
      %v334 = vmul.bf16 %v289, %v307
      %v335 = vmul.bf16 %v290, %v307
      %v336 = vmul.bf16 %v291, %v307
      %v337 = vmul.bf16 %v292, %v307
      %v338 = vmul.bf16 %v293, %v307
      %v339 = vmul.bf16 %v294, %v307
      %v340 = vmul.bf16 %v295, %v307
      %v341 = vld [vmem:[%s2] sm:$0x1]
      %v342 = vpack.c.bf16 %v341, %v341
      %v344 = vpack.i.b16 %v342, %v342
      %v346 = vlaneseq
      %v347 = vshrl.u32 %v346, 7
      %v348 = vsub.s32 0, %v347
      %v349 = vrot.slane %v344, %v348
      %v351 = vunpack.c.l.b16 %v349
      %v352 = vpack.c.b16 %v351, %v351
      %v354 = vadd.bf16 %v309, %v352
      %v355 = vadd.bf16 %v310, %v352
      %v356 = vadd.bf16 %v311, %v352
      %v357 = vadd.bf16 %v312, %v352
      %v358 = vadd.bf16 %v313, %v352
      %v359 = vadd.bf16 %v314, %v352
      %v360 = vadd.bf16 %v315, %v352
      %v361 = vadd.bf16 %v316, %v352
      %v362 = vadd.bf16 %v317, %v352
      %v363 = vadd.bf16 %v318, %v352
      %v364 = vadd.bf16 %v319, %v352
      %v365 = vadd.bf16 %v320, %v352
      %v366 = vadd.bf16 %v321, %v352
      %v367 = vadd.bf16 %v322, %v352
      %v368 = vadd.bf16 %v323, %v352
      %v369 = vadd.bf16 %v324, %v352
      %v370 = vadd.bf16 %v325, %v352
      %v371 = vadd.bf16 %v326, %v352
      %v372 = vadd.bf16 %v327, %v352
      %v373 = vadd.bf16 %v328, %v352
      %v374 = vadd.bf16 %v329, %v352
      %v375 = vadd.bf16 %v330, %v352
      %v376 = vadd.bf16 %v331, %v352
      %v377 = vadd.bf16 %v332, %v352
      %v378 = vadd.bf16 %v333, %v352
      %v379 = vadd.bf16 %v334, %v352
      %v380 = vadd.bf16 %v335, %v352
      %v381 = vadd.bf16 %v336, %v352
      %v382 = vadd.bf16 %v337, %v352
      %v383 = vadd.bf16 %v338, %v352
      %v384 = vadd.bf16 %v339, %v352
      %v385 = vadd.bf16 %v340, %v352
      %v386 = vmax.bf16 %v354, 0
      %v387 = vmax.bf16 %v355, 0
      %v388 = vmax.bf16 %v356, 0
      %v389 = vmax.bf16 %v357, 0
      %v390 = vmax.bf16 %v358, 0
      %v391 = vmax.bf16 %v359, 0
      %v392 = vmax.bf16 %v360, 0
      %v393 = vmax.bf16 %v361, 0
      %v394 = vmax.bf16 %v362, 0
      %v395 = vmax.bf16 %v363, 0
      %v396 = vmax.bf16 %v364, 0
      %v397 = vmax.bf16 %v365, 0
      %v398 = vmax.bf16 %v366, 0
      %v399 = vmax.bf16 %v367, 0
      %v400 = vmax.bf16 %v368, 0
      %v401 = vmax.bf16 %v369, 0
      %v402 = vmax.bf16 %v370, 0
      %v403 = vmax.bf16 %v371, 0
      %v404 = vmax.bf16 %v372, 0
      %v405 = vmax.bf16 %v373, 0
      %v406 = vmax.bf16 %v374, 0
      %v407 = vmax.bf16 %v375, 0
      %v408 = vmax.bf16 %v376, 0
      %v409 = vmax.bf16 %v377, 0
      %v410 = vmax.bf16 %v378, 0
      %v411 = vmax.bf16 %v379, 0
      %v412 = vmax.bf16 %v380, 0
      %v413 = vmax.bf16 %v381, 0
      %v414 = vmax.bf16 %v382, 0
      %v415 = vmax.bf16 %v383, 0
      %v416 = vmax.bf16 %v384, 0
      %v417 = vmax.bf16 %v385, 0
      %v450 = vunpack.c.l.b16 %v386
      %v451 = vunpack.c.l.b16 %v387
      %v452 = vunpack.c.l.b16 %v388
      %v453 = vunpack.c.l.b16 %v389
      %v454 = vunpack.c.l.b16 %v390
      %v455 = vunpack.c.l.b16 %v391
      %v456 = vunpack.c.l.b16 %v392
      %v457 = vunpack.c.l.b16 %v393
      %v458 = vunpack.c.l.b16 %v394
      %v459 = vunpack.c.l.b16 %v395
      %v460 = vunpack.c.l.b16 %v396
      %v461 = vunpack.c.l.b16 %v397
      %v462 = vunpack.c.l.b16 %v398
      %v463 = vunpack.c.l.b16 %v399
      %v464 = vunpack.c.l.b16 %v400
      %v465 = vunpack.c.l.b16 %v401
      %v466 = vunpack.c.l.b16 %v402
      %v467 = vunpack.c.l.b16 %v403
      %v468 = vunpack.c.l.b16 %v404
      %v469 = vunpack.c.l.b16 %v405
      %v470 = vunpack.c.l.b16 %v406
      %v471 = vunpack.c.l.b16 %v407
      %v472 = vunpack.c.l.b16 %v408
      %v473 = vunpack.c.l.b16 %v409
      %v474 = vunpack.c.l.b16 %v410
      %v475 = vunpack.c.l.b16 %v411
      %v476 = vunpack.c.l.b16 %v412
      %v477 = vunpack.c.l.b16 %v413
      %v478 = vunpack.c.l.b16 %v414
      %v479 = vunpack.c.l.b16 %v415
      %v480 = vunpack.c.l.b16 %v416
      %v481 = vunpack.c.l.b16 %v417
      %v482 = vpack.c.b16 %v451, %v450
      %v483 = vpack.c.b16 %v453, %v452
      %v484 = vpack.c.b16 %v455, %v454
      %v485 = vpack.c.b16 %v457, %v456
      %v486 = vpack.c.b16 %v459, %v458
      %v487 = vpack.c.b16 %v461, %v460
      %v488 = vpack.c.b16 %v463, %v462
      %v489 = vpack.c.b16 %v465, %v464
      %v490 = vpack.c.b16 %v467, %v466
      %v491 = vpack.c.b16 %v469, %v468
      %v492 = vpack.c.b16 %v471, %v470
      %v493 = vpack.c.b16 %v473, %v472
      %v494 = vpack.c.b16 %v475, %v474
      %v495 = vpack.c.b16 %v477, %v476
      %v496 = vpack.c.b16 %v479, %v478
      %v497 = vpack.c.b16 %v481, %v480
      %v499 = vshrl.u32 0, 16
      %v501 = vrot.slane %v499, 7
      %v502 = vshll.u32 0, 16
      %v504 = vor.u32 %v501, %v502
      %v506 = vshrl.u32 %v482, 16
      %v508 = vrot.slane %v506, 7
      %v509 = vshll.u32 %v482, 16
      %v511 = vor.u32 %v508, %v509
      %v513 = vshrl.u32 %v483, 16
      %v515 = vrot.slane %v513, 7
      %v516 = vshll.u32 %v483, 16
      %v518 = vor.u32 %v515, %v516
      %v520 = vshrl.u32 %v484, 16
      %v522 = vrot.slane %v520, 7
      %v523 = vshll.u32 %v484, 16
      %v525 = vor.u32 %v522, %v523
      %v527 = vshrl.u32 %v485, 16
      %v529 = vrot.slane %v527, 7
      %v530 = vshll.u32 %v485, 16
      %v532 = vor.u32 %v529, %v530
      %v534 = vshrl.u32 %v486, 16
      %v536 = vrot.slane %v534, 7
      %v537 = vshll.u32 %v486, 16
      %v539 = vor.u32 %v536, %v537
      %v541 = vshrl.u32 %v487, 16
      %v543 = vrot.slane %v541, 7
      %v544 = vshll.u32 %v487, 16
      %v546 = vor.u32 %v543, %v544
      %v548 = vshrl.u32 %v488, 16
      %v550 = vrot.slane %v548, 7
      %v551 = vshll.u32 %v488, 16
      %v553 = vor.u32 %v550, %v551
      %v555 = vshrl.u32 %v489, 16
      %v557 = vrot.slane %v555, 7
      %v558 = vshll.u32 %v489, 16
      %v560 = vor.u32 %v557, %v558
      %v562 = vshrl.u32 %v490, 16
      %v564 = vrot.slane %v562, 7
      %v565 = vshll.u32 %v490, 16
      %v567 = vor.u32 %v564, %v565
      %v569 = vshrl.u32 %v491, 16
      %v571 = vrot.slane %v569, 7
      %v572 = vshll.u32 %v491, 16
      %v574 = vor.u32 %v571, %v572
      %v576 = vshrl.u32 %v492, 16
      %v578 = vrot.slane %v576, 7
      %v579 = vshll.u32 %v492, 16
      %v581 = vor.u32 %v578, %v579
      %v583 = vshrl.u32 %v493, 16
      %v585 = vrot.slane %v583, 7
      %v586 = vshll.u32 %v493, 16
      %v588 = vor.u32 %v585, %v586
      %v590 = vshrl.u32 %v494, 16
      %v592 = vrot.slane %v590, 7
      %v593 = vshll.u32 %v494, 16
      %v595 = vor.u32 %v592, %v593
      %v597 = vshrl.u32 %v495, 16
      %v599 = vrot.slane %v597, 7
      %v600 = vshll.u32 %v495, 16
      %v602 = vor.u32 %v599, %v600
      %v604 = vshrl.u32 %v496, 16
      %v606 = vrot.slane %v604, 7
      %v607 = vshll.u32 %v496, 16
      %v609 = vor.u32 %v606, %v607
      %v611 = vshrl.u32 %v497, 16
      %v613 = vrot.slane %v611, 7
      %v614 = vshll.u32 %v497, 16
      %v616 = vor.u32 %v613, %v614
      %vm651 = vcmask 1040384
      %vm652 = vsmask.f32 256
      %vm653 = vmand %vm651, %vm652
      %v654 = vsel %vm653, 0, %v504
      %v655 = vsel %vm653, 0, %v511
      %v656 = vsel %vm653, 0, %v518
      %v657 = vsel %vm653, 0, %v525
      %v658 = vsel %vm653, 0, %v532
      %v659 = vsel %vm653, 0, %v539
      %v660 = vsel %vm653, 0, %v546
      %v661 = vsel %vm653, 0, %v553
      %v662 = vsel %vm653, 0, %v560
      %v663 = vsel %vm653, 0, %v567
      %v664 = vsel %vm653, 0, %v574
      %v665 = vsel %vm653, 0, %v581
      %v666 = vsel %vm653, 0, %v588
      %v667 = vsel %vm653, 0, %v595
      %v668 = vsel %vm653, 0, %v602
      %v669 = vsel %vm653, 0, %v609
      %v670 = vsel %vm653, 0, %v616
      %v671 = vsel %vm653, %v501, 0
      %v672 = vsel %vm653, %v508, 0
      %v673 = vsel %vm653, %v515, 0
      %v674 = vsel %vm653, %v522, 0
      %v675 = vsel %vm653, %v529, 0
      %v676 = vsel %vm653, %v536, 0
      %v677 = vsel %vm653, %v543, 0
      %v678 = vsel %vm653, %v550, 0
      %v679 = vsel %vm653, %v557, 0
      %v680 = vsel %vm653, %v564, 0
      %v681 = vsel %vm653, %v571, 0
      %v682 = vsel %vm653, %v578, 0
      %v683 = vsel %vm653, %v585, 0
      %v684 = vsel %vm653, %v592, 0
      %v685 = vsel %vm653, %v599, 0
      %v686 = vsel %vm653, %v606, 0
      %v687 = vsel %vm653, %v613, 0
      %vm688 = vsmask.f32 7424
      %v690 = vshrl.u32 %v654, 16
      %v692 = vshll.u32 %v654, 16
      %v694 = vrot.slane %v692, 1
      %v695 = vor.u32 %v690, %v694
      %v697 = vshll.u32 %v671, 16
      %v699 = vrot.slane %v697, 1
      %v700 = vsel %vm688, %v695, %v699
      %v702 = vshrl.u32 %v655, 16
      %v704 = vshll.u32 %v655, 16
      %v706 = vrot.slane %v704, 1
      %v707 = vor.u32 %v702, %v706
      %v709 = vshll.u32 %v672, 16
      %v711 = vrot.slane %v709, 1
      %v712 = vsel %vm688, %v707, %v711
      %v714 = vshrl.u32 %v656, 16
      %v716 = vshll.u32 %v656, 16
      %v718 = vrot.slane %v716, 1
      %v719 = vor.u32 %v714, %v718
      %v721 = vshll.u32 %v673, 16
      %v723 = vrot.slane %v721, 1
      %v724 = vsel %vm688, %v719, %v723
      %v726 = vshrl.u32 %v657, 16
      %v728 = vshll.u32 %v657, 16
      %v730 = vrot.slane %v728, 1
      %v731 = vor.u32 %v726, %v730
      %v733 = vshll.u32 %v674, 16
      %v735 = vrot.slane %v733, 1
      %v736 = vsel %vm688, %v731, %v735
      %v738 = vshrl.u32 %v658, 16
      %v740 = vshll.u32 %v658, 16
      %v742 = vrot.slane %v740, 1
      %v743 = vor.u32 %v738, %v742
      %v745 = vshll.u32 %v675, 16
      %v747 = vrot.slane %v745, 1
      %v748 = vsel %vm688, %v743, %v747
      %v750 = vshrl.u32 %v659, 16
      %v752 = vshll.u32 %v659, 16
      %v754 = vrot.slane %v752, 1
      %v755 = vor.u32 %v750, %v754
      %v757 = vshll.u32 %v676, 16
      %v759 = vrot.slane %v757, 1
      %v760 = vsel %vm688, %v755, %v759
      %v762 = vshrl.u32 %v660, 16
      %v764 = vshll.u32 %v660, 16
      %v766 = vrot.slane %v764, 1
      %v767 = vor.u32 %v762, %v766
      %v769 = vshll.u32 %v677, 16
      %v771 = vrot.slane %v769, 1
      %v772 = vsel %vm688, %v767, %v771
      %v774 = vshrl.u32 %v661, 16
      %v776 = vshll.u32 %v661, 16
      %v778 = vrot.slane %v776, 1
      %v779 = vor.u32 %v774, %v778
      %v781 = vshll.u32 %v678, 16
      %v783 = vrot.slane %v781, 1
      %v784 = vsel %vm688, %v779, %v783
      %v786 = vshrl.u32 %v662, 16
      %v788 = vshll.u32 %v662, 16
      %v790 = vrot.slane %v788, 1
      %v791 = vor.u32 %v786, %v790
      %v793 = vshll.u32 %v679, 16
      %v795 = vrot.slane %v793, 1
      %v796 = vsel %vm688, %v791, %v795
      %v798 = vshrl.u32 %v663, 16
      %v800 = vshll.u32 %v663, 16
      %v802 = vrot.slane %v800, 1
      %v803 = vor.u32 %v798, %v802
      %v805 = vshll.u32 %v680, 16
      %v807 = vrot.slane %v805, 1
      %v808 = vsel %vm688, %v803, %v807
      %v810 = vshrl.u32 %v664, 16
      %v812 = vshll.u32 %v664, 16
      %v814 = vrot.slane %v812, 1
      %v815 = vor.u32 %v810, %v814
      %v817 = vshll.u32 %v681, 16
      %v819 = vrot.slane %v817, 1
      %v820 = vsel %vm688, %v815, %v819
      %v822 = vshrl.u32 %v665, 16
      %v824 = vshll.u32 %v665, 16
      %v826 = vrot.slane %v824, 1
      %v827 = vor.u32 %v822, %v826
      %v829 = vshll.u32 %v682, 16
      %v831 = vrot.slane %v829, 1
      %v832 = vsel %vm688, %v827, %v831
      %v834 = vshrl.u32 %v666, 16
      %v836 = vshll.u32 %v666, 16
      %v838 = vrot.slane %v836, 1
      %v839 = vor.u32 %v834, %v838
      %v841 = vshll.u32 %v683, 16
      %v843 = vrot.slane %v841, 1
      %v844 = vsel %vm688, %v839, %v843
      %v846 = vshrl.u32 %v667, 16
      %v848 = vshll.u32 %v667, 16
      %v850 = vrot.slane %v848, 1
      %v851 = vor.u32 %v846, %v850
      %v853 = vshll.u32 %v684, 16
      %v855 = vrot.slane %v853, 1
      %v856 = vsel %vm688, %v851, %v855
      %v858 = vshrl.u32 %v668, 16
      %v860 = vshll.u32 %v668, 16
      %v862 = vrot.slane %v860, 1
      %v863 = vor.u32 %v858, %v862
      %v865 = vshll.u32 %v685, 16
      %v867 = vrot.slane %v865, 1
      %v868 = vsel %vm688, %v863, %v867
      %v870 = vshrl.u32 %v669, 16
      %v872 = vshll.u32 %v669, 16
      %v874 = vrot.slane %v872, 1
      %v875 = vor.u32 %v870, %v874
      %v877 = vshll.u32 %v686, 16
      %v879 = vrot.slane %v877, 1
      %v880 = vsel %vm688, %v875, %v879
      %vm929 = vcmask 1046528
      %v930 = vrot.slane %v654, 1
      %v931 = vrot.slane %v671, 1
      %v932 = vsel %vm929, %v930, %v931
      %v933 = vrot.slane %v655, 1
      %v934 = vrot.slane %v672, 1
      %v935 = vsel %vm929, %v933, %v934
      %v936 = vrot.slane %v656, 1
      %v937 = vrot.slane %v673, 1
      %v938 = vsel %vm929, %v936, %v937
      %v939 = vrot.slane %v657, 1
      %v940 = vrot.slane %v674, 1
      %v941 = vsel %vm929, %v939, %v940
      %v942 = vrot.slane %v658, 1
      %v943 = vrot.slane %v675, 1
      %v944 = vsel %vm929, %v942, %v943
      %v945 = vrot.slane %v659, 1
      %v946 = vrot.slane %v676, 1
      %v947 = vsel %vm929, %v945, %v946
      %v948 = vrot.slane %v660, 1
      %v949 = vrot.slane %v677, 1
      %v950 = vsel %vm929, %v948, %v949
      %v951 = vrot.slane %v661, 1
      %v952 = vrot.slane %v678, 1
      %v953 = vsel %vm929, %v951, %v952
      %v954 = vrot.slane %v662, 1
      %v955 = vrot.slane %v679, 1
      %v956 = vsel %vm929, %v954, %v955
      %v957 = vrot.slane %v663, 1
      %v958 = vrot.slane %v680, 1
      %v959 = vsel %vm929, %v957, %v958
      %v960 = vrot.slane %v664, 1
      %v961 = vrot.slane %v681, 1
      %v962 = vsel %vm929, %v960, %v961
      %v963 = vrot.slane %v665, 1
      %v964 = vrot.slane %v682, 1
      %v965 = vsel %vm929, %v963, %v964
      %v966 = vrot.slane %v666, 1
      %v967 = vrot.slane %v683, 1
      %v968 = vsel %vm929, %v966, %v967
      %v969 = vrot.slane %v667, 1
      %v970 = vrot.slane %v684, 1
      %v971 = vsel %vm929, %v969, %v970
      %v972 = vrot.slane %v668, 1
      %v973 = vrot.slane %v685, 1
      %v974 = vsel %vm929, %v972, %v973
      %v975 = vrot.slane %v669, 1
      %v976 = vrot.slane %v686, 1
      %v977 = vsel %vm929, %v975, %v976
      %v995 = vshrl.u32 %v670, 16
      %v997 = vshll.u32 %v670, 16
      %v999 = vrot.slane %v997, 1
      %v1000 = vor.u32 %v995, %v999
      %v1002 = vshll.u32 %v687, 16
      %v1004 = vrot.slane %v1002, 1
      %v1005 = vsel %vm688, %v1000, %v1004
      %v1009 = vrot.slane %v670, 1
      %v1010 = vrot.slane %v687, 1
      %v1011 = vsel %vm929, %v1009, %v1010
      %v1013 = vld [vmem:[%s3] sm:$0xf]
      %v1014 = vld [vmem:[%s3 + $0x4] sm:$0xf]
      %v1015 = vld [vmem:[%s3 + $0x8] sm:$0xf]
      %v1016 = vld [vmem:[%s3 + $0xc] sm:$0xf]
      %v1017 = vld [vmem:[%s3 + $0x10] sm:$0xf]
      %v1018 = vld [vmem:[%s3 + $0x14] sm:$0xf]
      %v1019 = vld [vmem:[%s3 + $0x18] sm:$0xf]
      %v1020 = vld [vmem:[%s3 + $0x1c] sm:$0xf]
      %v1021 = vld [vmem:[%s3 + $0x20] sm:$0xf]
      %v1022 = vld [vmem:[%s3 + $0x24] sm:$0xf]
      %v1023 = vld [vmem:[%s3 + $0x28] sm:$0xf]
      %v1024 = vld [vmem:[%s3 + $0x2c] sm:$0xf]
      %v1025 = vld [vmem:[%s3 + $0x30] sm:$0xf]
      %v1026 = vld [vmem:[%s3 + $0x34] sm:$0xf]
      %v1027 = vld [vmem:[%s3 + $0x38] sm:$0xf]
      %v1028 = vld [vmem:[%s3 + $0x3c] sm:$0xf]
      %v1029 = vld [vmem:[%s3 + $0x40] sm:$0xf]
      %v1030 = vld [vmem:[%s3 + $0x44] sm:$0xf]
      %v1031 = vld [vmem:[%s3 + $0x48] sm:$0xf]
      %v1032 = vld [vmem:[%s3 + $0x4c] sm:$0xf]
      %v1033 = vld [vmem:[%s3 + $0x50] sm:$0xf]
      %v1034 = vld [vmem:[%s3 + $0x54] sm:$0xf]
      %v1035 = vld [vmem:[%s3 + $0x58] sm:$0xf]
      %v1036 = vld [vmem:[%s3 + $0x5c] sm:$0xf]
      %v1037 = vld [vmem:[%s3 + $0x60] sm:$0xf]
      %v1038 = vld [vmem:[%s3 + $0x64] sm:$0xf]
      %v1039 = vld [vmem:[%s3 + $0x68] sm:$0xf]
      %v1040 = vld [vmem:[%s3 + $0x6c] sm:$0xf]
      %v1041 = vld [vmem:[%s3 + $0x70] sm:$0xf]
      %v1042 = vld [vmem:[%s3 + $0x74] sm:$0xf]
      %v1043 = vld [vmem:[%s3 + $0x78] sm:$0xf]
      %v1044 = vld [vmem:[%s3 + $0x7c] sm:$0xf]
      %v1045 = vld [vmem:[%s3 + $0x80] sm:$0xf]
      %v1046 = vld [vmem:[%s3 + $0x84] sm:$0xf]
      %v1047 = vld [vmem:[%s3 + $0x88] sm:$0xf]
      %v1048 = vld [vmem:[%s3 + $0x8c] sm:$0xf]
      %v1049 = vld [vmem:[%s3 + $0x90] sm:$0xf]
      %v1050 = vld [vmem:[%s3 + $0x94] sm:$0xf]
      %v1051 = vld [vmem:[%s3 + $0x98] sm:$0xf]
      %v1052 = vld [vmem:[%s3 + $0x9c] sm:$0xf]
      %v1053 = vld [vmem:[%s3 + $0xa0] sm:$0xf]
      %v1054 = vld [vmem:[%s3 + $0xa4] sm:$0xf]
      %v1055 = vld [vmem:[%s3 + $0xa8] sm:$0xf]
      %v1056 = vld [vmem:[%s3 + $0xac] sm:$0xf]
      %v1057 = vld [vmem:[%s3 + $0xb0] sm:$0xf]
      %v1058 = vld [vmem:[%s3 + $0xb4] sm:$0xf]
      %v1059 = vld [vmem:[%s3 + $0xb8] sm:$0xf]
      %v1060 = vld [vmem:[%s3 + $0xbc] sm:$0xf]
      %v1061 = vld [vmem:[%s3 + $0xc0] sm:$0xf]
      %v1062 = vld [vmem:[%s3 + $0xc4] sm:$0xf]
      %v1063 = vld [vmem:[%s3 + $0xc8] sm:$0xf]
      %v1064 = vld [vmem:[%s3 + $0xcc] sm:$0xf]
      %v1065 = vld [vmem:[%s3 + $0xd0] sm:$0xf]
      %v1066 = vld [vmem:[%s3 + $0xd4] sm:$0xf]
      %v1067 = vld [vmem:[%s3 + $0xd8] sm:$0xf]
      %v1068 = vld [vmem:[%s3 + $0xdc] sm:$0xf]
      %v1069 = vld [vmem:[%s3 + $0xe0] sm:$0xf]
      %v1070 = vld [vmem:[%s3 + $0xe4] sm:$0xf]
      %v1071 = vld [vmem:[%s3 + $0xe8] sm:$0xf]
      %v1072 = vld [vmem:[%s3 + $0xec] sm:$0xf]
      %v1073 = vld [vmem:[%s3 + $0xf0] sm:$0xf]
      %v1074 = vld [vmem:[%s3 + $0xf4] sm:$0xf]
      %v1075 = vld [vmem:[%s3 + $0xf8] sm:$0xf]
      %v1076 = vld [vmem:[%s3 + $0xfc] sm:$0xf]
      %v1077 = vld [vmem:[%s3 + $0x100] sm:$0xf]
      %v1078 = vld [vmem:[%s3 + $0x104] sm:$0xf]
      %v1079 = vld [vmem:[%s3 + $0x108] sm:$0xf]
      %v1080 = vld [vmem:[%s3 + $0x10c] sm:$0xf]
      %v1081 = vld [vmem:[%s3 + $0x110] sm:$0xf]
      %v1082 = vld [vmem:[%s3 + $0x114] sm:$0xf]
      %v1083 = vld [vmem:[%s3 + $0x118] sm:$0xf]
      %v1084 = vld [vmem:[%s3 + $0x11c] sm:$0xf]
      %v1085 = vld [vmem:[%s3 + $0x120] sm:$0xf]
      %v1086 = vld [vmem:[%s3 + $0x124] sm:$0xf]
      %v1087 = vld [vmem:[%s3 + $0x128] sm:$0xf]
      %v1088 = vld [vmem:[%s3 + $0x12c] sm:$0xf]
      %v1089 = vld [vmem:[%s3 + $0x130] sm:$0xf]
      %v1090 = vld [vmem:[%s3 + $0x134] sm:$0xf]
      %v1091 = vld [vmem:[%s3 + $0x138] sm:$0xf]
      %v1092 = vld [vmem:[%s3 + $0x13c] sm:$0xf]
      %v1093 = vld [vmem:[%s3 + $0x140] sm:$0xf]
      %v1094 = vld [vmem:[%s3 + $0x144] sm:$0xf]
      %v1095 = vld [vmem:[%s3 + $0x148] sm:$0xf]
      %v1096 = vld [vmem:[%s3 + $0x14c] sm:$0xf]
      %v1097 = vld [vmem:[%s3 + $0x150] sm:$0xf]
      %v1098 = vld [vmem:[%s3 + $0x154] sm:$0xf]
      %v1099 = vld [vmem:[%s3 + $0x158] sm:$0xf]
      %v1100 = vld [vmem:[%s3 + $0x15c] sm:$0xf]
      %v1101 = vld [vmem:[%s3 + $0x160] sm:$0xf]
      %v1102 = vld [vmem:[%s3 + $0x164] sm:$0xf]
      %v1103 = vld [vmem:[%s3 + $0x168] sm:$0xf]
      %v1104 = vld [vmem:[%s3 + $0x16c] sm:$0xf]
      %v1105 = vld [vmem:[%s3 + $0x170] sm:$0xf]
      %v1106 = vld [vmem:[%s3 + $0x174] sm:$0xf]
      %v1107 = vld [vmem:[%s3 + $0x178] sm:$0xf]
      %v1108 = vld [vmem:[%s3 + $0x17c] sm:$0xf]
      %v1109 = vld [vmem:[%s3 + $0x180] sm:$0xf]
      %v1110 = vld [vmem:[%s3 + $0x184] sm:$0xf]
      %v1111 = vld [vmem:[%s3 + $0x188] sm:$0xf]
      %v1112 = vld [vmem:[%s3 + $0x18c] sm:$0xf]
      %v1113 = vld [vmem:[%s3 + $0x190] sm:$0xf]
      %v1114 = vld [vmem:[%s3 + $0x194] sm:$0xf]
      %v1115 = vld [vmem:[%s3 + $0x198] sm:$0xf]
      %v1116 = vld [vmem:[%s3 + $0x19c] sm:$0xf]
      %v1117 = vld [vmem:[%s3 + $0x1a0] sm:$0xf]
      %v1118 = vld [vmem:[%s3 + $0x1a4] sm:$0xf]
      %v1119 = vld [vmem:[%s3 + $0x1a8] sm:$0xf]
      %v1120 = vld [vmem:[%s3 + $0x1ac] sm:$0xf]
      %v1121 = vld [vmem:[%s3 + $0x1b0] sm:$0xf]
      %v1122 = vld [vmem:[%s3 + $0x1b4] sm:$0xf]
      %v1123 = vld [vmem:[%s3 + $0x1b8] sm:$0xf]
      %v1124 = vld [vmem:[%s3 + $0x1bc] sm:$0xf]
      %v1125 = vld [vmem:[%s3 + $0x1c0] sm:$0xf]
      %v1126 = vld [vmem:[%s3 + $0x1c4] sm:$0xf]
      %v1127 = vld [vmem:[%s3 + $0x1c8] sm:$0xf]
      %v1128 = vld [vmem:[%s3 + $0x1cc] sm:$0xf]
      %v1129 = vld [vmem:[%s3 + $0x1d0] sm:$0xf]
      %v1130 = vld [vmem:[%s3 + $0x1d4] sm:$0xf]
      %v1131 = vld [vmem:[%s3 + $0x1d8] sm:$0xf]
      %v1132 = vld [vmem:[%s3 + $0x1dc] sm:$0xf]
      %v1133 = vld [vmem:[%s3 + $0x1e0] sm:$0xf]
      %v1134 = vld [vmem:[%s3 + $0x1e4] sm:$0xf]
      %v1135 = vld [vmem:[%s3 + $0x1e8] sm:$0xf]
      %v1136 = vld [vmem:[%s3 + $0x1ec] sm:$0xf]
      %v1137 = vld [vmem:[%s3 + $0x1f0] sm:$0xf]
      %v1138 = vld [vmem:[%s3 + $0x1f4] sm:$0xf]
      %v1139 = vld [vmem:[%s3 + $0x1f8] sm:$0xf]
      %v1140 = vld [vmem:[%s3 + $0x1fc] sm:$0xf]
      %v1141 = vld [vmem:[%s3 + $0x200] sm:$0xf]
      %v1142 = vld [vmem:[%s3 + $0x204] sm:$0xf]
      %v1143 = vld [vmem:[%s3 + $0x208] sm:$0xf]
      %v1144 = vld [vmem:[%s3 + $0x20c] sm:$0xf]
      %v1145 = vld [vmem:[%s3 + $0x210] sm:$0xf]
      %v1146 = vld [vmem:[%s3 + $0x214] sm:$0xf]
      %v1147 = vld [vmem:[%s3 + $0x218] sm:$0xf]
      %v1148 = vld [vmem:[%s3 + $0x21c] sm:$0xf]
      %v1149 = vld [vmem:[%s3 + $0x220] sm:$0xf]
      %v1150 = vld [vmem:[%s3 + $0x224] sm:$0xf]
      %v1151 = vld [vmem:[%s3 + $0x228] sm:$0xf]
      %v1152 = vld [vmem:[%s3 + $0x22c] sm:$0xf]
      %v1153 = vld [vmem:[%s3 + $0x230] sm:$0xf]
      %v1154 = vld [vmem:[%s3 + $0x234] sm:$0xf]
      %v1155 = vld [vmem:[%s3 + $0x238] sm:$0xf]
      %v1156 = vld [vmem:[%s3 + $0x23c] sm:$0xf]
      %v1157 = vld [vmem:[%s4] sm:$0x1]
      %v1159 = vlaneseq
      %v1160 = vshrl.u32 %v1159, 7
      %v1161 = vsub.s32 0, %v1160
      %v1162 = vrot.slane %v1157, %v1161
      %v1308 = vunpack.c.l.b16 %v1013
      %v1309 = vunpack.c.l.b16 %v1014
      %v1310 = vunpack.c.l.b16 %v1015
      %v1311 = vunpack.c.l.b16 %v1016
      %v1312 = vunpack.c.l.b16 %v1017
      %v1313 = vunpack.c.l.b16 %v1018
      %v1314 = vunpack.c.l.b16 %v1019
      %v1315 = vunpack.c.l.b16 %v1020
      %v1316 = vunpack.c.l.b16 %v1021
      %v1317 = vunpack.c.l.b16 %v1022
      %v1318 = vunpack.c.l.b16 %v1023
      %v1319 = vunpack.c.l.b16 %v1024
      %v1320 = vunpack.c.l.b16 %v1025
      %v1321 = vunpack.c.l.b16 %v1026
      %v1322 = vunpack.c.l.b16 %v1027
      %v1323 = vunpack.c.l.b16 %v1028
      %v1324 = vunpack.c.l.b16 %v1029
      %v1325 = vunpack.c.l.b16 %v1030
      %v1326 = vunpack.c.l.b16 %v1031
      %v1327 = vunpack.c.l.b16 %v1032
      %v1328 = vunpack.c.l.b16 %v1033
      %v1329 = vunpack.c.l.b16 %v1034
      %v1330 = vunpack.c.l.b16 %v1035
      %v1331 = vunpack.c.l.b16 %v1036
      %v1332 = vunpack.c.l.b16 %v1037
      %v1333 = vunpack.c.l.b16 %v1038
      %v1334 = vunpack.c.l.b16 %v1039
      %v1335 = vunpack.c.l.b16 %v1040
      %v1336 = vunpack.c.l.b16 %v1041
      %v1337 = vunpack.c.l.b16 %v1042
      %v1338 = vunpack.c.l.b16 %v1043
      %v1339 = vunpack.c.l.b16 %v1044
      %v1340 = vunpack.c.l.b16 %v1045
      %v1341 = vunpack.c.l.b16 %v1046
      %v1342 = vunpack.c.l.b16 %v1047
      %v1343 = vunpack.c.l.b16 %v1048
      %v1344 = vunpack.c.l.b16 %v1049
      %v1345 = vunpack.c.l.b16 %v1050
      %v1346 = vunpack.c.l.b16 %v1051
      %v1347 = vunpack.c.l.b16 %v1052
      %v1348 = vunpack.c.l.b16 %v1053
      %v1349 = vunpack.c.l.b16 %v1054
      %v1350 = vunpack.c.l.b16 %v1055
      %v1351 = vunpack.c.l.b16 %v1056
      %v1352 = vunpack.c.l.b16 %v1057
      %v1353 = vunpack.c.l.b16 %v1058
      %v1354 = vunpack.c.l.b16 %v1059
      %v1355 = vunpack.c.l.b16 %v1060
      %v1356 = vunpack.c.l.b16 %v1061
      %v1357 = vunpack.c.l.b16 %v1062
      %v1358 = vunpack.c.l.b16 %v1063
      %v1359 = vunpack.c.l.b16 %v1064
      %v1360 = vunpack.c.l.b16 %v1065
      %v1361 = vunpack.c.l.b16 %v1066
      %v1362 = vunpack.c.l.b16 %v1067
      %v1363 = vunpack.c.l.b16 %v1068
      %v1364 = vunpack.c.l.b16 %v1069
      %v1365 = vunpack.c.l.b16 %v1070
      %v1366 = vunpack.c.l.b16 %v1071
      %v1367 = vunpack.c.l.b16 %v1072
      %v1368 = vunpack.c.l.b16 %v1073
      %v1369 = vunpack.c.l.b16 %v1074
      %v1370 = vunpack.c.l.b16 %v1075
      %v1371 = vunpack.c.l.b16 %v1076
      %v1372 = vunpack.c.l.b16 %v1077
      %v1373 = vunpack.c.l.b16 %v1078
      %v1374 = vunpack.c.l.b16 %v1079
      %v1375 = vunpack.c.l.b16 %v1080
      %v1376 = vunpack.c.l.b16 %v1081
      %v1377 = vunpack.c.l.b16 %v1082
      %v1378 = vunpack.c.l.b16 %v1083
      %v1379 = vunpack.c.l.b16 %v1084
      %v1380 = vunpack.c.l.b16 %v1085
      %v1381 = vunpack.c.l.b16 %v1086
      %v1382 = vunpack.c.l.b16 %v1087
      %v1383 = vunpack.c.l.b16 %v1088
      %v1384 = vunpack.c.l.b16 %v1089
      %v1385 = vunpack.c.l.b16 %v1090
      %v1386 = vunpack.c.l.b16 %v1091
      %v1387 = vunpack.c.l.b16 %v1092
      %v1388 = vunpack.c.l.b16 %v1093
      %v1389 = vunpack.c.l.b16 %v1094
      %v1390 = vunpack.c.l.b16 %v1095
      %v1391 = vunpack.c.l.b16 %v1096
      %v1392 = vunpack.c.l.b16 %v1097
      %v1393 = vunpack.c.l.b16 %v1098
      %v1394 = vunpack.c.l.b16 %v1099
      %v1395 = vunpack.c.l.b16 %v1100
      %v1396 = vunpack.c.l.b16 %v1101
      %v1397 = vunpack.c.l.b16 %v1102
      %v1398 = vunpack.c.l.b16 %v1103
      %v1399 = vunpack.c.l.b16 %v1104
      %v1400 = vunpack.c.l.b16 %v1105
      %v1401 = vunpack.c.l.b16 %v1106
      %v1402 = vunpack.c.l.b16 %v1107
      %v1403 = vunpack.c.l.b16 %v1108
      %v1404 = vunpack.c.l.b16 %v1109
      %v1405 = vunpack.c.l.b16 %v1110
      %v1406 = vunpack.c.l.b16 %v1111
      %v1407 = vunpack.c.l.b16 %v1112
      %v1408 = vunpack.c.l.b16 %v1113
      %v1409 = vunpack.c.l.b16 %v1114
      %v1410 = vunpack.c.l.b16 %v1115
      %v1411 = vunpack.c.l.b16 %v1116
      %v1412 = vunpack.c.l.b16 %v1117
      %v1413 = vunpack.c.l.b16 %v1118
      %v1414 = vunpack.c.l.b16 %v1119
      %v1415 = vunpack.c.l.b16 %v1120
      %v1416 = vunpack.c.l.b16 %v1121
      %v1417 = vunpack.c.l.b16 %v1122
      %v1418 = vunpack.c.l.b16 %v1123
      %v1419 = vunpack.c.l.b16 %v1124
      %v1420 = vunpack.c.l.b16 %v1125
      %v1421 = vunpack.c.l.b16 %v1126
      %v1422 = vunpack.c.l.b16 %v1127
      %v1423 = vunpack.c.l.b16 %v1128
      %v1424 = vunpack.c.l.b16 %v1129
      %v1425 = vunpack.c.l.b16 %v1130
      %v1426 = vunpack.c.l.b16 %v1131
      %v1427 = vunpack.c.l.b16 %v1132
      %v1428 = vunpack.c.l.b16 %v1133
      %v1429 = vunpack.c.l.b16 %v1134
      %v1430 = vunpack.c.l.b16 %v1135
      %v1431 = vunpack.c.l.b16 %v1136
      %v1432 = vunpack.c.l.b16 %v1137
      %v1433 = vunpack.c.l.b16 %v1138
      %v1434 = vunpack.c.l.b16 %v1139
      %v1435 = vunpack.c.l.b16 %v1140
      %v1436 = vunpack.c.l.b16 %v1141
      %v1437 = vunpack.c.l.b16 %v1142
      %v1438 = vunpack.c.l.b16 %v1143
      %v1439 = vunpack.c.l.b16 %v1144
      %v1440 = vunpack.c.l.b16 %v1145
      %v1441 = vunpack.c.l.b16 %v1146
      %v1442 = vunpack.c.l.b16 %v1147
      %v1443 = vunpack.c.l.b16 %v1148
      %v1444 = vunpack.c.l.b16 %v1149
      %v1445 = vunpack.c.l.b16 %v1150
      %v1446 = vunpack.c.l.b16 %v1151
      %v1447 = vunpack.c.l.b16 %v1152
      %v1448 = vunpack.c.l.b16 %v1153
      %v1449 = vunpack.c.l.b16 %v1154
      %v1450 = vunpack.c.l.b16 %v1155
      %v1451 = vunpack.c.l.b16 %v1156
      %v1452 = vpack.c.b16 %v1309, %v1308
      %v1453 = vpack.c.b16 %v1311, %v1310
      %v1454 = vpack.c.b16 %v1313, %v1312
      %v1455 = vpack.c.b16 %v1315, %v1314
      %v1456 = vpack.c.b16 %v1317, %v1316
      %v1457 = vpack.c.b16 %v1319, %v1318
      %v1458 = vpack.c.b16 %v1321, %v1320
      %v1459 = vpack.c.b16 %v1323, %v1322
      %v1460 = vpack.c.b16 %v1325, %v1324
      %v1461 = vpack.c.b16 %v1327, %v1326
      %v1462 = vpack.c.b16 %v1329, %v1328
      %v1463 = vpack.c.b16 %v1331, %v1330
      %v1464 = vpack.c.b16 %v1333, %v1332
      %v1465 = vpack.c.b16 %v1335, %v1334
      %v1466 = vpack.c.b16 %v1337, %v1336
      %v1467 = vpack.c.b16 %v1339, %v1338
      %v1468 = vpack.c.b16 %v1341, %v1340
      %v1469 = vpack.c.b16 %v1343, %v1342
      %v1470 = vpack.c.b16 %v1345, %v1344
      %v1471 = vpack.c.b16 %v1347, %v1346
      %v1472 = vpack.c.b16 %v1349, %v1348
      %v1473 = vpack.c.b16 %v1351, %v1350
      %v1474 = vpack.c.b16 %v1353, %v1352
      %v1475 = vpack.c.b16 %v1355, %v1354
      %v1476 = vpack.c.b16 %v1357, %v1356
      %v1477 = vpack.c.b16 %v1359, %v1358
      %v1478 = vpack.c.b16 %v1361, %v1360
      %v1479 = vpack.c.b16 %v1363, %v1362
      %v1480 = vpack.c.b16 %v1365, %v1364
      %v1481 = vpack.c.b16 %v1367, %v1366
      %v1482 = vpack.c.b16 %v1369, %v1368
      %v1483 = vpack.c.b16 %v1371, %v1370
      %v1484 = vpack.c.b16 %v1373, %v1372
      %v1485 = vpack.c.b16 %v1375, %v1374
      %v1486 = vpack.c.b16 %v1377, %v1376
      %v1487 = vpack.c.b16 %v1379, %v1378
      %v1488 = vpack.c.b16 %v1381, %v1380
      %v1489 = vpack.c.b16 %v1383, %v1382
      %v1490 = vpack.c.b16 %v1385, %v1384
      %v1491 = vpack.c.b16 %v1387, %v1386
      %v1492 = vpack.c.b16 %v1389, %v1388
      %v1493 = vpack.c.b16 %v1391, %v1390
      %v1494 = vpack.c.b16 %v1393, %v1392
      %v1495 = vpack.c.b16 %v1395, %v1394
      %v1496 = vpack.c.b16 %v1397, %v1396
      %v1497 = vpack.c.b16 %v1399, %v1398
      %v1498 = vpack.c.b16 %v1401, %v1400
      %v1499 = vpack.c.b16 %v1403, %v1402
      %v1500 = vpack.c.b16 %v1405, %v1404
      %v1501 = vpack.c.b16 %v1407, %v1406
      %v1502 = vpack.c.b16 %v1409, %v1408
      %v1503 = vpack.c.b16 %v1411, %v1410
      %v1504 = vpack.c.b16 %v1413, %v1412
      %v1505 = vpack.c.b16 %v1415, %v1414
      %v1506 = vpack.c.b16 %v1417, %v1416
      %v1507 = vpack.c.b16 %v1419, %v1418
      %v1508 = vpack.c.b16 %v1421, %v1420
      %v1509 = vpack.c.b16 %v1423, %v1422
      %v1510 = vpack.c.b16 %v1425, %v1424
      %v1511 = vpack.c.b16 %v1427, %v1426
      %v1512 = vpack.c.b16 %v1429, %v1428
      %v1513 = vpack.c.b16 %v1431, %v1430
      %v1514 = vpack.c.b16 %v1433, %v1432
      %v1515 = vpack.c.b16 %v1435, %v1434
      %v1516 = vpack.c.b16 %v1437, %v1436
      %v1517 = vpack.c.b16 %v1439, %v1438
      %v1518 = vpack.c.b16 %v1441, %v1440
      %v1519 = vpack.c.b16 %v1443, %v1442
      %v1520 = vpack.c.b16 %v1445, %v1444
      %v1521 = vpack.c.b16 %v1447, %v1446
      %v1522 = vpack.c.b16 %v1449, %v1448
      %v1523 = vpack.c.b16 %v1451, %v1450
      %1596 = vmatprep.subr.bf16.mxu0 0
      %1597 = vmatpush1.bf16.msra.mxu0 %v1452
      %1598 = vmatprep.subr.bf16.mxu0 0
      %1599 = vmatpush1.bf16.msra.mxu0 %v1453
      %1600 = vmatprep.subr.bf16.mxu0 0
      %1601 = vmatpush1.bf16.msra.mxu0 %v1454
      %1602 = vmatprep.subr.bf16.mxu0 0
      %1603 = vmatpush1.bf16.msra.mxu0 %v1455
      %1604 = vmatprep.subr.bf16.mxu0 0
      %1605 = vmatpush1.bf16.msra.mxu0 %v1456
      %1606 = vmatprep.subr.bf16.mxu0 0
      %1607 = vmatpush1.bf16.msra.mxu0 %v1457
      %1608 = vmatprep.subr.bf16.mxu0 0
      %1609 = vmatpush1.bf16.msra.mxu0 %v1458
      %1610 = vmatprep.subr.bf16.mxu0 0
      %1611 = vmatpush1.bf16.msra.mxu0 %v1459
      %1612 = vmatprep.subr.bf16.mxu0 0
      %1613 = vmatpush1.bf16.msra.mxu0 %v1460
      %1614 = vmatprep.subr.bf16.mxu0 0
      %1615 = vmatpush1.bf16.msra.mxu0 %v1461
      %1616 = vmatprep.subr.bf16.mxu0 0
      %1617 = vmatpush1.bf16.msra.mxu0 %v1462
      %1618 = vmatprep.subr.bf16.mxu0 0
      %1619 = vmatpush1.bf16.msra.mxu0 %v1463
      %1620 = vmatprep.subr.bf16.mxu0 0
      %1621 = vmatpush1.bf16.msra.mxu0 %v1464
      %1622 = vmatprep.subr.bf16.mxu0 0
      %1623 = vmatpush1.bf16.msra.mxu0 %v1465
      %1624 = vmatprep.subr.bf16.mxu0 0
      %1625 = vmatpush1.bf16.msra.mxu0 %v1466
      %1626 = vmatprep.subr.bf16.mxu0 0
      %1627 = vmatpush1.bf16.msra.mxu0 %v1467
      %1628 = vmatprep.mubr.bf16.mxu0 %v700
      %1629 = vmatmul.mubr.bf16.gmra.mrb[0].mxu0 %v654
      %v1630 = vpop.f32.mrb[0].mxu0
      %v1631 = vadd.f32 %v1162, %v1630
      %v1632 = vpop.f32.mrb[0].mxu0
      %v1633 = vpop.f32.mrb[0].mxu0
      %v1634 = vadd.f32 %v1162, %v1633
      %v1635 = vpop.f32.mrb[0].mxu0
      %1636 = vmatprep.mubr.bf16.mxu0 %v712
      %1637 = vmatmul.mubr.bf16.gmra.mrb[0].mxu0 %v655
      %v1638 = vpop.f32.mrb[0].mxu0
      %v1639 = vadd.f32 %v1162, %v1638
      %v1640 = vpop.f32.mrb[0].mxu0
      %v1641 = vpop.f32.mrb[0].mxu0
      %v1642 = vadd.f32 %v1162, %v1641
      %v1643 = vpop.f32.mrb[0].mxu0
      %1644 = vmatprep.mubr.bf16.mxu0 %v724
      %1645 = vmatmul.mubr.bf16.gmra.mrb[0].mxu0 %v656
      %v1646 = vpop.f32.mrb[0].mxu0
      %v1647 = vadd.f32 %v1162, %v1646
      %v1648 = vpop.f32.mrb[0].mxu0
      %v1649 = vpop.f32.mrb[0].mxu0
      %v1650 = vadd.f32 %v1162, %v1649
      %v1651 = vpop.f32.mrb[0].mxu0
      %1652 = vmatprep.mubr.bf16.mxu0 %v736
      %1653 = vmatmul.mubr.bf16.gmra.mrb[0].mxu0 %v657
      %v1654 = vpop.f32.mrb[0].mxu0
      %v1655 = vadd.f32 %v1162, %v1654
      %v1656 = vpop.f32.mrb[0].mxu0
      %v1657 = vpop.f32.mrb[0].mxu0
      %v1658 = vadd.f32 %v1162, %v1657
      %v1659 = vpop.f32.mrb[0].mxu0
      %1660 = vmatprep.mubr.bf16.mxu0 %v748
      %1661 = vmatmul.mubr.bf16.gmra.mrb[0].mxu0 %v658
      %v1662 = vpop.f32.mrb[0].mxu0
      %v1663 = vadd.f32 %v1162, %v1662
      %v1664 = vpop.f32.mrb[0].mxu0
      %v1665 = vpop.f32.mrb[0].mxu0
      %v1666 = vadd.f32 %v1162, %v1665
      %v1667 = vpop.f32.mrb[0].mxu0
      %1668 = vmatprep.mubr.bf16.mxu0 %v760
      %1669 = vmatmul.mubr.bf16.gmra.mrb[0].mxu0 %v659
      %v1670 = vpop.f32.mrb[0].mxu0
      %v1671 = vadd.f32 %v1162, %v1670
      %v1672 = vpop.f32.mrb[0].mxu0
      %v1673 = vpop.f32.mrb[0].mxu0
      %v1674 = vadd.f32 %v1162, %v1673
      %v1675 = vpop.f32.mrb[0].mxu0
      %1676 = vmatprep.mubr.bf16.mxu0 %v772
      %1677 = vmatmul.mubr.bf16.gmra.mrb[0].mxu0 %v660
      %v1678 = vpop.f32.mrb[0].mxu0
      %v1679 = vadd.f32 %v1162, %v1678
      %v1680 = vpop.f32.mrb[0].mxu0
      %v1681 = vpop.f32.mrb[0].mxu0
      %v1682 = vadd.f32 %v1162, %v1681
      %v1683 = vpop.f32.mrb[0].mxu0
      %1684 = vmatprep.mubr.bf16.mxu0 %v784
      %1685 = vmatmul.mubr.bf16.gmra.mrb[0].mxu0 %v661
      %v1686 = vpop.f32.mrb[0].mxu0
      %v1687 = vadd.f32 %v1162, %v1686
      %v1688 = vpop.f32.mrb[0].mxu0
      %v1689 = vpop.f32.mrb[0].mxu0
      %v1690 = vadd.f32 %v1162, %v1689
      %v1691 = vpop.f32.mrb[0].mxu0
      %1692 = vmatprep.mubr.bf16.mxu0 %v796
      %1693 = vmatmul.mubr.bf16.gmra.mrb[0].mxu0 %v662
      %v1694 = vpop.f32.mrb[0].mxu0
      %v1695 = vadd.f32 %v1162, %v1694
      %v1696 = vpop.f32.mrb[0].mxu0
      %v1697 = vpop.f32.mrb[0].mxu0
      %v1698 = vadd.f32 %v1162, %v1697
      %v1699 = vpop.f32.mrb[0].mxu0
      %1700 = vmatprep.mubr.bf16.mxu0 %v808
      %1701 = vmatmul.mubr.bf16.gmra.mrb[0].mxu0 %v663
      %v1702 = vpop.f32.mrb[0].mxu0
      %v1703 = vadd.f32 %v1162, %v1702
      %v1704 = vpop.f32.mrb[0].mxu0
      %v1705 = vpop.f32.mrb[0].mxu0
      %v1706 = vadd.f32 %v1162, %v1705
      %v1707 = vpop.f32.mrb[0].mxu0
      %1708 = vmatprep.mubr.bf16.mxu0 %v820
      %1709 = vmatmul.mubr.bf16.gmra.mrb[0].mxu0 %v664
      %v1710 = vpop.f32.mrb[0].mxu0
      %v1711 = vadd.f32 %v1162, %v1710
      %v1712 = vpop.f32.mrb[0].mxu0
      %v1713 = vpop.f32.mrb[0].mxu0
      %v1714 = vadd.f32 %v1162, %v1713
      %v1715 = vpop.f32.mrb[0].mxu0
      %1716 = vmatprep.mubr.bf16.mxu0 %v832
      %1717 = vmatmul.mubr.bf16.gmra.mrb[0].mxu0 %v665
      %v1718 = vpop.f32.mrb[0].mxu0
      %v1719 = vadd.f32 %v1162, %v1718
      %v1720 = vpop.f32.mrb[0].mxu0
      %v1721 = vpop.f32.mrb[0].mxu0
      %v1722 = vadd.f32 %v1162, %v1721
      %v1723 = vpop.f32.mrb[0].mxu0
      %1724 = vmatprep.mubr.bf16.mxu0 %v844
      %1725 = vmatmul.mubr.bf16.gmra.mrb[0].mxu0 %v666
      %v1726 = vpop.f32.mrb[0].mxu0
      %v1727 = vadd.f32 %v1162, %v1726
      %v1728 = vpop.f32.mrb[0].mxu0
      %v1729 = vpop.f32.mrb[0].mxu0
      %v1730 = vadd.f32 %v1162, %v1729
      %v1731 = vpop.f32.mrb[0].mxu0
      %1732 = vmatprep.mubr.bf16.mxu0 %v856
      %1733 = vmatmul.mubr.bf16.gmra.mrb[0].mxu0 %v667
      %v1734 = vpop.f32.mrb[0].mxu0
      %v1735 = vadd.f32 %v1162, %v1734
      %v1736 = vpop.f32.mrb[0].mxu0
      %v1737 = vpop.f32.mrb[0].mxu0
      %v1738 = vadd.f32 %v1162, %v1737
      %v1739 = vpop.f32.mrb[0].mxu0
      %1740 = vmatprep.mubr.bf16.mxu0 %v868
      %1741 = vmatmul.mubr.bf16.gmra.mrb[0].mxu0 %v668
      %v1742 = vpop.f32.mrb[0].mxu0
      %v1743 = vadd.f32 %v1162, %v1742
      %v1744 = vpop.f32.mrb[0].mxu0
      %v1745 = vpop.f32.mrb[0].mxu0
      %v1746 = vadd.f32 %v1162, %v1745
      %v1747 = vpop.f32.mrb[0].mxu0
      %1748 = vmatprep.mubr.bf16.mxu0 %v880
      %1749 = vmatmul.mubr.bf16.gmra.mrb[0].mxu0 %v669
      %v1750 = vpop.f32.mrb[0].mxu0
      %v1751 = vadd.f32 %v1162, %v1750
      %v1752 = vpop.f32.mrb[0].mxu0
      %v1753 = vpop.f32.mrb[0].mxu0
      %v1754 = vadd.f32 %v1162, %v1753
      %v1755 = vpop.f32.mrb[0].mxu0
      %1756 = vdwg.mxu0
      %1757 = vmatprep.subr.bf16.mxu0 0
      %1758 = vmatpush1.bf16.msra.mxu0 %v1468
      %1759 = vmatprep.subr.bf16.mxu0 0
      %1760 = vmatpush1.bf16.msra.mxu0 %v1469
      %1761 = vmatprep.subr.bf16.mxu0 0
      %1762 = vmatpush1.bf16.msra.mxu0 %v1470
      %1763 = vmatprep.subr.bf16.mxu0 0
      %1764 = vmatpush1.bf16.msra.mxu0 %v1471
      %1765 = vmatprep.subr.bf16.mxu0 0
      %1766 = vmatpush1.bf16.msra.mxu0 %v1472
      %1767 = vmatprep.subr.bf16.mxu0 0
      %1768 = vmatpush1.bf16.msra.mxu0 %v1473
      %1769 = vmatprep.subr.bf16.mxu0 0
      %1770 = vmatpush1.bf16.msra.mxu0 %v1474
      %1771 = vmatprep.subr.bf16.mxu0 0
      %1772 = vmatpush1.bf16.msra.mxu0 %v1475
      %1773 = vmatprep.subr.bf16.mxu0 0
      %1774 = vmatpush1.bf16.msra.mxu0 %v1476
      %1775 = vmatprep.subr.bf16.mxu0 0
      %1776 = vmatpush1.bf16.msra.mxu0 %v1477
      %1777 = vmatprep.subr.bf16.mxu0 0
      %1778 = vmatpush1.bf16.msra.mxu0 %v1478
      %1779 = vmatprep.subr.bf16.mxu0 0
      %1780 = vmatpush1.bf16.msra.mxu0 %v1479
      %1781 = vmatprep.subr.bf16.mxu0 0
      %1782 = vmatpush1.bf16.msra.mxu0 %v1480
      %1783 = vmatprep.subr.bf16.mxu0 0
      %1784 = vmatpush1.bf16.msra.mxu0 %v1481
      %1785 = vmatprep.subr.bf16.mxu0 0
      %1786 = vmatpush1.bf16.msra.mxu0 %v1482
      %1787 = vmatprep.subr.bf16.mxu0 0
      %1788 = vmatpush1.bf16.msra.mxu0 %v1483
      %1789 = vmatprep.mubr.bf16.mxu0 %v655
      %1790 = vmatmul.mubr.bf16.gmra.mrb[0].mxu0 %v932
      %v1791 = vpop.f32.mrb[0].mxu0
      %v1792 = vadd.f32 %v1631, %v1791
      %v1793 = vpop.f32.mrb[0].mxu0
      %v1794 = vpop.f32.mrb[0].mxu0
      %v1795 = vadd.f32 %v1634, %v1794
      %v1796 = vpop.f32.mrb[0].mxu0
      %1797 = vmatprep.mubr.bf16.mxu0 %v656
      %1798 = vmatmul.mubr.bf16.gmra.mrb[0].mxu0 %v935
      %v1799 = vpop.f32.mrb[0].mxu0
      %v1800 = vadd.f32 %v1639, %v1799
      %v1801 = vpop.f32.mrb[0].mxu0
      %v1802 = vpop.f32.mrb[0].mxu0
      %v1803 = vadd.f32 %v1642, %v1802
      %v1804 = vpop.f32.mrb[0].mxu0
      %1805 = vmatprep.mubr.bf16.mxu0 %v657
      %1806 = vmatmul.mubr.bf16.gmra.mrb[0].mxu0 %v938
      %v1807 = vpop.f32.mrb[0].mxu0
      %v1808 = vadd.f32 %v1647, %v1807
      %v1809 = vpop.f32.mrb[0].mxu0
      %v1810 = vpop.f32.mrb[0].mxu0
      %v1811 = vadd.f32 %v1650, %v1810
      %v1812 = vpop.f32.mrb[0].mxu0
      %1813 = vmatprep.mubr.bf16.mxu0 %v658
      %1814 = vmatmul.mubr.bf16.gmra.mrb[0].mxu0 %v941
      %v1815 = vpop.f32.mrb[0].mxu0
      %v1816 = vadd.f32 %v1655, %v1815
      %v1817 = vpop.f32.mrb[0].mxu0
      %v1818 = vpop.f32.mrb[0].mxu0
      %v1819 = vadd.f32 %v1658, %v1818
      %v1820 = vpop.f32.mrb[0].mxu0
      %1821 = vmatprep.mubr.bf16.mxu0 %v659
      %1822 = vmatmul.mubr.bf16.gmra.mrb[0].mxu0 %v944
      %v1823 = vpop.f32.mrb[0].mxu0
      %v1824 = vadd.f32 %v1663, %v1823
      %v1825 = vpop.f32.mrb[0].mxu0
      %v1826 = vpop.f32.mrb[0].mxu0
      %v1827 = vadd.f32 %v1666, %v1826
      %v1828 = vpop.f32.mrb[0].mxu0
      %1829 = vmatprep.mubr.bf16.mxu0 %v660
      %1830 = vmatmul.mubr.bf16.gmra.mrb[0].mxu0 %v947
      %v1831 = vpop.f32.mrb[0].mxu0
      %v1832 = vadd.f32 %v1671, %v1831
      %v1833 = vpop.f32.mrb[0].mxu0
      %v1834 = vpop.f32.mrb[0].mxu0
      %v1835 = vadd.f32 %v1674, %v1834
      %v1836 = vpop.f32.mrb[0].mxu0
      %1837 = vmatprep.mubr.bf16.mxu0 %v661
      %1838 = vmatmul.mubr.bf16.gmra.mrb[0].mxu0 %v950
      %v1839 = vpop.f32.mrb[0].mxu0
      %v1840 = vadd.f32 %v1679, %v1839
      %v1841 = vpop.f32.mrb[0].mxu0
      %v1842 = vpop.f32.mrb[0].mxu0
      %v1843 = vadd.f32 %v1682, %v1842
      %v1844 = vpop.f32.mrb[0].mxu0
      %1845 = vmatprep.mubr.bf16.mxu0 %v662
      %1846 = vmatmul.mubr.bf16.gmra.mrb[0].mxu0 %v953
      %v1847 = vpop.f32.mrb[0].mxu0
      %v1848 = vadd.f32 %v1687, %v1847
      %v1849 = vpop.f32.mrb[0].mxu0
      %v1850 = vpop.f32.mrb[0].mxu0
      %v1851 = vadd.f32 %v1690, %v1850
      %v1852 = vpop.f32.mrb[0].mxu0
      %1853 = vmatprep.mubr.bf16.mxu0 %v663
      %1854 = vmatmul.mubr.bf16.gmra.mrb[0].mxu0 %v956
      %v1855 = vpop.f32.mrb[0].mxu0
      %v1856 = vadd.f32 %v1695, %v1855
      %v1857 = vpop.f32.mrb[0].mxu0
      %v1858 = vpop.f32.mrb[0].mxu0
      %v1859 = vadd.f32 %v1698, %v1858
      %v1860 = vpop.f32.mrb[0].mxu0
      %1861 = vmatprep.mubr.bf16.mxu0 %v664
      %1862 = vmatmul.mubr.bf16.gmra.mrb[0].mxu0 %v959
      %v1863 = vpop.f32.mrb[0].mxu0
      %v1864 = vadd.f32 %v1703, %v1863
      %v1865 = vpop.f32.mrb[0].mxu0
      %v1866 = vpop.f32.mrb[0].mxu0
      %v1867 = vadd.f32 %v1706, %v1866
      %v1868 = vpop.f32.mrb[0].mxu0
      %1869 = vmatprep.mubr.bf16.mxu0 %v665
      %1870 = vmatmul.mubr.bf16.gmra.mrb[0].mxu0 %v962
      %v1871 = vpop.f32.mrb[0].mxu0
      %v1872 = vadd.f32 %v1711, %v1871
      %v1873 = vpop.f32.mrb[0].mxu0
      %v1874 = vpop.f32.mrb[0].mxu0
      %v1875 = vadd.f32 %v1714, %v1874
      %v1876 = vpop.f32.mrb[0].mxu0
      %1877 = vmatprep.mubr.bf16.mxu0 %v666
      %1878 = vmatmul.mubr.bf16.gmra.mrb[0].mxu0 %v965
      %v1879 = vpop.f32.mrb[0].mxu0
      %v1880 = vadd.f32 %v1719, %v1879
      %v1881 = vpop.f32.mrb[0].mxu0
      %v1882 = vpop.f32.mrb[0].mxu0
      %v1883 = vadd.f32 %v1722, %v1882
      %v1884 = vpop.f32.mrb[0].mxu0
      %1885 = vmatprep.mubr.bf16.mxu0 %v667
      %1886 = vmatmul.mubr.bf16.gmra.mrb[0].mxu0 %v968
      %v1887 = vpop.f32.mrb[0].mxu0
      %v1888 = vadd.f32 %v1727, %v1887
      %v1889 = vpop.f32.mrb[0].mxu0
      %v1890 = vpop.f32.mrb[0].mxu0
      %v1891 = vadd.f32 %v1730, %v1890
      %v1892 = vpop.f32.mrb[0].mxu0
      %1893 = vmatprep.mubr.bf16.mxu0 %v668
      %1894 = vmatmul.mubr.bf16.gmra.mrb[0].mxu0 %v971
      %v1895 = vpop.f32.mrb[0].mxu0
      %v1896 = vadd.f32 %v1735, %v1895
      %v1897 = vpop.f32.mrb[0].mxu0
      %v1898 = vpop.f32.mrb[0].mxu0
      %v1899 = vadd.f32 %v1738, %v1898
      %v1900 = vpop.f32.mrb[0].mxu0
      %1901 = vmatprep.mubr.bf16.mxu0 %v669
      %1902 = vmatmul.mubr.bf16.gmra.mrb[0].mxu0 %v974
      %v1903 = vpop.f32.mrb[0].mxu0
      %v1904 = vadd.f32 %v1743, %v1903
      %v1905 = vpop.f32.mrb[0].mxu0
      %v1906 = vpop.f32.mrb[0].mxu0
      %v1907 = vadd.f32 %v1746, %v1906
      %v1908 = vpop.f32.mrb[0].mxu0
      %1909 = vmatprep.mubr.bf16.mxu0 %v670
      %1910 = vmatmul.mubr.bf16.gmra.mrb[0].mxu0 %v977
      %v1911 = vpop.f32.mrb[0].mxu0
      %v1912 = vadd.f32 %v1751, %v1911
      %v1913 = vpop.f32.mrb[0].mxu0
      %v1914 = vpop.f32.mrb[0].mxu0
      %v1915 = vadd.f32 %v1754, %v1914
      %v1916 = vpop.f32.mrb[0].mxu0
      %1917 = vdwg.mxu0
      %1918 = vmatprep.subr.bf16.mxu0 0
      %1919 = vmatpush1.bf16.msra.mxu0 %v1484
      %1920 = vmatprep.subr.bf16.mxu0 0
      %1921 = vmatpush1.bf16.msra.mxu0 %v1485
      %1922 = vmatprep.subr.bf16.mxu0 0
      %1923 = vmatpush1.bf16.msra.mxu0 %v1486
      %1924 = vmatprep.subr.bf16.mxu0 0
      %1925 = vmatpush1.bf16.msra.mxu0 %v1487
      %1926 = vmatprep.subr.bf16.mxu0 0
      %1927 = vmatpush1.bf16.msra.mxu0 %v1488
      %1928 = vmatprep.subr.bf16.mxu0 0
      %1929 = vmatpush1.bf16.msra.mxu0 %v1489
      %1930 = vmatprep.subr.bf16.mxu0 0
      %1931 = vmatpush1.bf16.msra.mxu0 %v1490
      %1932 = vmatprep.subr.bf16.mxu0 0
      %1933 = vmatpush1.bf16.msra.mxu0 %v1491
      %1934 = vmatprep.subr.bf16.mxu0 0
      %1935 = vmatpush1.bf16.msra.mxu0 %v1492
      %1936 = vmatprep.subr.bf16.mxu0 0
      %1937 = vmatpush1.bf16.msra.mxu0 %v1493
      %1938 = vmatprep.subr.bf16.mxu0 0
      %1939 = vmatpush1.bf16.msra.mxu0 %v1494
      %1940 = vmatprep.subr.bf16.mxu0 0
      %1941 = vmatpush1.bf16.msra.mxu0 %v1495
      %1942 = vmatprep.subr.bf16.mxu0 0
      %1943 = vmatpush1.bf16.msra.mxu0 %v1496
      %1944 = vmatprep.subr.bf16.mxu0 0
      %1945 = vmatpush1.bf16.msra.mxu0 %v1497
      %1946 = vmatprep.subr.bf16.mxu0 0
      %1947 = vmatpush1.bf16.msra.mxu0 %v1498
      %1948 = vmatprep.subr.bf16.mxu0 0
      %1949 = vmatpush1.bf16.msra.mxu0 %v1499
      %1950 = vmatprep.mubr.bf16.mxu0 %v935
      %1951 = vmatmul.mubr.bf16.gmra.mrb[0].mxu0 %v712
      %v1952 = vpop.f32.mrb[0].mxu0
      %v1953 = vadd.f32 %v1792, %v1952
      %v1954 = vpop.f32.mrb[0].mxu0
      %v1955 = vpop.f32.mrb[0].mxu0
      %v1956 = vadd.f32 %v1795, %v1955
      %v1957 = vpop.f32.mrb[0].mxu0
      %1958 = vmatprep.mubr.bf16.mxu0 %v938
      %1959 = vmatmul.mubr.bf16.gmra.mrb[0].mxu0 %v724
      %v1960 = vpop.f32.mrb[0].mxu0
      %v1961 = vadd.f32 %v1800, %v1960
      %v1962 = vpop.f32.mrb[0].mxu0
      %v1963 = vpop.f32.mrb[0].mxu0
      %v1964 = vadd.f32 %v1803, %v1963
      %v1965 = vpop.f32.mrb[0].mxu0
      %1966 = vmatprep.mubr.bf16.mxu0 %v941
      %1967 = vmatmul.mubr.bf16.gmra.mrb[0].mxu0 %v736
      %v1968 = vpop.f32.mrb[0].mxu0
      %v1969 = vadd.f32 %v1808, %v1968
      %v1970 = vpop.f32.mrb[0].mxu0
      %v1971 = vpop.f32.mrb[0].mxu0
      %v1972 = vadd.f32 %v1811, %v1971
      %v1973 = vpop.f32.mrb[0].mxu0
      %1974 = vmatprep.mubr.bf16.mxu0 %v944
      %1975 = vmatmul.mubr.bf16.gmra.mrb[0].mxu0 %v748
      %v1976 = vpop.f32.mrb[0].mxu0
      %v1977 = vadd.f32 %v1816, %v1976
      %v1978 = vpop.f32.mrb[0].mxu0
      %v1979 = vpop.f32.mrb[0].mxu0
      %v1980 = vadd.f32 %v1819, %v1979
      %v1981 = vpop.f32.mrb[0].mxu0
      %1982 = vmatprep.mubr.bf16.mxu0 %v947
      %1983 = vmatmul.mubr.bf16.gmra.mrb[0].mxu0 %v760
      %v1984 = vpop.f32.mrb[0].mxu0
      %v1985 = vadd.f32 %v1824, %v1984
      %v1986 = vpop.f32.mrb[0].mxu0
      %v1987 = vpop.f32.mrb[0].mxu0
      %v1988 = vadd.f32 %v1827, %v1987
      %v1989 = vpop.f32.mrb[0].mxu0
      %1990 = vmatprep.mubr.bf16.mxu0 %v950
      %1991 = vmatmul.mubr.bf16.gmra.mrb[0].mxu0 %v772
      %v1992 = vpop.f32.mrb[0].mxu0
      %v1993 = vadd.f32 %v1832, %v1992
      %v1994 = vpop.f32.mrb[0].mxu0
      %v1995 = vpop.f32.mrb[0].mxu0
      %v1996 = vadd.f32 %v1835, %v1995
      %v1997 = vpop.f32.mrb[0].mxu0
      %1998 = vmatprep.mubr.bf16.mxu0 %v953
      %1999 = vmatmul.mubr.bf16.gmra.mrb[0].mxu0 %v784
      %v2000 = vpop.f32.mrb[0].mxu0
      %v2001 = vadd.f32 %v1840, %v2000
      %v2002 = vpop.f32.mrb[0].mxu0
      %v2003 = vpop.f32.mrb[0].mxu0
      %v2004 = vadd.f32 %v1843, %v2003
      %v2005 = vpop.f32.mrb[0].mxu0
      %2006 = vmatprep.mubr.bf16.mxu0 %v956
      %2007 = vmatmul.mubr.bf16.gmra.mrb[0].mxu0 %v796
      %v2008 = vpop.f32.mrb[0].mxu0
      %v2009 = vadd.f32 %v1848, %v2008
      %v2010 = vpop.f32.mrb[0].mxu0
      %v2011 = vpop.f32.mrb[0].mxu0
      %v2012 = vadd.f32 %v1851, %v2011
      %v2013 = vpop.f32.mrb[0].mxu0
      %2014 = vmatprep.mubr.bf16.mxu0 %v959
      %2015 = vmatmul.mubr.bf16.gmra.mrb[0].mxu0 %v808
      %v2016 = vpop.f32.mrb[0].mxu0
      %v2017 = vadd.f32 %v1856, %v2016
      %v2018 = vpop.f32.mrb[0].mxu0
      %v2019 = vpop.f32.mrb[0].mxu0
      %v2020 = vadd.f32 %v1859, %v2019
      %v2021 = vpop.f32.mrb[0].mxu0
      %2022 = vmatprep.mubr.bf16.mxu0 %v962
      %2023 = vmatmul.mubr.bf16.gmra.mrb[0].mxu0 %v820
      %v2024 = vpop.f32.mrb[0].mxu0
      %v2025 = vadd.f32 %v1864, %v2024
      %v2026 = vpop.f32.mrb[0].mxu0
      %v2027 = vpop.f32.mrb[0].mxu0
      %v2028 = vadd.f32 %v1867, %v2027
      %v2029 = vpop.f32.mrb[0].mxu0
      %2030 = vmatprep.mubr.bf16.mxu0 %v965
      %2031 = vmatmul.mubr.bf16.gmra.mrb[0].mxu0 %v832
      %v2032 = vpop.f32.mrb[0].mxu0
      %v2033 = vadd.f32 %v1872, %v2032
      %v2034 = vpop.f32.mrb[0].mxu0
      %v2035 = vpop.f32.mrb[0].mxu0
      %v2036 = vadd.f32 %v1875, %v2035
      %v2037 = vpop.f32.mrb[0].mxu0
      %2038 = vmatprep.mubr.bf16.mxu0 %v968
      %2039 = vmatmul.mubr.bf16.gmra.mrb[0].mxu0 %v844
      %v2040 = vpop.f32.mrb[0].mxu0
      %v2041 = vadd.f32 %v1880, %v2040
      %v2042 = vpop.f32.mrb[0].mxu0
      %v2043 = vpop.f32.mrb[0].mxu0
      %v2044 = vadd.f32 %v1883, %v2043
      %v2045 = vpop.f32.mrb[0].mxu0
      %2046 = vmatprep.mubr.bf16.mxu0 %v971
      %2047 = vmatmul.mubr.bf16.gmra.mrb[0].mxu0 %v856
      %v2048 = vpop.f32.mrb[0].mxu0
      %v2049 = vadd.f32 %v1888, %v2048
      %v2050 = vpop.f32.mrb[0].mxu0
      %v2051 = vpop.f32.mrb[0].mxu0
      %v2052 = vadd.f32 %v1891, %v2051
      %v2053 = vpop.f32.mrb[0].mxu0
      %2054 = vmatprep.mubr.bf16.mxu0 %v974
      %2055 = vmatmul.mubr.bf16.gmra.mrb[0].mxu0 %v868
      %v2056 = vpop.f32.mrb[0].mxu0
      %v2057 = vadd.f32 %v1896, %v2056
      %v2058 = vpop.f32.mrb[0].mxu0
      %v2059 = vpop.f32.mrb[0].mxu0
      %v2060 = vadd.f32 %v1899, %v2059
      %v2061 = vpop.f32.mrb[0].mxu0
      %2062 = vmatprep.mubr.bf16.mxu0 %v977
      %2063 = vmatmul.mubr.bf16.gmra.mrb[0].mxu0 %v880
      %v2064 = vpop.f32.mrb[0].mxu0
      %v2065 = vadd.f32 %v1904, %v2064
      %v2066 = vpop.f32.mrb[0].mxu0
      %v2067 = vpop.f32.mrb[0].mxu0
      %v2068 = vadd.f32 %v1907, %v2067
      %v2069 = vpop.f32.mrb[0].mxu0
      %2070 = vmatprep.mubr.bf16.mxu0 %v1011
      %2071 = vmatmul.mubr.bf16.gmra.mrb[0].mxu0 %v1005
      %v2072 = vpop.f32.mrb[0].mxu0
      %v2073 = vadd.f32 %v1912, %v2072
      %v2074 = vpop.f32.mrb[0].mxu0
      %v2075 = vpop.f32.mrb[0].mxu0
      %v2076 = vadd.f32 %v1915, %v2075
      %v2077 = vpop.f32.mrb[0].mxu0
      %2078 = vdwg.mxu0
      %2079 = vmatprep.subr.bf16.mxu0 0
      %2080 = vmatpush1.bf16.msra.mxu0 %v1500
      %2081 = vmatprep.subr.bf16.mxu0 0
      %2082 = vmatpush1.bf16.msra.mxu0 %v1501
      %2083 = vmatprep.subr.bf16.mxu0 0
      %2084 = vmatpush1.bf16.msra.mxu0 %v1502
      %2085 = vmatprep.subr.bf16.mxu0 0
      %2086 = vmatpush1.bf16.msra.mxu0 %v1503
      %2087 = vmatprep.subr.bf16.mxu0 0
      %2088 = vmatpush1.bf16.msra.mxu0 %v1504
      %2089 = vmatprep.subr.bf16.mxu0 0
      %2090 = vmatpush1.bf16.msra.mxu0 %v1505
      %2091 = vmatprep.subr.bf16.mxu0 0
      %2092 = vmatpush1.bf16.msra.mxu0 %v1506
      %2093 = vmatprep.subr.bf16.mxu0 0
      %2094 = vmatpush1.bf16.msra.mxu0 %v1507
      %2095 = vmatprep.subr.bf16.mxu0 0
      %2096 = vmatpush1.bf16.msra.mxu0 %v1508
      %2097 = vmatprep.subr.bf16.mxu0 0
      %2098 = vmatpush1.bf16.msra.mxu0 %v1509
      %2099 = vmatprep.subr.bf16.mxu0 0
      %2100 = vmatpush1.bf16.msra.mxu0 %v1510
      %2101 = vmatprep.subr.bf16.mxu0 0
      %2102 = vmatpush1.bf16.msra.mxu0 %v1511
      %2103 = vmatprep.subr.bf16.mxu0 0
      %2104 = vmatpush1.bf16.msra.mxu0 %v1512
      %2105 = vmatprep.subr.bf16.mxu0 0
      %2106 = vmatpush1.bf16.msra.mxu0 %v1513
      %2107 = vmatprep.subr.bf16.mxu0 0
      %2108 = vmatpush1.bf16.msra.mxu0 %v1514
      %2109 = vmatprep.subr.bf16.mxu0 0
      %2110 = vmatpush1.bf16.msra.mxu0 %v1515
      %2111 = vmatprep.mubr.bf16.mxu0 %v724
      %2112 = vmatmul.mubr.bf16.gmra.mrb[0].mxu0 %v656
      %v2113 = vpop.f32.mrb[0].mxu0
      %v2114 = vadd.f32 %v1953, %v2113
      %v2115 = vpop.f32.mrb[0].mxu0
      %v2116 = vpop.f32.mrb[0].mxu0
      %v2117 = vadd.f32 %v1956, %v2116
      %v2118 = vpop.f32.mrb[0].mxu0
      %2119 = vmatprep.mubr.bf16.mxu0 %v736
      %2120 = vmatmul.mubr.bf16.gmra.mrb[0].mxu0 %v657
      %v2121 = vpop.f32.mrb[0].mxu0
      %v2122 = vadd.f32 %v1961, %v2121
      %v2123 = vpop.f32.mrb[0].mxu0
      %v2124 = vpop.f32.mrb[0].mxu0
      %v2125 = vadd.f32 %v1964, %v2124
      %v2126 = vpop.f32.mrb[0].mxu0
      %2127 = vmatprep.mubr.bf16.mxu0 %v748
      %2128 = vmatmul.mubr.bf16.gmra.mrb[0].mxu0 %v658
      %v2129 = vpop.f32.mrb[0].mxu0
      %v2130 = vadd.f32 %v1969, %v2129
      %v2131 = vpop.f32.mrb[0].mxu0
      %v2132 = vpop.f32.mrb[0].mxu0
      %v2133 = vadd.f32 %v1972, %v2132
      %v2134 = vpop.f32.mrb[0].mxu0
      %2135 = vmatprep.mubr.bf16.mxu0 %v760
      %2136 = vmatmul.mubr.bf16.gmra.mrb[0].mxu0 %v659
      %v2137 = vpop.f32.mrb[0].mxu0
      %v2138 = vadd.f32 %v1977, %v2137
      %v2139 = vpop.f32.mrb[0].mxu0
      %v2140 = vpop.f32.mrb[0].mxu0
      %v2141 = vadd.f32 %v1980, %v2140
      %v2142 = vpop.f32.mrb[0].mxu0
      %2143 = vmatprep.mubr.bf16.mxu0 %v772
      %2144 = vmatmul.mubr.bf16.gmra.mrb[0].mxu0 %v660
      %v2145 = vpop.f32.mrb[0].mxu0
      %v2146 = vadd.f32 %v1985, %v2145
      %v2147 = vpop.f32.mrb[0].mxu0
      %v2148 = vpop.f32.mrb[0].mxu0
      %v2149 = vadd.f32 %v1988, %v2148
      %v2150 = vpop.f32.mrb[0].mxu0
      %2151 = vmatprep.mubr.bf16.mxu0 %v784
      %2152 = vmatmul.mubr.bf16.gmra.mrb[0].mxu0 %v661
      %v2153 = vpop.f32.mrb[0].mxu0
      %v2154 = vadd.f32 %v1993, %v2153
      %v2155 = vpop.f32.mrb[0].mxu0
      %v2156 = vpop.f32.mrb[0].mxu0
      %v2157 = vadd.f32 %v1996, %v2156
      %v2158 = vpop.f32.mrb[0].mxu0
      %2159 = vmatprep.mubr.bf16.mxu0 %v796
      %2160 = vmatmul.mubr.bf16.gmra.mrb[0].mxu0 %v662
      %v2161 = vpop.f32.mrb[0].mxu0
      %v2162 = vadd.f32 %v2001, %v2161
      %v2163 = vpop.f32.mrb[0].mxu0
      %v2164 = vpop.f32.mrb[0].mxu0
      %v2165 = vadd.f32 %v2004, %v2164
      %v2166 = vpop.f32.mrb[0].mxu0
      %2167 = vmatprep.mubr.bf16.mxu0 %v808
      %2168 = vmatmul.mubr.bf16.gmra.mrb[0].mxu0 %v663
      %v2169 = vpop.f32.mrb[0].mxu0
      %v2170 = vadd.f32 %v2009, %v2169
      %v2171 = vpop.f32.mrb[0].mxu0
      %v2172 = vpop.f32.mrb[0].mxu0
      %v2173 = vadd.f32 %v2012, %v2172
      %v2174 = vpop.f32.mrb[0].mxu0
      %2175 = vmatprep.mubr.bf16.mxu0 %v820
      %2176 = vmatmul.mubr.bf16.gmra.mrb[0].mxu0 %v664
      %v2177 = vpop.f32.mrb[0].mxu0
      %v2178 = vadd.f32 %v2017, %v2177
      %v2179 = vpop.f32.mrb[0].mxu0
      %v2180 = vpop.f32.mrb[0].mxu0
      %v2181 = vadd.f32 %v2020, %v2180
      %v2182 = vpop.f32.mrb[0].mxu0
      %2183 = vmatprep.mubr.bf16.mxu0 %v832
      %2184 = vmatmul.mubr.bf16.gmra.mrb[0].mxu0 %v665
      %v2185 = vpop.f32.mrb[0].mxu0
      %v2186 = vadd.f32 %v2025, %v2185
      %v2187 = vpop.f32.mrb[0].mxu0
      %v2188 = vpop.f32.mrb[0].mxu0
      %v2189 = vadd.f32 %v2028, %v2188
      %v2190 = vpop.f32.mrb[0].mxu0
      %2191 = vmatprep.mubr.bf16.mxu0 %v844
      %2192 = vmatmul.mubr.bf16.gmra.mrb[0].mxu0 %v666
      %v2193 = vpop.f32.mrb[0].mxu0
      %v2194 = vadd.f32 %v2033, %v2193
      %v2195 = vpop.f32.mrb[0].mxu0
      %v2196 = vpop.f32.mrb[0].mxu0
      %v2197 = vadd.f32 %v2036, %v2196
      %v2198 = vpop.f32.mrb[0].mxu0
      %2199 = vmatprep.mubr.bf16.mxu0 %v856
      %2200 = vmatmul.mubr.bf16.gmra.mrb[0].mxu0 %v667
      %v2201 = vpop.f32.mrb[0].mxu0
      %v2202 = vadd.f32 %v2041, %v2201
      %v2203 = vpop.f32.mrb[0].mxu0
      %v2204 = vpop.f32.mrb[0].mxu0
      %v2205 = vadd.f32 %v2044, %v2204
      %v2206 = vpop.f32.mrb[0].mxu0
      %2207 = vmatprep.mubr.bf16.mxu0 %v868
      %2208 = vmatmul.mubr.bf16.gmra.mrb[0].mxu0 %v668
      %v2209 = vpop.f32.mrb[0].mxu0
      %v2210 = vadd.f32 %v2049, %v2209
      %v2211 = vpop.f32.mrb[0].mxu0
      %v2212 = vpop.f32.mrb[0].mxu0
      %v2213 = vadd.f32 %v2052, %v2212
      %v2214 = vpop.f32.mrb[0].mxu0
      %2215 = vmatprep.mubr.bf16.mxu0 %v880
      %2216 = vmatmul.mubr.bf16.gmra.mrb[0].mxu0 %v669
      %v2217 = vpop.f32.mrb[0].mxu0
      %v2218 = vadd.f32 %v2057, %v2217
      %v2219 = vpop.f32.mrb[0].mxu0
      %v2220 = vpop.f32.mrb[0].mxu0
      %v2221 = vadd.f32 %v2060, %v2220
      %v2222 = vpop.f32.mrb[0].mxu0
      %2223 = vmatprep.mubr.bf16.mxu0 %v1005
      %2224 = vmatmul.mubr.bf16.gmra.mrb[0].mxu0 %v670
      %v2225 = vpop.f32.mrb[0].mxu0
      %v2226 = vadd.f32 %v2065, %v2225
      %v2227 = vpop.f32.mrb[0].mxu0
      %v2228 = vpop.f32.mrb[0].mxu0
      %v2229 = vadd.f32 %v2068, %v2228
      %v2230 = vpop.f32.mrb[0].mxu0
      %2231 = vmatprep.mubr.bf16.mxu0 %v700
      %2232 = vmatmul.mubr.bf16.gmra.mrb[0].mxu0 %v654
      %v2233 = vpop.f32.mrb[0].mxu0
      %v2234 = vadd.f32 %v2073, %v2233
      %v2235 = vpop.f32.mrb[0].mxu0
      %v2236 = vpop.f32.mrb[0].mxu0
      %v2237 = vadd.f32 %v2076, %v2236
      %v2238 = vpop.f32.mrb[0].mxu0
      %2239 = vdwg.mxu0
      %2240 = vmatprep.subr.bf16.mxu0 0
      %2241 = vmatpush1.bf16.msra.mxu0 %v1516
      %2242 = vmatprep.subr.bf16.mxu0 0
      %2243 = vmatpush1.bf16.msra.mxu0 %v1517
      %2244 = vmatprep.subr.bf16.mxu0 0
      %2245 = vmatpush1.bf16.msra.mxu0 %v1518
      %2246 = vmatprep.subr.bf16.mxu0 0
      %2247 = vmatpush1.bf16.msra.mxu0 %v1519
      %2248 = vmatprep.subr.bf16.mxu0 0
      %2249 = vmatpush1.bf16.msra.mxu0 %v1520
      %2250 = vmatprep.subr.bf16.mxu0 0
      %2251 = vmatpush1.bf16.msra.mxu0 %v1521
      %2252 = vmatprep.subr.bf16.mxu0 0
      %2253 = vmatpush1.bf16.msra.mxu0 %v1522
      %2254 = vmatprep.subr.bf16.mxu0 0
      %2255 = vmatpush1.bf16.msra.mxu0 %v1523
      %2256 = vmatprep.subr.bf16.mxu0 0
      %2257 = vmatpush1.bf16.msra.mxu0 0
      %2258 = vmatprep.subr.bf16.mxu0 0
      %2259 = vmatpush1.bf16.msra.mxu0 0
      %2260 = vmatprep.subr.bf16.mxu0 0
      %2261 = vmatpush1.bf16.msra.mxu0 0
      %2262 = vmatprep.subr.bf16.mxu0 0
      %2263 = vmatpush1.bf16.msra.mxu0 0
      %2264 = vmatprep.subr.bf16.mxu0 0
      %2265 = vmatpush1.bf16.msra.mxu0 0
      %2266 = vmatprep.subr.bf16.mxu0 0
      %2267 = vmatpush1.bf16.msra.mxu0 0
      %2268 = vmatprep.subr.bf16.mxu0 0
      %2269 = vmatpush1.bf16.msra.mxu0 0
      %2270 = vmatprep.subr.bf16.mxu0 0
      %2271 = vmatpush1.bf16.msra.mxu0 0
      %2272 = vmatprep.mubr.bf16.mxu0 0
      %2273 = vmatmul.mubr.bf16.gmra.mrb[0].mxu0 %v938
      %v2274 = vpop.f32.mrb[0].mxu0
      %v2275 = vadd.f32 %v2114, %v2274
      %v2276 = vpop.f32.mrb[0].mxu0
      %v2277 = vpop.f32.mrb[0].mxu0
      %v2278 = vadd.f32 %v2117, %v2277
      %v2279 = vpop.f32.mrb[0].mxu0
      %2280 = vmatprep.mubr.bf16.mxu0 0
      %2281 = vmatmul.mubr.bf16.gmra.mrb[0].mxu0 %v941
      %v2282 = vpop.f32.mrb[0].mxu0
      %v2283 = vadd.f32 %v2122, %v2282
      %v2284 = vpop.f32.mrb[0].mxu0
      %v2285 = vpop.f32.mrb[0].mxu0
      %v2286 = vadd.f32 %v2125, %v2285
      %v2287 = vpop.f32.mrb[0].mxu0
      %2288 = vmatprep.mubr.bf16.mxu0 0
      %2289 = vmatmul.mubr.bf16.gmra.mrb[0].mxu0 %v944
      %v2290 = vpop.f32.mrb[0].mxu0
      %v2291 = vadd.f32 %v2130, %v2290
      %v2292 = vpop.f32.mrb[0].mxu0
      %v2293 = vpop.f32.mrb[0].mxu0
      %v2294 = vadd.f32 %v2133, %v2293
      %v2295 = vpop.f32.mrb[0].mxu0
      %2296 = vmatprep.mubr.bf16.mxu0 0
      %2297 = vmatmul.mubr.bf16.gmra.mrb[0].mxu0 %v947
      %v2298 = vpop.f32.mrb[0].mxu0
      %v2299 = vadd.f32 %v2138, %v2298
      %v2300 = vpop.f32.mrb[0].mxu0
      %v2301 = vpop.f32.mrb[0].mxu0
      %v2302 = vadd.f32 %v2141, %v2301
      %v2303 = vpop.f32.mrb[0].mxu0
      %2304 = vmatprep.mubr.bf16.mxu0 0
      %2305 = vmatmul.mubr.bf16.gmra.mrb[0].mxu0 %v950
      %v2306 = vpop.f32.mrb[0].mxu0
      %v2307 = vadd.f32 %v2146, %v2306
      %v2308 = vpop.f32.mrb[0].mxu0
      %v2309 = vpop.f32.mrb[0].mxu0
      %v2310 = vadd.f32 %v2149, %v2309
      %v2311 = vpop.f32.mrb[0].mxu0
      %2312 = vmatprep.mubr.bf16.mxu0 0
      %2313 = vmatmul.mubr.bf16.gmra.mrb[0].mxu0 %v953
      %v2314 = vpop.f32.mrb[0].mxu0
      %v2315 = vadd.f32 %v2154, %v2314
      %v2316 = vpop.f32.mrb[0].mxu0
      %v2317 = vpop.f32.mrb[0].mxu0
      %v2318 = vadd.f32 %v2157, %v2317
      %v2319 = vpop.f32.mrb[0].mxu0
      %2320 = vmatprep.mubr.bf16.mxu0 0
      %2321 = vmatmul.mubr.bf16.gmra.mrb[0].mxu0 %v956
      %v2322 = vpop.f32.mrb[0].mxu0
      %v2323 = vadd.f32 %v2162, %v2322
      %v2324 = vpop.f32.mrb[0].mxu0
      %v2325 = vpop.f32.mrb[0].mxu0
      %v2326 = vadd.f32 %v2165, %v2325
      %v2327 = vpop.f32.mrb[0].mxu0
      %2328 = vmatprep.mubr.bf16.mxu0 0
      %2329 = vmatmul.mubr.bf16.gmra.mrb[0].mxu0 %v959
      %v2330 = vpop.f32.mrb[0].mxu0
      %v2331 = vadd.f32 %v2170, %v2330
      %v2332 = vpop.f32.mrb[0].mxu0
      %v2333 = vpop.f32.mrb[0].mxu0
      %v2334 = vadd.f32 %v2173, %v2333
      %v2335 = vpop.f32.mrb[0].mxu0
      %2336 = vmatprep.mubr.bf16.mxu0 0
      %2337 = vmatmul.mubr.bf16.gmra.mrb[0].mxu0 %v962
      %v2338 = vpop.f32.mrb[0].mxu0
      %v2339 = vadd.f32 %v2178, %v2338
      %v2340 = vpop.f32.mrb[0].mxu0
      %v2341 = vpop.f32.mrb[0].mxu0
      %v2342 = vadd.f32 %v2181, %v2341
      %v2343 = vpop.f32.mrb[0].mxu0
      %2344 = vmatprep.mubr.bf16.mxu0 0
      %2345 = vmatmul.mubr.bf16.gmra.mrb[0].mxu0 %v965
      %v2346 = vpop.f32.mrb[0].mxu0
      %v2347 = vadd.f32 %v2186, %v2346
      %v2348 = vpop.f32.mrb[0].mxu0
      %v2349 = vpop.f32.mrb[0].mxu0
      %v2350 = vadd.f32 %v2189, %v2349
      %v2351 = vpop.f32.mrb[0].mxu0
      %2352 = vmatprep.mubr.bf16.mxu0 0
      %2353 = vmatmul.mubr.bf16.gmra.mrb[0].mxu0 %v968
      %v2354 = vpop.f32.mrb[0].mxu0
      %v2355 = vadd.f32 %v2194, %v2354
      %v2356 = vpop.f32.mrb[0].mxu0
      %v2357 = vpop.f32.mrb[0].mxu0
      %v2358 = vadd.f32 %v2197, %v2357
      %v2359 = vpop.f32.mrb[0].mxu0
      %2360 = vmatprep.mubr.bf16.mxu0 0
      %2361 = vmatmul.mubr.bf16.gmra.mrb[0].mxu0 %v971
      %v2362 = vpop.f32.mrb[0].mxu0
      %v2363 = vadd.f32 %v2202, %v2362
      %v2364 = vpop.f32.mrb[0].mxu0
      %v2365 = vpop.f32.mrb[0].mxu0
      %v2366 = vadd.f32 %v2205, %v2365
      %v2367 = vpop.f32.mrb[0].mxu0
      %2368 = vmatprep.mubr.bf16.mxu0 0
      %2369 = vmatmul.mubr.bf16.gmra.mrb[0].mxu0 %v974
      %v2370 = vpop.f32.mrb[0].mxu0
      %v2371 = vadd.f32 %v2210, %v2370
      %v2372 = vpop.f32.mrb[0].mxu0
      %v2373 = vpop.f32.mrb[0].mxu0
      %v2374 = vadd.f32 %v2213, %v2373
      %v2375 = vpop.f32.mrb[0].mxu0
      %2376 = vmatprep.mubr.bf16.mxu0 0
      %2377 = vmatmul.mubr.bf16.gmra.mrb[0].mxu0 %v977
      %v2378 = vpop.f32.mrb[0].mxu0
      %v2379 = vadd.f32 %v2218, %v2378
      %v2380 = vpop.f32.mrb[0].mxu0
      %v2381 = vpop.f32.mrb[0].mxu0
      %v2382 = vadd.f32 %v2221, %v2381
      %v2383 = vpop.f32.mrb[0].mxu0
      %2384 = vmatprep.mubr.bf16.mxu0 0
      %2385 = vmatmul.mubr.bf16.gmra.mrb[0].mxu0 %v1011
      %v2386 = vpop.f32.mrb[0].mxu0
      %v2387 = vadd.f32 %v2226, %v2386
      %v2388 = vpop.f32.mrb[0].mxu0
      %v2389 = vpop.f32.mrb[0].mxu0
      %v2390 = vadd.f32 %v2229, %v2389
      %v2391 = vpop.f32.mrb[0].mxu0
      %2392 = vmatprep.mubr.bf16.mxu0 0
      %2393 = vmatmul.mubr.bf16.gmra.mrb[0].mxu0 %v932
      %v2394 = vpop.f32.mrb[0].mxu0
      %v2395 = vadd.f32 %v2234, %v2394
      %v2396 = vpop.f32.mrb[0].mxu0
      %v2397 = vpop.f32.mrb[0].mxu0
      %v2398 = vadd.f32 %v2237, %v2397
      %v2399 = vpop.f32.mrb[0].mxu0
      %2400 = vdwg.mxu0
      %v2401 = vpack.c.bf16 %v2278, %v2275
      %v2402 = vpack.c.bf16 %v2286, %v2283
      %v2403 = vpack.c.bf16 %v2294, %v2291
      %v2404 = vpack.c.bf16 %v2302, %v2299
      %v2405 = vpack.c.bf16 %v2310, %v2307
      %v2406 = vpack.c.bf16 %v2318, %v2315
      %v2407 = vpack.c.bf16 %v2326, %v2323
      %v2408 = vpack.c.bf16 %v2334, %v2331
      %v2409 = vpack.c.bf16 %v2342, %v2339
      %v2410 = vpack.c.bf16 %v2350, %v2347
      %v2411 = vpack.c.bf16 %v2358, %v2355
      %v2412 = vpack.c.bf16 %v2366, %v2363
      %v2413 = vpack.c.bf16 %v2374, %v2371
      %v2414 = vpack.c.bf16 %v2382, %v2379
      %v2415 = vpack.c.bf16 %v2390, %v2387
      %v2416 = vpack.c.bf16 %v2398, %v2395
      %v2433 = vunpack.c.l.b16 %v2401
      %v2434 = vunpack.c.h.b16 %v2401
      %v2435 = vunpack.c.l.b16 %v2402
      %v2436 = vunpack.c.h.b16 %v2402
      %v2437 = vunpack.c.l.b16 %v2403
      %v2438 = vunpack.c.h.b16 %v2403
      %v2439 = vunpack.c.l.b16 %v2404
      %v2440 = vunpack.c.h.b16 %v2404
      %v2441 = vunpack.c.l.b16 %v2405
      %v2442 = vunpack.c.h.b16 %v2405
      %v2443 = vunpack.c.l.b16 %v2406
      %v2444 = vunpack.c.h.b16 %v2406
      %v2445 = vunpack.c.l.b16 %v2407
      %v2446 = vunpack.c.h.b16 %v2407
      %v2447 = vunpack.c.l.b16 %v2408
      %v2448 = vunpack.c.h.b16 %v2408
      %v2449 = vunpack.c.l.b16 %v2409
      %v2450 = vunpack.c.h.b16 %v2409
      %v2451 = vunpack.c.l.b16 %v2410
      %v2452 = vunpack.c.h.b16 %v2410
      %v2453 = vunpack.c.l.b16 %v2411
      %v2454 = vunpack.c.h.b16 %v2411
      %v2455 = vunpack.c.l.b16 %v2412
      %v2456 = vunpack.c.h.b16 %v2412
      %v2457 = vunpack.c.l.b16 %v2413
      %v2458 = vunpack.c.h.b16 %v2413
      %v2459 = vunpack.c.l.b16 %v2414
      %v2460 = vunpack.c.h.b16 %v2414
      %v2461 = vunpack.c.l.b16 %v2415
      %v2462 = vunpack.c.h.b16 %v2415
      %v2463 = vunpack.c.l.b16 %v2416
      %v2464 = vunpack.c.h.b16 %v2416
      %v2465 = vpack.c.b16 %v2433, %v2433
      %v2466 = vpack.c.b16 %v2434, %v2434
      %v2467 = vpack.c.b16 %v2435, %v2435
      %v2468 = vpack.c.b16 %v2436, %v2436
      %v2469 = vpack.c.b16 %v2437, %v2437
      %v2470 = vpack.c.b16 %v2438, %v2438
      %v2471 = vpack.c.b16 %v2439, %v2439
      %v2472 = vpack.c.b16 %v2440, %v2440
      %v2473 = vpack.c.b16 %v2441, %v2441
      %v2474 = vpack.c.b16 %v2442, %v2442
      %v2475 = vpack.c.b16 %v2443, %v2443
      %v2476 = vpack.c.b16 %v2444, %v2444
      %v2477 = vpack.c.b16 %v2445, %v2445
      %v2478 = vpack.c.b16 %v2446, %v2446
      %v2479 = vpack.c.b16 %v2447, %v2447
      %v2480 = vpack.c.b16 %v2448, %v2448
      %v2481 = vpack.c.b16 %v2449, %v2449
      %v2482 = vpack.c.b16 %v2450, %v2450
      %v2483 = vpack.c.b16 %v2451, %v2451
      %v2484 = vpack.c.b16 %v2452, %v2452
      %v2485 = vpack.c.b16 %v2453, %v2453
      %v2486 = vpack.c.b16 %v2454, %v2454
      %v2487 = vpack.c.b16 %v2455, %v2455
      %v2488 = vpack.c.b16 %v2456, %v2456
      %v2489 = vpack.c.b16 %v2457, %v2457
      %v2490 = vpack.c.b16 %v2458, %v2458
      %v2491 = vpack.c.b16 %v2459, %v2459
      %v2492 = vpack.c.b16 %v2460, %v2460
      %v2493 = vpack.c.b16 %v2461, %v2461
      %v2494 = vpack.c.b16 %v2462, %v2462
      %v2495 = vpack.c.b16 %v2463, %v2463
      %v2496 = vpack.c.b16 %v2464, %v2464
      %2529 = vst [vmem:[%s258] sm:$0xf] %v2465
      %2530 = vst [vmem:[%s258 + $0x4] sm:$0xf] %v2466
      %2531 = vst [vmem:[%s258 + $0x8] sm:$0xf] %v2467
      %2532 = vst [vmem:[%s258 + $0xc] sm:$0xf] %v2468
      %2533 = vst [vmem:[%s258 + $0x10] sm:$0xf] %v2469
      %2534 = vst [vmem:[%s258 + $0x14] sm:$0xf] %v2470
      %2535 = vst [vmem:[%s258 + $0x18] sm:$0xf] %v2471
      %2536 = vst [vmem:[%s258 + $0x1c] sm:$0xf] %v2472
      %2537 = vst [vmem:[%s258 + $0x20] sm:$0xf] %v2473
      %2538 = vst [vmem:[%s258 + $0x24] sm:$0xf] %v2474
      %2539 = vst [vmem:[%s258 + $0x28] sm:$0xf] %v2475
      %2540 = vst [vmem:[%s258 + $0x2c] sm:$0xf] %v2476
      %2541 = vst [vmem:[%s258 + $0x30] sm:$0xf] %v2477
      %2542 = vst [vmem:[%s258 + $0x34] sm:$0xf] %v2478
      %2543 = vst [vmem:[%s258 + $0x38] sm:$0xf] %v2479
      %2544 = vst [vmem:[%s258 + $0x3c] sm:$0xf] %v2480
      %2545 = vst [vmem:[%s258 + $0x40] sm:$0xf] %v2481
      %2546 = vst [vmem:[%s258 + $0x44] sm:$0xf] %v2482
      %2547 = vst [vmem:[%s258 + $0x48] sm:$0xf] %v2483
      %2548 = vst [vmem:[%s258 + $0x4c] sm:$0xf] %v2484
      %2549 = vst [vmem:[%s258 + $0x50] sm:$0xf] %v2485
      %2550 = vst [vmem:[%s258 + $0x54] sm:$0xf] %v2486
      %2551 = vst [vmem:[%s258 + $0x58] sm:$0xf] %v2487
      %2552 = vst [vmem:[%s258 + $0x5c] sm:$0xf] %v2488
      %2553 = vst [vmem:[%s258 + $0x60] sm:$0xf] %v2489
      %2554 = vst [vmem:[%s258 + $0x64] sm:$0xf] %v2490
      %2555 = vst [vmem:[%s258 + $0x68] sm:$0xf] %v2491
      %2556 = vst [vmem:[%s258 + $0x6c] sm:$0xf] %v2492
      %2557 = vst [vmem:[%s258 + $0x70] sm:$0xf] %v2493
      %2558 = vst [vmem:[%s258 + $0x74] sm:$0xf] %v2494
      %2559 = vst [vmem:[%s258 + $0x78] sm:$0xf] %v2495
      %2560 = vst [vmem:[%s258 + $0x7c] sm:$0xf] %v2496
      %v2561 = vadd.f32 %v2275, %v2278
      %v2562 = vadd.f32 %v2561, %v2283
      %v2563 = vadd.f32 %v2562, %v2286
      %v2564 = vadd.f32 %v2563, %v2291
      %v2565 = vadd.f32 %v2564, %v2294
      %v2566 = vadd.f32 %v2565, %v2299
      %v2567 = vadd.f32 %v2566, %v2302
      %v2568 = vadd.f32 %v2567, %v2307
      %v2569 = vadd.f32 %v2568, %v2310
      %v2570 = vadd.f32 %v2569, %v2315
      %v2571 = vadd.f32 %v2570, %v2318
      %v2572 = vadd.f32 %v2571, %v2323
      %v2573 = vadd.f32 %v2572, %v2326
      %v2574 = vadd.f32 %v2573, %v2331
      %v2575 = vadd.f32 %v2574, %v2334
      %v2576 = vadd.f32 %v2575, %v2339
      %v2577 = vadd.f32 %v2576, %v2342
      %v2578 = vadd.f32 %v2577, %v2347
      %v2579 = vadd.f32 %v2578, %v2350
      %v2580 = vadd.f32 %v2579, %v2355
      %v2581 = vadd.f32 %v2580, %v2358
      %v2582 = vadd.f32 %v2581, %v2363
      %v2583 = vadd.f32 %v2582, %v2366
      %v2584 = vadd.f32 %v2583, %v2371
      %v2585 = vadd.f32 %v2584, %v2374
      %v2586 = vadd.f32 %v2585, %v2379
      %v2587 = vadd.f32 %v2586, %v2382
      %v2588 = vadd.f32 %v2587, %v2387
      %v2589 = vadd.f32 %v2588, %v2390
      %v2590 = vadd.f32 %v2589, %v2395
      %v2591 = vadd.f32 %v2590, %v2398
      %v2592 = vrot.slane %v2591, 4
      %v2593 = vadd.f32 %v2591, %v2592
      %v2594 = vrot.slane %v2593, 2
      %v2595 = vadd.f32 %v2593, %v2594
      %v2596 = vrot.slane %v2595, 1
      %v2597 = vadd.f32 %v2595, %v2596
      %v2598 = vmul.f32 %v2275, %v2275
      %v2599 = vmul.f32 %v2278, %v2278
      %v2600 = vmul.f32 %v2283, %v2283
      %v2601 = vmul.f32 %v2286, %v2286
      %v2602 = vmul.f32 %v2291, %v2291
      %v2603 = vmul.f32 %v2294, %v2294
      %v2604 = vmul.f32 %v2299, %v2299
      %v2605 = vmul.f32 %v2302, %v2302
      %v2606 = vmul.f32 %v2307, %v2307
      %v2607 = vmul.f32 %v2310, %v2310
      %v2608 = vmul.f32 %v2315, %v2315
      %v2609 = vmul.f32 %v2318, %v2318
      %v2610 = vmul.f32 %v2323, %v2323
      %v2611 = vmul.f32 %v2326, %v2326
      %v2612 = vmul.f32 %v2331, %v2331
      %v2613 = vmul.f32 %v2334, %v2334
      %v2614 = vmul.f32 %v2339, %v2339
      %v2615 = vmul.f32 %v2342, %v2342
      %v2616 = vmul.f32 %v2347, %v2347
      %v2617 = vmul.f32 %v2350, %v2350
      %v2618 = vmul.f32 %v2355, %v2355
      %v2619 = vmul.f32 %v2358, %v2358
      %v2620 = vmul.f32 %v2363, %v2363
      %v2621 = vmul.f32 %v2366, %v2366
      %v2622 = vmul.f32 %v2371, %v2371
      %v2623 = vmul.f32 %v2374, %v2374
      %v2624 = vmul.f32 %v2379, %v2379
      %v2625 = vmul.f32 %v2382, %v2382
      %v2626 = vmul.f32 %v2387, %v2387
      %v2627 = vmul.f32 %v2390, %v2390
      %v2628 = vmul.f32 %v2395, %v2395
      %v2629 = vmul.f32 %v2398, %v2398
      %v2630 = vadd.f32 %v2598, %v2599
      %v2631 = vadd.f32 %v2630, %v2600
      %v2632 = vadd.f32 %v2631, %v2601
      %v2633 = vadd.f32 %v2632, %v2602
      %v2634 = vadd.f32 %v2633, %v2603
      %v2635 = vadd.f32 %v2634, %v2604
      %v2636 = vadd.f32 %v2635, %v2605
      %v2637 = vadd.f32 %v2636, %v2606
      %v2638 = vadd.f32 %v2637, %v2607
      %v2639 = vadd.f32 %v2638, %v2608
      %v2640 = vadd.f32 %v2639, %v2609
      %v2641 = vadd.f32 %v2640, %v2610
      %v2642 = vadd.f32 %v2641, %v2611
      %v2643 = vadd.f32 %v2642, %v2612
      %v2644 = vadd.f32 %v2643, %v2613
      %v2645 = vadd.f32 %v2644, %v2614
      %v2646 = vadd.f32 %v2645, %v2615
      %v2647 = vadd.f32 %v2646, %v2616
      %v2648 = vadd.f32 %v2647, %v2617
      %v2649 = vadd.f32 %v2648, %v2618
      %v2650 = vadd.f32 %v2649, %v2619
      %v2651 = vadd.f32 %v2650, %v2620
      %v2652 = vadd.f32 %v2651, %v2621
      %v2653 = vadd.f32 %v2652, %v2622
      %v2654 = vadd.f32 %v2653, %v2623
      %v2655 = vadd.f32 %v2654, %v2624
      %v2656 = vadd.f32 %v2655, %v2625
      %v2657 = vadd.f32 %v2656, %v2626
      %v2658 = vadd.f32 %v2657, %v2627
      %v2659 = vadd.f32 %v2658, %v2628
      %v2660 = vadd.f32 %v2659, %v2629
      %v2661 = vrot.slane %v2660, 4
      %v2662 = vadd.f32 %v2660, %v2661
      %v2663 = vrot.slane %v2662, 2
      %v2664 = vadd.f32 %v2662, %v2663
      %v2665 = vrot.slane %v2664, 1
      %v2666 = vadd.f32 %v2664, %v2665
      %vm2667 = vcmask 1040384
      %v2668 = vsel %vm2667, %v2597, %v2666
      %vm2669 = vcmask 1041408
      %v2670 = vsel %vm2669, %v2668, 0.0
      %2671 = vst [vmem:[%s262] sm:$0xff] %v2670
      %p2672 = scmp.lt.s32.totalorder %s18, 1
      %s2673 = scalar_select %p2672, %s18, 1
      %s2674 = smul.addr %s2673, 32
      %s2675 = smul.addr %s2674, 4
      %s2676 = scalar_lea.vmem %s5, %s2675
      %p2677 = scmp.lt.s32.totalorder %s18, 1
      %s2678 = scalar_select %p2677, %s18, 1
      %s2679 = smul.addr %s2678, 8
      %s2680 = scalar_lea.vmem %s6, %s2679
      // Predicated region
      $region41: #{encoder_block_forward.5} parent=39 // pred_check
        %p2681 = pneg %p146
      $region42: #{encoder_block_forward.5} parent=39 // pred_check_branch
        %2683 = sbr.rel (%p2681) target = $region44
      $region43: #{encoder_block_forward.5} parent=39 // pred_region
        _
      $region44: #{encoder_block_forward.5} parent=39 // pred_fallthru
        _
      // Predicated region
      $region45: #{encoder_block_forward.5} parent=39 // pred_check
        %p2684 = pneg %p172
      $region46: #{encoder_block_forward.5} parent=39 // pred_check_branch
        %2686 = sbr.rel (%p2684) target = $region48
      $region47: #{encoder_block_forward.5} parent=39 // pred_region
        _
      $region48: #{encoder_block_forward.5} parent=39 // pred_fallthru
        _
    $region40: #{encoder_block_forward.5} parent=5 // pred_fallthru
      _
    %p2687 = scmp.le.s32.totalorder 2, %s13
    // Predicated region
    $region49: #{encoder_block_forward.5} parent=5 // pred_check
      %p2688 = pneg %p2687
    $region50: #{encoder_block_forward.5} parent=5 // pred_check_branch
      %2690 = sbr.rel (%p2688) target = $region52
    $region51: #{encoder_block_forward.5} parent=5 // pred_region
      %s2691 = ssub.s32 %s13, 2
      // Predicated region
      $region53: #{encoder_block_forward.5} parent=51 // pred_check
        %p2692 = pneg %p152
      $region54: #{encoder_block_forward.5} parent=51 // pred_check_branch
        %2694 = sbr.rel (%p2692) target = $region56
      $region55: #{encoder_block_forward.5} parent=51 // pred_region
        %p2695 = scmp.lt.s32.totalorder %s19, 1
        %s2696 = scalar_select %p2695, %s19, 1
        %s2697 = smul.addr %s2696, 32
        %s2698 = smul.addr %s2697, 4
        %s2699 = scalar_lea.vmem %s5, %s2698
      $region56: #{encoder_block_forward.5} parent=51 // pred_fallthru
        _
      // Predicated region
      $region57: #{encoder_block_forward.5} parent=51 // pred_check
        %p2700 = pneg %p178
      $region58: #{encoder_block_forward.5} parent=51 // pred_check_branch
        %2702 = sbr.rel (%p2700) target = $region60
      $region59: #{encoder_block_forward.5} parent=51 // pred_region
        %p2703 = scmp.lt.s32.totalorder %s19, 1
        %s2704 = scalar_select %p2703, %s19, 1
        %s2705 = smul.addr %s2704, 8
        %s2706 = scalar_lea.vmem %s6, %s2705
      $region60: #{encoder_block_forward.5} parent=51 // pred_fallthru
        _
    $region52: #{encoder_block_forward.5} parent=5 // pred_fallthru
      _
  $region6: #{encoder_block_forward.5} parent=0 // loop_footer
    %s17 = sadd.s32 1, %s13
  $region7: #{encoder_block_forward.5} parent=0 // loop_footer_branch
    %12 = sbr.rel target = $region3
  $region8: #{encoder_block_forward.5} parent=0 // loop_exit
    _

// kernel: encoder_block_forward.4
$region0: #{encoder_block_forward.4}
  #allocation0 [shape = 'u32[]', space=smem, size = 0x4, offset = 0x4, fixed_abs, tag = 'smem constant byte address 0x4 - core index']
  #allocation1 [shape = 'u32[144,128]{1,0:T(1,128)}', space=vmem, size = 0x12000, scoped, tag = 'internal scratch']
  %s0 = inlined_call_operand.vmem [shape: bf16[2,16,16,128], index: 0, kind: input, shape index: {}]
  %s1 = inlined_call_operand.vmem [shape: f32[1,128], index: 1, kind: input, shape index: {}]
  %s2 = inlined_call_operand.vmem [shape: f32[1,128], index: 2, kind: input, shape index: {}]
  %s3 = inlined_call_operand.vmem [shape: bf16[1152,128], index: 3, kind: input, shape index: {}]
  %s4 = inlined_call_operand.vmem [shape: f32[1,128], index: 4, kind: input, shape index: {}]
  %s5 = inlined_call_operand.vmem [shape: bf16[2,256,128], index: 5, kind: output, shape index: {0}]
  %s6 = inlined_call_operand.vmem [shape: f32[2,8,128], index: 6, kind: output, shape index: {1}]
  %7 = xla_tuple %s5, %s6
  %s8 = sld [smem:[#allocation0]]
  $region61: #{encoder_block_forward.4} parent=0
    _
  %s10 = ssub.s32 1, %s8
  %s11 = scalar_select 0, %s10, %s8
  loop: start=0, step=1, limit=4
  $region2: #{encoder_block_forward.4} parent=0 // loop_pre_header
    _
  $region3: #{encoder_block_forward.4} parent=0 // loop_header
    %s13 = sphi 0, %s17
    %p14 = scmp.ge.s32.totalorder %s13, 4
    %s23 = sphi 0, %s25
    %s26 = sphi 0, %s23
    %s27 = sphi 0, %s26
    %s43 = sphi 0, %s27
    %s47 = sphi 0, %s47
    %s49 = sphi 0, %s47
    %s50 = sphi 0, %s49
    %s64 = sphi 0, %s50
    %s68 = sphi 0, %s68
    %s70 = sphi 0, %s68
    %s71 = sphi 0, %s70
    %s85 = sphi 0, %s71
    %s89 = sphi 0, %s89
    %s91 = sphi 0, %s89
    %s92 = sphi 0, %s91
    %s106 = sphi 0, %s92
    %s110 = sphi 0, %s110
    %s112 = sphi 0, %s110
    %s113 = sphi 0, %s112
    %s127 = sphi 0, %s113
    %s133 = sphi 0, %s135
    %s136 = sphi 0, %s133
    %s137 = sphi 0, %s136
    %s153 = sphi 0, %s137
    %s159 = sphi 0, %s161
    %s162 = sphi 0, %s159
    %s163 = sphi 0, %s162
    %s179 = sphi 0, %s163
  $region4: #{encoder_block_forward.4} parent=0 // loop_header_branch
    %16 = sbr.rel (%p14) target = $region8
  $region5: #{encoder_block_forward.4} parent=0 // loop_body
    %s18 = ssub.s32 %s13, 1
    %s19 = ssub.s32 %s13, 2
    %s20 = sadd.s32 %s13, 1
    %s21 = ssub.s32 %s13, %s20
    %p22 = scmp.eq.s32.totalorder %s21, 0
    %s24 = sadd.s32 %s23, 1
    %s25 = scalar_select %p22, %s23, %s24
    %p28 = pneg %p22
    %p29 = scmp.eq.s32.totalorder %s13, 1
    %p30 = por %p28, %p29
    %p31 = scmp.ne.s32.totalorder %s23, %s26
    %p32 = scmp.eq.s32.totalorder %s13, 0
    %p33 = por %p31, %p32
    %p34 = scmp.ne.s32.totalorder %s23, %s26
    %p35 = scmp.eq.s32.totalorder %s18, 1
    %p36 = por %p34, %p35
    %p37 = scmp.ne.s32.totalorder %s26, %s27
    %p38 = scmp.eq.s32.totalorder %s18, 0
    %p39 = por %p37, %p38
    %p40 = scmp.ne.s32.totalorder %s26, %s27
    %p41 = scmp.eq.s32.totalorder %s19, 1
    %p42 = por %p40, %p41
    %p44 = scmp.ne.s32.totalorder %s27, %s43
    %p45 = scmp.eq.s32.totalorder %s19, 0
    %p46 = por %p44, %p45
    %s48 = sadd.s32 %s47, 1
    %p51 = scmp.eq.s32.totalorder %s13, 1
    %p52 = scmp.ne.s32.totalorder %s47, %s49
    %p53 = scmp.eq.s32.totalorder %s13, 0
    %p54 = por %p52, %p53
    %p55 = scmp.ne.s32.totalorder %s47, %s49
    %p56 = scmp.eq.s32.totalorder %s18, 1
    %p57 = por %p55, %p56
    %p58 = scmp.ne.s32.totalorder %s49, %s50
    %p59 = scmp.eq.s32.totalorder %s18, 0
    %p60 = por %p58, %p59
    %p61 = scmp.ne.s32.totalorder %s49, %s50
    %p62 = scmp.eq.s32.totalorder %s19, 1
    %p63 = por %p61, %p62
    %p65 = scmp.ne.s32.totalorder %s50, %s64
    %p66 = scmp.eq.s32.totalorder %s19, 0
    %p67 = por %p65, %p66
    %s69 = sadd.s32 %s68, 1
    %p72 = scmp.eq.s32.totalorder %s13, 1
    %p73 = scmp.ne.s32.totalorder %s68, %s70
    %p74 = scmp.eq.s32.totalorder %s13, 0
    %p75 = por %p73, %p74
    %p76 = scmp.ne.s32.totalorder %s68, %s70
    %p77 = scmp.eq.s32.totalorder %s18, 1
    %p78 = por %p76, %p77
    %p79 = scmp.ne.s32.totalorder %s70, %s71
    %p80 = scmp.eq.s32.totalorder %s18, 0
    %p81 = por %p79, %p80
    %p82 = scmp.ne.s32.totalorder %s70, %s71
    %p83 = scmp.eq.s32.totalorder %s19, 1
    %p84 = por %p82, %p83
    %p86 = scmp.ne.s32.totalorder %s71, %s85
    %p87 = scmp.eq.s32.totalorder %s19, 0
    %p88 = por %p86, %p87
    %s90 = sadd.s32 %s89, 1
    %p93 = scmp.eq.s32.totalorder %s13, 1
    %p94 = scmp.ne.s32.totalorder %s89, %s91
    %p95 = scmp.eq.s32.totalorder %s13, 0
    %p96 = por %p94, %p95
    %p97 = scmp.ne.s32.totalorder %s89, %s91
    %p98 = scmp.eq.s32.totalorder %s18, 1
    %p99 = por %p97, %p98
    %p100 = scmp.ne.s32.totalorder %s91, %s92
    %p101 = scmp.eq.s32.totalorder %s18, 0
    %p102 = por %p100, %p101
    %p103 = scmp.ne.s32.totalorder %s91, %s92
    %p104 = scmp.eq.s32.totalorder %s19, 1
    %p105 = por %p103, %p104
    %p107 = scmp.ne.s32.totalorder %s92, %s106
    %p108 = scmp.eq.s32.totalorder %s19, 0
    %p109 = por %p107, %p108
    %s111 = sadd.s32 %s110, 1
    %p114 = scmp.eq.s32.totalorder %s13, 1
    %p115 = scmp.ne.s32.totalorder %s110, %s112
    %p116 = scmp.eq.s32.totalorder %s13, 0
    %p117 = por %p115, %p116
    %p118 = scmp.ne.s32.totalorder %s110, %s112
    %p119 = scmp.eq.s32.totalorder %s18, 1
    %p120 = por %p118, %p119
    %p121 = scmp.ne.s32.totalorder %s112, %s113
    %p122 = scmp.eq.s32.totalorder %s18, 0
    %p123 = por %p121, %p122
    %p124 = scmp.ne.s32.totalorder %s112, %s113
    %p125 = scmp.eq.s32.totalorder %s19, 1
    %p126 = por %p124, %p125
    %p128 = scmp.ne.s32.totalorder %s113, %s127
    %p129 = scmp.eq.s32.totalorder %s19, 0
    %p130 = por %p128, %p129
    %s131 = ssub.s32 %s13, %s20
    %p132 = scmp.eq.s32.totalorder %s131, 0
    %s134 = sadd.s32 %s133, 1
    %s135 = scalar_select %p132, %s133, %s134
    %p138 = pneg %p132
    %p139 = scmp.eq.s32.totalorder %s13, 1
    %p140 = por %p138, %p139
    %p141 = scmp.ne.s32.totalorder %s133, %s136
    %p142 = scmp.eq.s32.totalorder %s13, 0
    %p143 = por %p141, %p142
    %p144 = scmp.ne.s32.totalorder %s133, %s136
    %p145 = scmp.eq.s32.totalorder %s18, 1
    %p146 = por %p144, %p145
    %p147 = scmp.ne.s32.totalorder %s136, %s137
    %p148 = scmp.eq.s32.totalorder %s18, 0
    %p149 = por %p147, %p148
    %p150 = scmp.ne.s32.totalorder %s136, %s137
    %p151 = scmp.eq.s32.totalorder %s19, 1
    %p152 = por %p150, %p151
    %p154 = scmp.ne.s32.totalorder %s137, %s153
    %p155 = scmp.eq.s32.totalorder %s19, 0
    %p156 = por %p154, %p155
    %s157 = ssub.s32 %s13, %s20
    %p158 = scmp.eq.s32.totalorder %s157, 0
    %s160 = sadd.s32 %s159, 1
    %s161 = scalar_select %p158, %s159, %s160
    %p164 = pneg %p158
    %p165 = scmp.eq.s32.totalorder %s13, 1
    %p166 = por %p164, %p165
    %p167 = scmp.ne.s32.totalorder %s159, %s162
    %p168 = scmp.eq.s32.totalorder %s13, 0
    %p169 = por %p167, %p168
    %p170 = scmp.ne.s32.totalorder %s159, %s162
    %p171 = scmp.eq.s32.totalorder %s18, 1
    %p172 = por %p170, %p171
    %p173 = scmp.ne.s32.totalorder %s162, %s163
    %p174 = scmp.eq.s32.totalorder %s18, 0
    %p175 = por %p173, %p174
    %p176 = scmp.ne.s32.totalorder %s162, %s163
    %p177 = scmp.eq.s32.totalorder %s19, 1
    %p178 = por %p176, %p177
    %p180 = scmp.ne.s32.totalorder %s163, %s179
    %p181 = scmp.eq.s32.totalorder %s19, 0
    %p182 = por %p180, %p181
    %p183 = scmp.le.s32.totalorder 1, %s13
    %p184 = scmp.lt.s32.totalorder %s13, 3
    %p185 = pnand %p183, %p184
    %p186 = pneg %p185
    // Predicated region
    $region9: #{encoder_block_forward.4} parent=5 // pred_check
      _
    $region10: #{encoder_block_forward.4} parent=5 // pred_check_branch
      %188 = sbr.rel (%p185) target = $region12
    $region11: #{encoder_block_forward.4} parent=5 // pred_region
      %s189 = ssub.s32 %s13, 1
      // Predicated region
      $region13: #{encoder_block_forward.4} parent=11 // pred_check
        %p190 = pneg %p60
      $region14: #{encoder_block_forward.4} parent=11 // pred_check_branch
        %192 = sbr.rel (%p190) target = $region16
      $region15: #{encoder_block_forward.4} parent=11 // pred_region
        _
      $region16: #{encoder_block_forward.4} parent=11 // pred_fallthru
        _
      // Predicated region
      $region17: #{encoder_block_forward.4} parent=11 // pred_check
        %p193 = pneg %p81
      $region18: #{encoder_block_forward.4} parent=11 // pred_check_branch
        %195 = sbr.rel (%p193) target = $region20
      $region19: #{encoder_block_forward.4} parent=11 // pred_region
        _
      $region20: #{encoder_block_forward.4} parent=11 // pred_fallthru
        _
      // Predicated region
      $region21: #{encoder_block_forward.4} parent=11 // pred_check
        %p196 = pneg %p102
      $region22: #{encoder_block_forward.4} parent=11 // pred_check_branch
        %198 = sbr.rel (%p196) target = $region24
      $region23: #{encoder_block_forward.4} parent=11 // pred_region
        _
      $region24: #{encoder_block_forward.4} parent=11 // pred_fallthru
        _
      // Predicated region
      $region25: #{encoder_block_forward.4} parent=11 // pred_check
        %p199 = pneg %p123
      $region26: #{encoder_block_forward.4} parent=11 // pred_check_branch
        %201 = sbr.rel (%p199) target = $region28
      $region27: #{encoder_block_forward.4} parent=11 // pred_region
        _
      $region28: #{encoder_block_forward.4} parent=11 // pred_fallthru
        _
    $region12: #{encoder_block_forward.4} parent=5 // pred_fallthru
      _
    %p202 = scmp.lt.s32.totalorder %s13, 2
    // Predicated region
    $region29: #{encoder_block_forward.4} parent=5 // pred_check
      %p203 = pneg %p202
    $region30: #{encoder_block_forward.4} parent=5 // pred_check_branch
      %205 = sbr.rel (%p203) target = $region32
    $region31: #{encoder_block_forward.4} parent=5 // pred_region
      // Predicated region
      $region33: #{encoder_block_forward.4} parent=31 // pred_check
        %p206 = pneg %p33
      $region34: #{encoder_block_forward.4} parent=31 // pred_check_branch
        %208 = sbr.rel (%p206) target = $region36
      $region35: #{encoder_block_forward.4} parent=31 // pred_region
        %p209 = scmp.lt.s32.totalorder %s13, 1
        %s210 = scalar_select %p209, %s13, 1
        %s211 = smul.addr %s210, 32
        %s212 = smul.addr %s211, 4
        %s213 = scalar_lea.vmem %s0, %s212
      $region36: #{encoder_block_forward.4} parent=31 // pred_fallthru
        _
    $region32: #{encoder_block_forward.4} parent=5 // pred_fallthru
      _
    %p214 = scmp.le.s32.totalorder 1, %s13
    %p215 = scmp.lt.s32.totalorder %s13, 3
    %p216 = pnand %p214, %p215
    %p217 = pneg %p216
    // Predicated region
    $region37: #{encoder_block_forward.4} parent=5 // pred_check
      _
    $region38: #{encoder_block_forward.4} parent=5 // pred_check_branch
      %219 = sbr.rel (%p216) target = $region40
    $region39: #{encoder_block_forward.4} parent=5 // pred_region
      %s220 = ssub.s32 %s13, 1
      %p221 = scmp.lt.s32.totalorder %s18, 1
      %s222 = scalar_select %p221, %s18, 1
      %s223 = smul.addr %s222, 32
      %s224 = smul.addr %s223, 4
      %s225 = scalar_lea.vmem %s0, %s224
      %p226 = pneg %p39
      %p227 = pneg %p36
      %p228 = pneg %p60
      %p229 = pneg %p57
      %p230 = pneg %p81
      %p231 = pneg %p78
      %p232 = pneg %p102
      %p233 = pneg %p99
      %p234 = pneg %p123
      %p235 = pneg %p120
      %p236 = pneg %p149
      %p237 = pneg %p146
      %p238 = scmp.lt.s32.totalorder %s18, 1
      %s239 = scalar_select %p238, %s18, 1
      %s240 = smul.addr %s239, 32
      %s241 = smul.addr %s240, 4
      %s242 = scalar_lea.vmem %s5, %s241
      %p243 = pneg %p175
      %p244 = pneg %p172
      %p245 = scmp.lt.s32.totalorder %s18, 1
      %s246 = scalar_select %p245, %s18, 1
      %s247 = smul.addr %s246, 8
      %s248 = scalar_lea.vmem %s6, %s247
      %p249 = scmp.lt.s32.totalorder %s18, 1
      %s250 = scalar_select %p249, %s18, 1
      %s251 = smul.addr %s250, 32
      %s252 = smul.addr %s251, 4
      %s253 = scalar_lea.vmem %s0, %s252
      %p254 = scmp.lt.s32.totalorder %s18, 1
      %s255 = scalar_select %p254, %s18, 1
      %s256 = smul.addr %s255, 32
      %s257 = smul.addr %s256, 4
      %s258 = scalar_lea.vmem %s5, %s257
      %p259 = scmp.lt.s32.totalorder %s18, 1
      %s260 = scalar_select %p259, %s18, 1
      %s261 = smul.addr %s260, 8
      %s262 = scalar_lea.vmem %s6, %s261
      %v264 = vld [vmem:[%s253] sm:$0xf]
      %v265 = vld [vmem:[%s253 + $0x4] sm:$0xf]
      %v266 = vld [vmem:[%s253 + $0x8] sm:$0xf]
      %v267 = vld [vmem:[%s253 + $0xc] sm:$0xf]
      %v268 = vld [vmem:[%s253 + $0x10] sm:$0xf]
      %v269 = vld [vmem:[%s253 + $0x14] sm:$0xf]
      %v270 = vld [vmem:[%s253 + $0x18] sm:$0xf]
      %v271 = vld [vmem:[%s253 + $0x1c] sm:$0xf]
      %v272 = vld [vmem:[%s253 + $0x20] sm:$0xf]
      %v273 = vld [vmem:[%s253 + $0x24] sm:$0xf]
      %v274 = vld [vmem:[%s253 + $0x28] sm:$0xf]
      %v275 = vld [vmem:[%s253 + $0x2c] sm:$0xf]
      %v276 = vld [vmem:[%s253 + $0x30] sm:$0xf]
      %v277 = vld [vmem:[%s253 + $0x34] sm:$0xf]
      %v278 = vld [vmem:[%s253 + $0x38] sm:$0xf]
      %v279 = vld [vmem:[%s253 + $0x3c] sm:$0xf]
      %v280 = vld [vmem:[%s253 + $0x40] sm:$0xf]
      %v281 = vld [vmem:[%s253 + $0x44] sm:$0xf]
      %v282 = vld [vmem:[%s253 + $0x48] sm:$0xf]
      %v283 = vld [vmem:[%s253 + $0x4c] sm:$0xf]
      %v284 = vld [vmem:[%s253 + $0x50] sm:$0xf]
      %v285 = vld [vmem:[%s253 + $0x54] sm:$0xf]
      %v286 = vld [vmem:[%s253 + $0x58] sm:$0xf]
      %v287 = vld [vmem:[%s253 + $0x5c] sm:$0xf]
      %v288 = vld [vmem:[%s253 + $0x60] sm:$0xf]
      %v289 = vld [vmem:[%s253 + $0x64] sm:$0xf]
      %v290 = vld [vmem:[%s253 + $0x68] sm:$0xf]
      %v291 = vld [vmem:[%s253 + $0x6c] sm:$0xf]
      %v292 = vld [vmem:[%s253 + $0x70] sm:$0xf]
      %v293 = vld [vmem:[%s253 + $0x74] sm:$0xf]
      %v294 = vld [vmem:[%s253 + $0x78] sm:$0xf]
      %v295 = vld [vmem:[%s253 + $0x7c] sm:$0xf]
      %v328 = vunpack.c.l.b16 %v264
      %v329 = vunpack.c.l.b16 %v265
      %v330 = vunpack.c.l.b16 %v266
      %v331 = vunpack.c.l.b16 %v267
      %v332 = vunpack.c.l.b16 %v268
      %v333 = vunpack.c.l.b16 %v269
      %v334 = vunpack.c.l.b16 %v270
      %v335 = vunpack.c.l.b16 %v271
      %v336 = vunpack.c.l.b16 %v272
      %v337 = vunpack.c.l.b16 %v273
      %v338 = vunpack.c.l.b16 %v274
      %v339 = vunpack.c.l.b16 %v275
      %v340 = vunpack.c.l.b16 %v276
      %v341 = vunpack.c.l.b16 %v277
      %v342 = vunpack.c.l.b16 %v278
      %v343 = vunpack.c.l.b16 %v279
      %v344 = vunpack.c.l.b16 %v280
      %v345 = vunpack.c.l.b16 %v281
      %v346 = vunpack.c.l.b16 %v282
      %v347 = vunpack.c.l.b16 %v283
      %v348 = vunpack.c.l.b16 %v284
      %v349 = vunpack.c.l.b16 %v285
      %v350 = vunpack.c.l.b16 %v286
      %v351 = vunpack.c.l.b16 %v287
      %v352 = vunpack.c.l.b16 %v288
      %v353 = vunpack.c.l.b16 %v289
      %v354 = vunpack.c.l.b16 %v290
      %v355 = vunpack.c.l.b16 %v291
      %v356 = vunpack.c.l.b16 %v292
      %v357 = vunpack.c.l.b16 %v293
      %v358 = vunpack.c.l.b16 %v294
      %v359 = vunpack.c.l.b16 %v295
      %v360 = vpack.c.b16 %v329, %v328
      %v361 = vpack.c.b16 %v331, %v330
      %v362 = vpack.c.b16 %v333, %v332
      %v363 = vpack.c.b16 %v335, %v334
      %v364 = vpack.c.b16 %v337, %v336
      %v365 = vpack.c.b16 %v339, %v338
      %v366 = vpack.c.b16 %v341, %v340
      %v367 = vpack.c.b16 %v343, %v342
      %v368 = vpack.c.b16 %v345, %v344
      %v369 = vpack.c.b16 %v347, %v346
      %v370 = vpack.c.b16 %v349, %v348
      %v371 = vpack.c.b16 %v351, %v350
      %v372 = vpack.c.b16 %v353, %v352
      %v373 = vpack.c.b16 %v355, %v354
      %v374 = vpack.c.b16 %v357, %v356
      %v375 = vpack.c.b16 %v359, %v358
      %v377 = vshrl.u32 0, 16
      %v379 = vrot.slane %v377, 7
      %v380 = vshll.u32 0, 16
      %v382 = vor.u32 %v379, %v380
      %v384 = vshrl.u32 %v360, 16
      %v386 = vrot.slane %v384, 7
      %v387 = vshll.u32 %v360, 16
      %v389 = vor.u32 %v386, %v387
      %v391 = vshrl.u32 %v361, 16
      %v393 = vrot.slane %v391, 7
      %v394 = vshll.u32 %v361, 16
      %v396 = vor.u32 %v393, %v394
      %v398 = vshrl.u32 %v362, 16
      %v400 = vrot.slane %v398, 7
      %v401 = vshll.u32 %v362, 16
      %v403 = vor.u32 %v400, %v401
      %v405 = vshrl.u32 %v363, 16
      %v407 = vrot.slane %v405, 7
      %v408 = vshll.u32 %v363, 16
      %v410 = vor.u32 %v407, %v408
      %v412 = vshrl.u32 %v364, 16
      %v414 = vrot.slane %v412, 7
      %v415 = vshll.u32 %v364, 16
      %v417 = vor.u32 %v414, %v415
      %v419 = vshrl.u32 %v365, 16
      %v421 = vrot.slane %v419, 7
      %v422 = vshll.u32 %v365, 16
      %v424 = vor.u32 %v421, %v422
      %v426 = vshrl.u32 %v366, 16
      %v428 = vrot.slane %v426, 7
      %v429 = vshll.u32 %v366, 16
      %v431 = vor.u32 %v428, %v429
      %v433 = vshrl.u32 %v367, 16
      %v435 = vrot.slane %v433, 7
      %v436 = vshll.u32 %v367, 16
      %v438 = vor.u32 %v435, %v436
      %v440 = vshrl.u32 %v368, 16
      %v442 = vrot.slane %v440, 7
      %v443 = vshll.u32 %v368, 16
      %v445 = vor.u32 %v442, %v443
      %v447 = vshrl.u32 %v369, 16
      %v449 = vrot.slane %v447, 7
      %v450 = vshll.u32 %v369, 16
      %v452 = vor.u32 %v449, %v450
      %v454 = vshrl.u32 %v370, 16
      %v456 = vrot.slane %v454, 7
      %v457 = vshll.u32 %v370, 16
      %v459 = vor.u32 %v456, %v457
      %v461 = vshrl.u32 %v371, 16
      %v463 = vrot.slane %v461, 7
      %v464 = vshll.u32 %v371, 16
      %v466 = vor.u32 %v463, %v464
      %v468 = vshrl.u32 %v372, 16
      %v470 = vrot.slane %v468, 7
      %v471 = vshll.u32 %v372, 16
      %v473 = vor.u32 %v470, %v471
      %v475 = vshrl.u32 %v373, 16
      %v477 = vrot.slane %v475, 7
      %v478 = vshll.u32 %v373, 16
      %v480 = vor.u32 %v477, %v478
      %v482 = vshrl.u32 %v374, 16
      %v484 = vrot.slane %v482, 7
      %v485 = vshll.u32 %v374, 16
      %v487 = vor.u32 %v484, %v485
      %v489 = vshrl.u32 %v375, 16
      %v491 = vrot.slane %v489, 7
      %v492 = vshll.u32 %v375, 16
      %v494 = vor.u32 %v491, %v492
      %vm529 = vcmask 1040384
      %vm530 = vsmask.f32 256
      %vm531 = vmand %vm529, %vm530
      %v532 = vsel %vm531, 0, %v382
      %v533 = vsel %vm531, 0, %v389
      %v534 = vsel %vm531, 0, %v396
      %v535 = vsel %vm531, 0, %v403
      %v536 = vsel %vm531, 0, %v410
      %v537 = vsel %vm531, 0, %v417
      %v538 = vsel %vm531, 0, %v424
      %v539 = vsel %vm531, 0, %v431
      %v540 = vsel %vm531, 0, %v438
      %v541 = vsel %vm531, 0, %v445
      %v542 = vsel %vm531, 0, %v452
      %v543 = vsel %vm531, 0, %v459
      %v544 = vsel %vm531, 0, %v466
      %v545 = vsel %vm531, 0, %v473
      %v546 = vsel %vm531, 0, %v480
      %v547 = vsel %vm531, 0, %v487
      %v548 = vsel %vm531, 0, %v494
      %v549 = vsel %vm531, %v379, 0
      %v550 = vsel %vm531, %v386, 0
      %v551 = vsel %vm531, %v393, 0
      %v552 = vsel %vm531, %v400, 0
      %v553 = vsel %vm531, %v407, 0
      %v554 = vsel %vm531, %v414, 0
      %v555 = vsel %vm531, %v421, 0
      %v556 = vsel %vm531, %v428, 0
      %v557 = vsel %vm531, %v435, 0
      %v558 = vsel %vm531, %v442, 0
      %v559 = vsel %vm531, %v449, 0
      %v560 = vsel %vm531, %v456, 0
      %v561 = vsel %vm531, %v463, 0
      %v562 = vsel %vm531, %v470, 0
      %v563 = vsel %vm531, %v477, 0
      %v564 = vsel %vm531, %v484, 0
      %v565 = vsel %vm531, %v491, 0
      %vm566 = vsmask.f32 7424
      %v568 = vshrl.u32 %v532, 16
      %v570 = vshll.u32 %v532, 16
      %v572 = vrot.slane %v570, 1
      %v573 = vor.u32 %v568, %v572
      %v575 = vshll.u32 %v549, 16
      %v577 = vrot.slane %v575, 1
      %v578 = vsel %vm566, %v573, %v577
      %v580 = vshrl.u32 %v533, 16
      %v582 = vshll.u32 %v533, 16
      %v584 = vrot.slane %v582, 1
      %v585 = vor.u32 %v580, %v584
      %v587 = vshll.u32 %v550, 16
      %v589 = vrot.slane %v587, 1
      %v590 = vsel %vm566, %v585, %v589
      %v592 = vshrl.u32 %v534, 16
      %v594 = vshll.u32 %v534, 16
      %v596 = vrot.slane %v594, 1
      %v597 = vor.u32 %v592, %v596
      %v599 = vshll.u32 %v551, 16
      %v601 = vrot.slane %v599, 1
      %v602 = vsel %vm566, %v597, %v601
      %v604 = vshrl.u32 %v535, 16
      %v606 = vshll.u32 %v535, 16
      %v608 = vrot.slane %v606, 1
      %v609 = vor.u32 %v604, %v608
      %v611 = vshll.u32 %v552, 16
      %v613 = vrot.slane %v611, 1
      %v614 = vsel %vm566, %v609, %v613
      %v616 = vshrl.u32 %v536, 16
      %v618 = vshll.u32 %v536, 16
      %v620 = vrot.slane %v618, 1
      %v621 = vor.u32 %v616, %v620
      %v623 = vshll.u32 %v553, 16
      %v625 = vrot.slane %v623, 1
      %v626 = vsel %vm566, %v621, %v625
      %v628 = vshrl.u32 %v537, 16
      %v630 = vshll.u32 %v537, 16
      %v632 = vrot.slane %v630, 1
      %v633 = vor.u32 %v628, %v632
      %v635 = vshll.u32 %v554, 16
      %v637 = vrot.slane %v635, 1
      %v638 = vsel %vm566, %v633, %v637
      %v640 = vshrl.u32 %v538, 16
      %v642 = vshll.u32 %v538, 16
      %v644 = vrot.slane %v642, 1
      %v645 = vor.u32 %v640, %v644
      %v647 = vshll.u32 %v555, 16
      %v649 = vrot.slane %v647, 1
      %v650 = vsel %vm566, %v645, %v649
      %v652 = vshrl.u32 %v539, 16
      %v654 = vshll.u32 %v539, 16
      %v656 = vrot.slane %v654, 1
      %v657 = vor.u32 %v652, %v656
      %v659 = vshll.u32 %v556, 16
      %v661 = vrot.slane %v659, 1
      %v662 = vsel %vm566, %v657, %v661
      %v664 = vshrl.u32 %v540, 16
      %v666 = vshll.u32 %v540, 16
      %v668 = vrot.slane %v666, 1
      %v669 = vor.u32 %v664, %v668
      %v671 = vshll.u32 %v557, 16
      %v673 = vrot.slane %v671, 1
      %v674 = vsel %vm566, %v669, %v673
      %v676 = vshrl.u32 %v541, 16
      %v678 = vshll.u32 %v541, 16
      %v680 = vrot.slane %v678, 1
      %v681 = vor.u32 %v676, %v680
      %v683 = vshll.u32 %v558, 16
      %v685 = vrot.slane %v683, 1
      %v686 = vsel %vm566, %v681, %v685
      %v688 = vshrl.u32 %v542, 16
      %v690 = vshll.u32 %v542, 16
      %v692 = vrot.slane %v690, 1
      %v693 = vor.u32 %v688, %v692
      %v695 = vshll.u32 %v559, 16
      %v697 = vrot.slane %v695, 1
      %v698 = vsel %vm566, %v693, %v697
      %v700 = vshrl.u32 %v543, 16
      %v702 = vshll.u32 %v543, 16
      %v704 = vrot.slane %v702, 1
      %v705 = vor.u32 %v700, %v704
      %v707 = vshll.u32 %v560, 16
      %v709 = vrot.slane %v707, 1
      %v710 = vsel %vm566, %v705, %v709
      %v712 = vshrl.u32 %v544, 16
      %v714 = vshll.u32 %v544, 16
      %v716 = vrot.slane %v714, 1
      %v717 = vor.u32 %v712, %v716
      %v719 = vshll.u32 %v561, 16
      %v721 = vrot.slane %v719, 1
      %v722 = vsel %vm566, %v717, %v721
      %v724 = vshrl.u32 %v545, 16
      %v726 = vshll.u32 %v545, 16
      %v728 = vrot.slane %v726, 1
      %v729 = vor.u32 %v724, %v728
      %v731 = vshll.u32 %v562, 16
      %v733 = vrot.slane %v731, 1
      %v734 = vsel %vm566, %v729, %v733
      %v736 = vshrl.u32 %v546, 16
      %v738 = vshll.u32 %v546, 16
      %v740 = vrot.slane %v738, 1
      %v741 = vor.u32 %v736, %v740
      %v743 = vshll.u32 %v563, 16
      %v745 = vrot.slane %v743, 1
      %v746 = vsel %vm566, %v741, %v745
      %v748 = vshrl.u32 %v547, 16
      %v750 = vshll.u32 %v547, 16
      %v752 = vrot.slane %v750, 1
      %v753 = vor.u32 %v748, %v752
      %v755 = vshll.u32 %v564, 16
      %v757 = vrot.slane %v755, 1
      %v758 = vsel %vm566, %v753, %v757
      %vm807 = vcmask 1046528
      %v808 = vrot.slane %v532, 1
      %v809 = vrot.slane %v549, 1
      %v810 = vsel %vm807, %v808, %v809
      %v811 = vrot.slane %v533, 1
      %v812 = vrot.slane %v550, 1
      %v813 = vsel %vm807, %v811, %v812
      %v814 = vrot.slane %v534, 1
      %v815 = vrot.slane %v551, 1
      %v816 = vsel %vm807, %v814, %v815
      %v817 = vrot.slane %v535, 1
      %v818 = vrot.slane %v552, 1
      %v819 = vsel %vm807, %v817, %v818
      %v820 = vrot.slane %v536, 1
      %v821 = vrot.slane %v553, 1
      %v822 = vsel %vm807, %v820, %v821
      %v823 = vrot.slane %v537, 1
      %v824 = vrot.slane %v554, 1
      %v825 = vsel %vm807, %v823, %v824
      %v826 = vrot.slane %v538, 1
      %v827 = vrot.slane %v555, 1
      %v828 = vsel %vm807, %v826, %v827
      %v829 = vrot.slane %v539, 1
      %v830 = vrot.slane %v556, 1
      %v831 = vsel %vm807, %v829, %v830
      %v832 = vrot.slane %v540, 1
      %v833 = vrot.slane %v557, 1
      %v834 = vsel %vm807, %v832, %v833
      %v835 = vrot.slane %v541, 1
      %v836 = vrot.slane %v558, 1
      %v837 = vsel %vm807, %v835, %v836
      %v838 = vrot.slane %v542, 1
      %v839 = vrot.slane %v559, 1
      %v840 = vsel %vm807, %v838, %v839
      %v841 = vrot.slane %v543, 1
      %v842 = vrot.slane %v560, 1
      %v843 = vsel %vm807, %v841, %v842
      %v844 = vrot.slane %v544, 1
      %v845 = vrot.slane %v561, 1
      %v846 = vsel %vm807, %v844, %v845
      %v847 = vrot.slane %v545, 1
      %v848 = vrot.slane %v562, 1
      %v849 = vsel %vm807, %v847, %v848
      %v850 = vrot.slane %v546, 1
      %v851 = vrot.slane %v563, 1
      %v852 = vsel %vm807, %v850, %v851
      %v853 = vrot.slane %v547, 1
      %v854 = vrot.slane %v564, 1
      %v855 = vsel %vm807, %v853, %v854
      %v873 = vshrl.u32 %v548, 16
      %v875 = vshll.u32 %v548, 16
      %v877 = vrot.slane %v875, 1
      %v878 = vor.u32 %v873, %v877
      %v880 = vshll.u32 %v565, 16
      %v882 = vrot.slane %v880, 1
      %v883 = vsel %vm566, %v878, %v882
      %v887 = vrot.slane %v548, 1
      %v888 = vrot.slane %v565, 1
      %v889 = vsel %vm807, %v887, %v888
      %v891 = vld [vmem:[%s3] sm:$0xf]
      %v892 = vld [vmem:[%s3 + $0x4] sm:$0xf]
      %v893 = vld [vmem:[%s3 + $0x8] sm:$0xf]
      %v894 = vld [vmem:[%s3 + $0xc] sm:$0xf]
      %v895 = vld [vmem:[%s3 + $0x10] sm:$0xf]
      %v896 = vld [vmem:[%s3 + $0x14] sm:$0xf]
      %v897 = vld [vmem:[%s3 + $0x18] sm:$0xf]
      %v898 = vld [vmem:[%s3 + $0x1c] sm:$0xf]
      %v899 = vld [vmem:[%s3 + $0x20] sm:$0xf]
      %v900 = vld [vmem:[%s3 + $0x24] sm:$0xf]
      %v901 = vld [vmem:[%s3 + $0x28] sm:$0xf]
      %v902 = vld [vmem:[%s3 + $0x2c] sm:$0xf]
      %v903 = vld [vmem:[%s3 + $0x30] sm:$0xf]
      %v904 = vld [vmem:[%s3 + $0x34] sm:$0xf]
      %v905 = vld [vmem:[%s3 + $0x38] sm:$0xf]
      %v906 = vld [vmem:[%s3 + $0x3c] sm:$0xf]
      %v907 = vld [vmem:[%s3 + $0x40] sm:$0xf]
      %v908 = vld [vmem:[%s3 + $0x44] sm:$0xf]
      %v909 = vld [vmem:[%s3 + $0x48] sm:$0xf]
      %v910 = vld [vmem:[%s3 + $0x4c] sm:$0xf]
      %v911 = vld [vmem:[%s3 + $0x50] sm:$0xf]
      %v912 = vld [vmem:[%s3 + $0x54] sm:$0xf]
      %v913 = vld [vmem:[%s3 + $0x58] sm:$0xf]
      %v914 = vld [vmem:[%s3 + $0x5c] sm:$0xf]
      %v915 = vld [vmem:[%s3 + $0x60] sm:$0xf]
      %v916 = vld [vmem:[%s3 + $0x64] sm:$0xf]
      %v917 = vld [vmem:[%s3 + $0x68] sm:$0xf]
      %v918 = vld [vmem:[%s3 + $0x6c] sm:$0xf]
      %v919 = vld [vmem:[%s3 + $0x70] sm:$0xf]
      %v920 = vld [vmem:[%s3 + $0x74] sm:$0xf]
      %v921 = vld [vmem:[%s3 + $0x78] sm:$0xf]
      %v922 = vld [vmem:[%s3 + $0x7c] sm:$0xf]
      %v923 = vld [vmem:[%s3 + $0x80] sm:$0xf]
      %v924 = vld [vmem:[%s3 + $0x84] sm:$0xf]
      %v925 = vld [vmem:[%s3 + $0x88] sm:$0xf]
      %v926 = vld [vmem:[%s3 + $0x8c] sm:$0xf]
      %v927 = vld [vmem:[%s3 + $0x90] sm:$0xf]
      %v928 = vld [vmem:[%s3 + $0x94] sm:$0xf]
      %v929 = vld [vmem:[%s3 + $0x98] sm:$0xf]
      %v930 = vld [vmem:[%s3 + $0x9c] sm:$0xf]
      %v931 = vld [vmem:[%s3 + $0xa0] sm:$0xf]
      %v932 = vld [vmem:[%s3 + $0xa4] sm:$0xf]
      %v933 = vld [vmem:[%s3 + $0xa8] sm:$0xf]
      %v934 = vld [vmem:[%s3 + $0xac] sm:$0xf]
      %v935 = vld [vmem:[%s3 + $0xb0] sm:$0xf]
      %v936 = vld [vmem:[%s3 + $0xb4] sm:$0xf]
      %v937 = vld [vmem:[%s3 + $0xb8] sm:$0xf]
      %v938 = vld [vmem:[%s3 + $0xbc] sm:$0xf]
      %v939 = vld [vmem:[%s3 + $0xc0] sm:$0xf]
      %v940 = vld [vmem:[%s3 + $0xc4] sm:$0xf]
      %v941 = vld [vmem:[%s3 + $0xc8] sm:$0xf]
      %v942 = vld [vmem:[%s3 + $0xcc] sm:$0xf]
      %v943 = vld [vmem:[%s3 + $0xd0] sm:$0xf]
      %v944 = vld [vmem:[%s3 + $0xd4] sm:$0xf]
      %v945 = vld [vmem:[%s3 + $0xd8] sm:$0xf]
      %v946 = vld [vmem:[%s3 + $0xdc] sm:$0xf]
      %v947 = vld [vmem:[%s3 + $0xe0] sm:$0xf]
      %v948 = vld [vmem:[%s3 + $0xe4] sm:$0xf]
      %v949 = vld [vmem:[%s3 + $0xe8] sm:$0xf]
      %v950 = vld [vmem:[%s3 + $0xec] sm:$0xf]
      %v951 = vld [vmem:[%s3 + $0xf0] sm:$0xf]
      %v952 = vld [vmem:[%s3 + $0xf4] sm:$0xf]
      %v953 = vld [vmem:[%s3 + $0xf8] sm:$0xf]
      %v954 = vld [vmem:[%s3 + $0xfc] sm:$0xf]
      %v955 = vld [vmem:[%s3 + $0x100] sm:$0xf]
      %v956 = vld [vmem:[%s3 + $0x104] sm:$0xf]
      %v957 = vld [vmem:[%s3 + $0x108] sm:$0xf]
      %v958 = vld [vmem:[%s3 + $0x10c] sm:$0xf]
      %v959 = vld [vmem:[%s3 + $0x110] sm:$0xf]
      %v960 = vld [vmem:[%s3 + $0x114] sm:$0xf]
      %v961 = vld [vmem:[%s3 + $0x118] sm:$0xf]
      %v962 = vld [vmem:[%s3 + $0x11c] sm:$0xf]
      %v963 = vld [vmem:[%s3 + $0x120] sm:$0xf]
      %v964 = vld [vmem:[%s3 + $0x124] sm:$0xf]
      %v965 = vld [vmem:[%s3 + $0x128] sm:$0xf]
      %v966 = vld [vmem:[%s3 + $0x12c] sm:$0xf]
      %v967 = vld [vmem:[%s3 + $0x130] sm:$0xf]
      %v968 = vld [vmem:[%s3 + $0x134] sm:$0xf]
      %v969 = vld [vmem:[%s3 + $0x138] sm:$0xf]
      %v970 = vld [vmem:[%s3 + $0x13c] sm:$0xf]
      %v971 = vld [vmem:[%s3 + $0x140] sm:$0xf]
      %v972 = vld [vmem:[%s3 + $0x144] sm:$0xf]
      %v973 = vld [vmem:[%s3 + $0x148] sm:$0xf]
      %v974 = vld [vmem:[%s3 + $0x14c] sm:$0xf]
      %v975 = vld [vmem:[%s3 + $0x150] sm:$0xf]
      %v976 = vld [vmem:[%s3 + $0x154] sm:$0xf]
      %v977 = vld [vmem:[%s3 + $0x158] sm:$0xf]
      %v978 = vld [vmem:[%s3 + $0x15c] sm:$0xf]
      %v979 = vld [vmem:[%s3 + $0x160] sm:$0xf]
      %v980 = vld [vmem:[%s3 + $0x164] sm:$0xf]
      %v981 = vld [vmem:[%s3 + $0x168] sm:$0xf]
      %v982 = vld [vmem:[%s3 + $0x16c] sm:$0xf]
      %v983 = vld [vmem:[%s3 + $0x170] sm:$0xf]
      %v984 = vld [vmem:[%s3 + $0x174] sm:$0xf]
      %v985 = vld [vmem:[%s3 + $0x178] sm:$0xf]
      %v986 = vld [vmem:[%s3 + $0x17c] sm:$0xf]
      %v987 = vld [vmem:[%s3 + $0x180] sm:$0xf]
      %v988 = vld [vmem:[%s3 + $0x184] sm:$0xf]
      %v989 = vld [vmem:[%s3 + $0x188] sm:$0xf]
      %v990 = vld [vmem:[%s3 + $0x18c] sm:$0xf]
      %v991 = vld [vmem:[%s3 + $0x190] sm:$0xf]
      %v992 = vld [vmem:[%s3 + $0x194] sm:$0xf]
      %v993 = vld [vmem:[%s3 + $0x198] sm:$0xf]
      %v994 = vld [vmem:[%s3 + $0x19c] sm:$0xf]
      %v995 = vld [vmem:[%s3 + $0x1a0] sm:$0xf]
      %v996 = vld [vmem:[%s3 + $0x1a4] sm:$0xf]
      %v997 = vld [vmem:[%s3 + $0x1a8] sm:$0xf]
      %v998 = vld [vmem:[%s3 + $0x1ac] sm:$0xf]
      %v999 = vld [vmem:[%s3 + $0x1b0] sm:$0xf]
      %v1000 = vld [vmem:[%s3 + $0x1b4] sm:$0xf]
      %v1001 = vld [vmem:[%s3 + $0x1b8] sm:$0xf]
      %v1002 = vld [vmem:[%s3 + $0x1bc] sm:$0xf]
      %v1003 = vld [vmem:[%s3 + $0x1c0] sm:$0xf]
      %v1004 = vld [vmem:[%s3 + $0x1c4] sm:$0xf]
      %v1005 = vld [vmem:[%s3 + $0x1c8] sm:$0xf]
      %v1006 = vld [vmem:[%s3 + $0x1cc] sm:$0xf]
      %v1007 = vld [vmem:[%s3 + $0x1d0] sm:$0xf]
      %v1008 = vld [vmem:[%s3 + $0x1d4] sm:$0xf]
      %v1009 = vld [vmem:[%s3 + $0x1d8] sm:$0xf]
      %v1010 = vld [vmem:[%s3 + $0x1dc] sm:$0xf]
      %v1011 = vld [vmem:[%s3 + $0x1e0] sm:$0xf]
      %v1012 = vld [vmem:[%s3 + $0x1e4] sm:$0xf]
      %v1013 = vld [vmem:[%s3 + $0x1e8] sm:$0xf]
      %v1014 = vld [vmem:[%s3 + $0x1ec] sm:$0xf]
      %v1015 = vld [vmem:[%s3 + $0x1f0] sm:$0xf]
      %v1016 = vld [vmem:[%s3 + $0x1f4] sm:$0xf]
      %v1017 = vld [vmem:[%s3 + $0x1f8] sm:$0xf]
      %v1018 = vld [vmem:[%s3 + $0x1fc] sm:$0xf]
      %v1019 = vld [vmem:[%s3 + $0x200] sm:$0xf]
      %v1020 = vld [vmem:[%s3 + $0x204] sm:$0xf]
      %v1021 = vld [vmem:[%s3 + $0x208] sm:$0xf]
      %v1022 = vld [vmem:[%s3 + $0x20c] sm:$0xf]
      %v1023 = vld [vmem:[%s3 + $0x210] sm:$0xf]
      %v1024 = vld [vmem:[%s3 + $0x214] sm:$0xf]
      %v1025 = vld [vmem:[%s3 + $0x218] sm:$0xf]
      %v1026 = vld [vmem:[%s3 + $0x21c] sm:$0xf]
      %v1027 = vld [vmem:[%s3 + $0x220] sm:$0xf]
      %v1028 = vld [vmem:[%s3 + $0x224] sm:$0xf]
      %v1029 = vld [vmem:[%s3 + $0x228] sm:$0xf]
      %v1030 = vld [vmem:[%s3 + $0x22c] sm:$0xf]
      %v1031 = vld [vmem:[%s3 + $0x230] sm:$0xf]
      %v1032 = vld [vmem:[%s3 + $0x234] sm:$0xf]
      %v1033 = vld [vmem:[%s3 + $0x238] sm:$0xf]
      %v1034 = vld [vmem:[%s3 + $0x23c] sm:$0xf]
      %v1035 = vld [vmem:[%s4] sm:$0x1]
      %v1037 = vlaneseq
      %v1038 = vshrl.u32 %v1037, 7
      %v1039 = vsub.s32 0, %v1038
      %v1040 = vrot.slane %v1035, %v1039
      %v1186 = vunpack.c.l.b16 %v891
      %v1187 = vunpack.c.l.b16 %v892
      %v1188 = vunpack.c.l.b16 %v893
      %v1189 = vunpack.c.l.b16 %v894
      %v1190 = vunpack.c.l.b16 %v895
      %v1191 = vunpack.c.l.b16 %v896
      %v1192 = vunpack.c.l.b16 %v897
      %v1193 = vunpack.c.l.b16 %v898
      %v1194 = vunpack.c.l.b16 %v899
      %v1195 = vunpack.c.l.b16 %v900
      %v1196 = vunpack.c.l.b16 %v901
      %v1197 = vunpack.c.l.b16 %v902
      %v1198 = vunpack.c.l.b16 %v903
      %v1199 = vunpack.c.l.b16 %v904
      %v1200 = vunpack.c.l.b16 %v905
      %v1201 = vunpack.c.l.b16 %v906
      %v1202 = vunpack.c.l.b16 %v907
      %v1203 = vunpack.c.l.b16 %v908
      %v1204 = vunpack.c.l.b16 %v909
      %v1205 = vunpack.c.l.b16 %v910
      %v1206 = vunpack.c.l.b16 %v911
      %v1207 = vunpack.c.l.b16 %v912
      %v1208 = vunpack.c.l.b16 %v913
      %v1209 = vunpack.c.l.b16 %v914
      %v1210 = vunpack.c.l.b16 %v915
      %v1211 = vunpack.c.l.b16 %v916
      %v1212 = vunpack.c.l.b16 %v917
      %v1213 = vunpack.c.l.b16 %v918
      %v1214 = vunpack.c.l.b16 %v919
      %v1215 = vunpack.c.l.b16 %v920
      %v1216 = vunpack.c.l.b16 %v921
      %v1217 = vunpack.c.l.b16 %v922
      %v1218 = vunpack.c.l.b16 %v923
      %v1219 = vunpack.c.l.b16 %v924
      %v1220 = vunpack.c.l.b16 %v925
      %v1221 = vunpack.c.l.b16 %v926
      %v1222 = vunpack.c.l.b16 %v927
      %v1223 = vunpack.c.l.b16 %v928
      %v1224 = vunpack.c.l.b16 %v929
      %v1225 = vunpack.c.l.b16 %v930
      %v1226 = vunpack.c.l.b16 %v931
      %v1227 = vunpack.c.l.b16 %v932
      %v1228 = vunpack.c.l.b16 %v933
      %v1229 = vunpack.c.l.b16 %v934
      %v1230 = vunpack.c.l.b16 %v935
      %v1231 = vunpack.c.l.b16 %v936
      %v1232 = vunpack.c.l.b16 %v937
      %v1233 = vunpack.c.l.b16 %v938
      %v1234 = vunpack.c.l.b16 %v939
      %v1235 = vunpack.c.l.b16 %v940
      %v1236 = vunpack.c.l.b16 %v941
      %v1237 = vunpack.c.l.b16 %v942
      %v1238 = vunpack.c.l.b16 %v943
      %v1239 = vunpack.c.l.b16 %v944
      %v1240 = vunpack.c.l.b16 %v945
      %v1241 = vunpack.c.l.b16 %v946
      %v1242 = vunpack.c.l.b16 %v947
      %v1243 = vunpack.c.l.b16 %v948
      %v1244 = vunpack.c.l.b16 %v949
      %v1245 = vunpack.c.l.b16 %v950
      %v1246 = vunpack.c.l.b16 %v951
      %v1247 = vunpack.c.l.b16 %v952
      %v1248 = vunpack.c.l.b16 %v953
      %v1249 = vunpack.c.l.b16 %v954
      %v1250 = vunpack.c.l.b16 %v955
      %v1251 = vunpack.c.l.b16 %v956
      %v1252 = vunpack.c.l.b16 %v957
      %v1253 = vunpack.c.l.b16 %v958
      %v1254 = vunpack.c.l.b16 %v959
      %v1255 = vunpack.c.l.b16 %v960
      %v1256 = vunpack.c.l.b16 %v961
      %v1257 = vunpack.c.l.b16 %v962
      %v1258 = vunpack.c.l.b16 %v963
      %v1259 = vunpack.c.l.b16 %v964
      %v1260 = vunpack.c.l.b16 %v965
      %v1261 = vunpack.c.l.b16 %v966
      %v1262 = vunpack.c.l.b16 %v967
      %v1263 = vunpack.c.l.b16 %v968
      %v1264 = vunpack.c.l.b16 %v969
      %v1265 = vunpack.c.l.b16 %v970
      %v1266 = vunpack.c.l.b16 %v971
      %v1267 = vunpack.c.l.b16 %v972
      %v1268 = vunpack.c.l.b16 %v973
      %v1269 = vunpack.c.l.b16 %v974
      %v1270 = vunpack.c.l.b16 %v975
      %v1271 = vunpack.c.l.b16 %v976
      %v1272 = vunpack.c.l.b16 %v977
      %v1273 = vunpack.c.l.b16 %v978
      %v1274 = vunpack.c.l.b16 %v979
      %v1275 = vunpack.c.l.b16 %v980
      %v1276 = vunpack.c.l.b16 %v981
      %v1277 = vunpack.c.l.b16 %v982
      %v1278 = vunpack.c.l.b16 %v983
      %v1279 = vunpack.c.l.b16 %v984
      %v1280 = vunpack.c.l.b16 %v985
      %v1281 = vunpack.c.l.b16 %v986
      %v1282 = vunpack.c.l.b16 %v987
      %v1283 = vunpack.c.l.b16 %v988
      %v1284 = vunpack.c.l.b16 %v989
      %v1285 = vunpack.c.l.b16 %v990
      %v1286 = vunpack.c.l.b16 %v991
      %v1287 = vunpack.c.l.b16 %v992
      %v1288 = vunpack.c.l.b16 %v993
      %v1289 = vunpack.c.l.b16 %v994
      %v1290 = vunpack.c.l.b16 %v995
      %v1291 = vunpack.c.l.b16 %v996
      %v1292 = vunpack.c.l.b16 %v997
      %v1293 = vunpack.c.l.b16 %v998
      %v1294 = vunpack.c.l.b16 %v999
      %v1295 = vunpack.c.l.b16 %v1000
      %v1296 = vunpack.c.l.b16 %v1001
      %v1297 = vunpack.c.l.b16 %v1002
      %v1298 = vunpack.c.l.b16 %v1003
      %v1299 = vunpack.c.l.b16 %v1004
      %v1300 = vunpack.c.l.b16 %v1005
      %v1301 = vunpack.c.l.b16 %v1006
      %v1302 = vunpack.c.l.b16 %v1007
      %v1303 = vunpack.c.l.b16 %v1008
      %v1304 = vunpack.c.l.b16 %v1009
      %v1305 = vunpack.c.l.b16 %v1010
      %v1306 = vunpack.c.l.b16 %v1011
      %v1307 = vunpack.c.l.b16 %v1012
      %v1308 = vunpack.c.l.b16 %v1013
      %v1309 = vunpack.c.l.b16 %v1014
      %v1310 = vunpack.c.l.b16 %v1015
      %v1311 = vunpack.c.l.b16 %v1016
      %v1312 = vunpack.c.l.b16 %v1017
      %v1313 = vunpack.c.l.b16 %v1018
      %v1314 = vunpack.c.l.b16 %v1019
      %v1315 = vunpack.c.l.b16 %v1020
      %v1316 = vunpack.c.l.b16 %v1021
      %v1317 = vunpack.c.l.b16 %v1022
      %v1318 = vunpack.c.l.b16 %v1023
      %v1319 = vunpack.c.l.b16 %v1024
      %v1320 = vunpack.c.l.b16 %v1025
      %v1321 = vunpack.c.l.b16 %v1026
      %v1322 = vunpack.c.l.b16 %v1027
      %v1323 = vunpack.c.l.b16 %v1028
      %v1324 = vunpack.c.l.b16 %v1029
      %v1325 = vunpack.c.l.b16 %v1030
      %v1326 = vunpack.c.l.b16 %v1031
      %v1327 = vunpack.c.l.b16 %v1032
      %v1328 = vunpack.c.l.b16 %v1033
      %v1329 = vunpack.c.l.b16 %v1034
      %v1330 = vpack.c.b16 %v1187, %v1186
      %v1331 = vpack.c.b16 %v1189, %v1188
      %v1332 = vpack.c.b16 %v1191, %v1190
      %v1333 = vpack.c.b16 %v1193, %v1192
      %v1334 = vpack.c.b16 %v1195, %v1194
      %v1335 = vpack.c.b16 %v1197, %v1196
      %v1336 = vpack.c.b16 %v1199, %v1198
      %v1337 = vpack.c.b16 %v1201, %v1200
      %v1338 = vpack.c.b16 %v1203, %v1202
      %v1339 = vpack.c.b16 %v1205, %v1204
      %v1340 = vpack.c.b16 %v1207, %v1206
      %v1341 = vpack.c.b16 %v1209, %v1208
      %v1342 = vpack.c.b16 %v1211, %v1210
      %v1343 = vpack.c.b16 %v1213, %v1212
      %v1344 = vpack.c.b16 %v1215, %v1214
      %v1345 = vpack.c.b16 %v1217, %v1216
      %v1346 = vpack.c.b16 %v1219, %v1218
      %v1347 = vpack.c.b16 %v1221, %v1220
      %v1348 = vpack.c.b16 %v1223, %v1222
      %v1349 = vpack.c.b16 %v1225, %v1224
      %v1350 = vpack.c.b16 %v1227, %v1226
      %v1351 = vpack.c.b16 %v1229, %v1228
      %v1352 = vpack.c.b16 %v1231, %v1230
      %v1353 = vpack.c.b16 %v1233, %v1232
      %v1354 = vpack.c.b16 %v1235, %v1234
      %v1355 = vpack.c.b16 %v1237, %v1236
      %v1356 = vpack.c.b16 %v1239, %v1238
      %v1357 = vpack.c.b16 %v1241, %v1240
      %v1358 = vpack.c.b16 %v1243, %v1242
      %v1359 = vpack.c.b16 %v1245, %v1244
      %v1360 = vpack.c.b16 %v1247, %v1246
      %v1361 = vpack.c.b16 %v1249, %v1248
      %v1362 = vpack.c.b16 %v1251, %v1250
      %v1363 = vpack.c.b16 %v1253, %v1252
      %v1364 = vpack.c.b16 %v1255, %v1254
      %v1365 = vpack.c.b16 %v1257, %v1256
      %v1366 = vpack.c.b16 %v1259, %v1258
      %v1367 = vpack.c.b16 %v1261, %v1260
      %v1368 = vpack.c.b16 %v1263, %v1262
      %v1369 = vpack.c.b16 %v1265, %v1264
      %v1370 = vpack.c.b16 %v1267, %v1266
      %v1371 = vpack.c.b16 %v1269, %v1268
      %v1372 = vpack.c.b16 %v1271, %v1270
      %v1373 = vpack.c.b16 %v1273, %v1272
      %v1374 = vpack.c.b16 %v1275, %v1274
      %v1375 = vpack.c.b16 %v1277, %v1276
      %v1376 = vpack.c.b16 %v1279, %v1278
      %v1377 = vpack.c.b16 %v1281, %v1280
      %v1378 = vpack.c.b16 %v1283, %v1282
      %v1379 = vpack.c.b16 %v1285, %v1284
      %v1380 = vpack.c.b16 %v1287, %v1286
      %v1381 = vpack.c.b16 %v1289, %v1288
      %v1382 = vpack.c.b16 %v1291, %v1290
      %v1383 = vpack.c.b16 %v1293, %v1292
      %v1384 = vpack.c.b16 %v1295, %v1294
      %v1385 = vpack.c.b16 %v1297, %v1296
      %v1386 = vpack.c.b16 %v1299, %v1298
      %v1387 = vpack.c.b16 %v1301, %v1300
      %v1388 = vpack.c.b16 %v1303, %v1302
      %v1389 = vpack.c.b16 %v1305, %v1304
      %v1390 = vpack.c.b16 %v1307, %v1306
      %v1391 = vpack.c.b16 %v1309, %v1308
      %v1392 = vpack.c.b16 %v1311, %v1310
      %v1393 = vpack.c.b16 %v1313, %v1312
      %v1394 = vpack.c.b16 %v1315, %v1314
      %v1395 = vpack.c.b16 %v1317, %v1316
      %v1396 = vpack.c.b16 %v1319, %v1318
      %v1397 = vpack.c.b16 %v1321, %v1320
      %v1398 = vpack.c.b16 %v1323, %v1322
      %v1399 = vpack.c.b16 %v1325, %v1324
      %v1400 = vpack.c.b16 %v1327, %v1326
      %v1401 = vpack.c.b16 %v1329, %v1328
      %1474 = vmatprep.subr.bf16.mxu0 0
      %1475 = vmatpush1.bf16.msra.mxu0 %v1330
      %1476 = vmatprep.subr.bf16.mxu0 0
      %1477 = vmatpush1.bf16.msra.mxu0 %v1331
      %1478 = vmatprep.subr.bf16.mxu0 0
      %1479 = vmatpush1.bf16.msra.mxu0 %v1332
      %1480 = vmatprep.subr.bf16.mxu0 0
      %1481 = vmatpush1.bf16.msra.mxu0 %v1333
      %1482 = vmatprep.subr.bf16.mxu0 0
      %1483 = vmatpush1.bf16.msra.mxu0 %v1334
      %1484 = vmatprep.subr.bf16.mxu0 0
      %1485 = vmatpush1.bf16.msra.mxu0 %v1335
      %1486 = vmatprep.subr.bf16.mxu0 0
      %1487 = vmatpush1.bf16.msra.mxu0 %v1336
      %1488 = vmatprep.subr.bf16.mxu0 0
      %1489 = vmatpush1.bf16.msra.mxu0 %v1337
      %1490 = vmatprep.subr.bf16.mxu0 0
      %1491 = vmatpush1.bf16.msra.mxu0 %v1338
      %1492 = vmatprep.subr.bf16.mxu0 0
      %1493 = vmatpush1.bf16.msra.mxu0 %v1339
      %1494 = vmatprep.subr.bf16.mxu0 0
      %1495 = vmatpush1.bf16.msra.mxu0 %v1340
      %1496 = vmatprep.subr.bf16.mxu0 0
      %1497 = vmatpush1.bf16.msra.mxu0 %v1341
      %1498 = vmatprep.subr.bf16.mxu0 0
      %1499 = vmatpush1.bf16.msra.mxu0 %v1342
      %1500 = vmatprep.subr.bf16.mxu0 0
      %1501 = vmatpush1.bf16.msra.mxu0 %v1343
      %1502 = vmatprep.subr.bf16.mxu0 0
      %1503 = vmatpush1.bf16.msra.mxu0 %v1344
      %1504 = vmatprep.subr.bf16.mxu0 0
      %1505 = vmatpush1.bf16.msra.mxu0 %v1345
      %1506 = vmatprep.mubr.bf16.mxu0 %v578
      %1507 = vmatmul.mubr.bf16.gmra.mrb[0].mxu0 %v532
      %v1508 = vpop.f32.mrb[0].mxu0
      %v1509 = vadd.f32 %v1040, %v1508
      %v1510 = vpop.f32.mrb[0].mxu0
      %v1511 = vpop.f32.mrb[0].mxu0
      %v1512 = vadd.f32 %v1040, %v1511
      %v1513 = vpop.f32.mrb[0].mxu0
      %1514 = vmatprep.mubr.bf16.mxu0 %v590
      %1515 = vmatmul.mubr.bf16.gmra.mrb[0].mxu0 %v533
      %v1516 = vpop.f32.mrb[0].mxu0
      %v1517 = vadd.f32 %v1040, %v1516
      %v1518 = vpop.f32.mrb[0].mxu0
      %v1519 = vpop.f32.mrb[0].mxu0
      %v1520 = vadd.f32 %v1040, %v1519
      %v1521 = vpop.f32.mrb[0].mxu0
      %1522 = vmatprep.mubr.bf16.mxu0 %v602
      %1523 = vmatmul.mubr.bf16.gmra.mrb[0].mxu0 %v534
      %v1524 = vpop.f32.mrb[0].mxu0
      %v1525 = vadd.f32 %v1040, %v1524
      %v1526 = vpop.f32.mrb[0].mxu0
      %v1527 = vpop.f32.mrb[0].mxu0
      %v1528 = vadd.f32 %v1040, %v1527
      %v1529 = vpop.f32.mrb[0].mxu0
      %1530 = vmatprep.mubr.bf16.mxu0 %v614
      %1531 = vmatmul.mubr.bf16.gmra.mrb[0].mxu0 %v535
      %v1532 = vpop.f32.mrb[0].mxu0
      %v1533 = vadd.f32 %v1040, %v1532
      %v1534 = vpop.f32.mrb[0].mxu0
      %v1535 = vpop.f32.mrb[0].mxu0
      %v1536 = vadd.f32 %v1040, %v1535
      %v1537 = vpop.f32.mrb[0].mxu0
      %1538 = vmatprep.mubr.bf16.mxu0 %v626
      %1539 = vmatmul.mubr.bf16.gmra.mrb[0].mxu0 %v536
      %v1540 = vpop.f32.mrb[0].mxu0
      %v1541 = vadd.f32 %v1040, %v1540
      %v1542 = vpop.f32.mrb[0].mxu0
      %v1543 = vpop.f32.mrb[0].mxu0
      %v1544 = vadd.f32 %v1040, %v1543
      %v1545 = vpop.f32.mrb[0].mxu0
      %1546 = vmatprep.mubr.bf16.mxu0 %v638
      %1547 = vmatmul.mubr.bf16.gmra.mrb[0].mxu0 %v537
      %v1548 = vpop.f32.mrb[0].mxu0
      %v1549 = vadd.f32 %v1040, %v1548
      %v1550 = vpop.f32.mrb[0].mxu0
      %v1551 = vpop.f32.mrb[0].mxu0
      %v1552 = vadd.f32 %v1040, %v1551
      %v1553 = vpop.f32.mrb[0].mxu0
      %1554 = vmatprep.mubr.bf16.mxu0 %v650
      %1555 = vmatmul.mubr.bf16.gmra.mrb[0].mxu0 %v538
      %v1556 = vpop.f32.mrb[0].mxu0
      %v1557 = vadd.f32 %v1040, %v1556
      %v1558 = vpop.f32.mrb[0].mxu0
      %v1559 = vpop.f32.mrb[0].mxu0
      %v1560 = vadd.f32 %v1040, %v1559
      %v1561 = vpop.f32.mrb[0].mxu0
      %1562 = vmatprep.mubr.bf16.mxu0 %v662
      %1563 = vmatmul.mubr.bf16.gmra.mrb[0].mxu0 %v539
      %v1564 = vpop.f32.mrb[0].mxu0
      %v1565 = vadd.f32 %v1040, %v1564
      %v1566 = vpop.f32.mrb[0].mxu0
      %v1567 = vpop.f32.mrb[0].mxu0
      %v1568 = vadd.f32 %v1040, %v1567
      %v1569 = vpop.f32.mrb[0].mxu0
      %1570 = vmatprep.mubr.bf16.mxu0 %v674
      %1571 = vmatmul.mubr.bf16.gmra.mrb[0].mxu0 %v540
      %v1572 = vpop.f32.mrb[0].mxu0
      %v1573 = vadd.f32 %v1040, %v1572
      %v1574 = vpop.f32.mrb[0].mxu0
      %v1575 = vpop.f32.mrb[0].mxu0
      %v1576 = vadd.f32 %v1040, %v1575
      %v1577 = vpop.f32.mrb[0].mxu0
      %1578 = vmatprep.mubr.bf16.mxu0 %v686
      %1579 = vmatmul.mubr.bf16.gmra.mrb[0].mxu0 %v541
      %v1580 = vpop.f32.mrb[0].mxu0
      %v1581 = vadd.f32 %v1040, %v1580
      %v1582 = vpop.f32.mrb[0].mxu0
      %v1583 = vpop.f32.mrb[0].mxu0
      %v1584 = vadd.f32 %v1040, %v1583
      %v1585 = vpop.f32.mrb[0].mxu0
      %1586 = vmatprep.mubr.bf16.mxu0 %v698
      %1587 = vmatmul.mubr.bf16.gmra.mrb[0].mxu0 %v542
      %v1588 = vpop.f32.mrb[0].mxu0
      %v1589 = vadd.f32 %v1040, %v1588
      %v1590 = vpop.f32.mrb[0].mxu0
      %v1591 = vpop.f32.mrb[0].mxu0
      %v1592 = vadd.f32 %v1040, %v1591
      %v1593 = vpop.f32.mrb[0].mxu0
      %1594 = vmatprep.mubr.bf16.mxu0 %v710
      %1595 = vmatmul.mubr.bf16.gmra.mrb[0].mxu0 %v543
      %v1596 = vpop.f32.mrb[0].mxu0
      %v1597 = vadd.f32 %v1040, %v1596
      %v1598 = vpop.f32.mrb[0].mxu0
      %v1599 = vpop.f32.mrb[0].mxu0
      %v1600 = vadd.f32 %v1040, %v1599
      %v1601 = vpop.f32.mrb[0].mxu0
      %1602 = vmatprep.mubr.bf16.mxu0 %v722
      %1603 = vmatmul.mubr.bf16.gmra.mrb[0].mxu0 %v544
      %v1604 = vpop.f32.mrb[0].mxu0
      %v1605 = vadd.f32 %v1040, %v1604
      %v1606 = vpop.f32.mrb[0].mxu0
      %v1607 = vpop.f32.mrb[0].mxu0
      %v1608 = vadd.f32 %v1040, %v1607
      %v1609 = vpop.f32.mrb[0].mxu0
      %1610 = vmatprep.mubr.bf16.mxu0 %v734
      %1611 = vmatmul.mubr.bf16.gmra.mrb[0].mxu0 %v545
      %v1612 = vpop.f32.mrb[0].mxu0
      %v1613 = vadd.f32 %v1040, %v1612
      %v1614 = vpop.f32.mrb[0].mxu0
      %v1615 = vpop.f32.mrb[0].mxu0
      %v1616 = vadd.f32 %v1040, %v1615
      %v1617 = vpop.f32.mrb[0].mxu0
      %1618 = vmatprep.mubr.bf16.mxu0 %v746
      %1619 = vmatmul.mubr.bf16.gmra.mrb[0].mxu0 %v546
      %v1620 = vpop.f32.mrb[0].mxu0
      %v1621 = vadd.f32 %v1040, %v1620
      %v1622 = vpop.f32.mrb[0].mxu0
      %v1623 = vpop.f32.mrb[0].mxu0
      %v1624 = vadd.f32 %v1040, %v1623
      %v1625 = vpop.f32.mrb[0].mxu0
      %1626 = vmatprep.mubr.bf16.mxu0 %v758
      %1627 = vmatmul.mubr.bf16.gmra.mrb[0].mxu0 %v547
      %v1628 = vpop.f32.mrb[0].mxu0
      %v1629 = vadd.f32 %v1040, %v1628
      %v1630 = vpop.f32.mrb[0].mxu0
      %v1631 = vpop.f32.mrb[0].mxu0
      %v1632 = vadd.f32 %v1040, %v1631
      %v1633 = vpop.f32.mrb[0].mxu0
      %1634 = vdwg.mxu0
      %1635 = vmatprep.subr.bf16.mxu0 0
      %1636 = vmatpush1.bf16.msra.mxu0 %v1346
      %1637 = vmatprep.subr.bf16.mxu0 0
      %1638 = vmatpush1.bf16.msra.mxu0 %v1347
      %1639 = vmatprep.subr.bf16.mxu0 0
      %1640 = vmatpush1.bf16.msra.mxu0 %v1348
      %1641 = vmatprep.subr.bf16.mxu0 0
      %1642 = vmatpush1.bf16.msra.mxu0 %v1349
      %1643 = vmatprep.subr.bf16.mxu0 0
      %1644 = vmatpush1.bf16.msra.mxu0 %v1350
      %1645 = vmatprep.subr.bf16.mxu0 0
      %1646 = vmatpush1.bf16.msra.mxu0 %v1351
      %1647 = vmatprep.subr.bf16.mxu0 0
      %1648 = vmatpush1.bf16.msra.mxu0 %v1352
      %1649 = vmatprep.subr.bf16.mxu0 0
      %1650 = vmatpush1.bf16.msra.mxu0 %v1353
      %1651 = vmatprep.subr.bf16.mxu0 0
      %1652 = vmatpush1.bf16.msra.mxu0 %v1354
      %1653 = vmatprep.subr.bf16.mxu0 0
      %1654 = vmatpush1.bf16.msra.mxu0 %v1355
      %1655 = vmatprep.subr.bf16.mxu0 0
      %1656 = vmatpush1.bf16.msra.mxu0 %v1356
      %1657 = vmatprep.subr.bf16.mxu0 0
      %1658 = vmatpush1.bf16.msra.mxu0 %v1357
      %1659 = vmatprep.subr.bf16.mxu0 0
      %1660 = vmatpush1.bf16.msra.mxu0 %v1358
      %1661 = vmatprep.subr.bf16.mxu0 0
      %1662 = vmatpush1.bf16.msra.mxu0 %v1359
      %1663 = vmatprep.subr.bf16.mxu0 0
      %1664 = vmatpush1.bf16.msra.mxu0 %v1360
      %1665 = vmatprep.subr.bf16.mxu0 0
      %1666 = vmatpush1.bf16.msra.mxu0 %v1361
      %1667 = vmatprep.mubr.bf16.mxu0 %v533
      %1668 = vmatmul.mubr.bf16.gmra.mrb[0].mxu0 %v810
      %v1669 = vpop.f32.mrb[0].mxu0
      %v1670 = vadd.f32 %v1509, %v1669
      %v1671 = vpop.f32.mrb[0].mxu0
      %v1672 = vpop.f32.mrb[0].mxu0
      %v1673 = vadd.f32 %v1512, %v1672
      %v1674 = vpop.f32.mrb[0].mxu0
      %1675 = vmatprep.mubr.bf16.mxu0 %v534
      %1676 = vmatmul.mubr.bf16.gmra.mrb[0].mxu0 %v813
      %v1677 = vpop.f32.mrb[0].mxu0
      %v1678 = vadd.f32 %v1517, %v1677
      %v1679 = vpop.f32.mrb[0].mxu0
      %v1680 = vpop.f32.mrb[0].mxu0
      %v1681 = vadd.f32 %v1520, %v1680
      %v1682 = vpop.f32.mrb[0].mxu0
      %1683 = vmatprep.mubr.bf16.mxu0 %v535
      %1684 = vmatmul.mubr.bf16.gmra.mrb[0].mxu0 %v816
      %v1685 = vpop.f32.mrb[0].mxu0
      %v1686 = vadd.f32 %v1525, %v1685
      %v1687 = vpop.f32.mrb[0].mxu0
      %v1688 = vpop.f32.mrb[0].mxu0
      %v1689 = vadd.f32 %v1528, %v1688
      %v1690 = vpop.f32.mrb[0].mxu0
      %1691 = vmatprep.mubr.bf16.mxu0 %v536
      %1692 = vmatmul.mubr.bf16.gmra.mrb[0].mxu0 %v819
      %v1693 = vpop.f32.mrb[0].mxu0
      %v1694 = vadd.f32 %v1533, %v1693
      %v1695 = vpop.f32.mrb[0].mxu0
      %v1696 = vpop.f32.mrb[0].mxu0
      %v1697 = vadd.f32 %v1536, %v1696
      %v1698 = vpop.f32.mrb[0].mxu0
      %1699 = vmatprep.mubr.bf16.mxu0 %v537
      %1700 = vmatmul.mubr.bf16.gmra.mrb[0].mxu0 %v822
      %v1701 = vpop.f32.mrb[0].mxu0
      %v1702 = vadd.f32 %v1541, %v1701
      %v1703 = vpop.f32.mrb[0].mxu0
      %v1704 = vpop.f32.mrb[0].mxu0
      %v1705 = vadd.f32 %v1544, %v1704
      %v1706 = vpop.f32.mrb[0].mxu0
      %1707 = vmatprep.mubr.bf16.mxu0 %v538
      %1708 = vmatmul.mubr.bf16.gmra.mrb[0].mxu0 %v825
      %v1709 = vpop.f32.mrb[0].mxu0
      %v1710 = vadd.f32 %v1549, %v1709
      %v1711 = vpop.f32.mrb[0].mxu0
      %v1712 = vpop.f32.mrb[0].mxu0
      %v1713 = vadd.f32 %v1552, %v1712
      %v1714 = vpop.f32.mrb[0].mxu0
      %1715 = vmatprep.mubr.bf16.mxu0 %v539
      %1716 = vmatmul.mubr.bf16.gmra.mrb[0].mxu0 %v828
      %v1717 = vpop.f32.mrb[0].mxu0
      %v1718 = vadd.f32 %v1557, %v1717
      %v1719 = vpop.f32.mrb[0].mxu0
      %v1720 = vpop.f32.mrb[0].mxu0
      %v1721 = vadd.f32 %v1560, %v1720
      %v1722 = vpop.f32.mrb[0].mxu0
      %1723 = vmatprep.mubr.bf16.mxu0 %v540
      %1724 = vmatmul.mubr.bf16.gmra.mrb[0].mxu0 %v831
      %v1725 = vpop.f32.mrb[0].mxu0
      %v1726 = vadd.f32 %v1565, %v1725
      %v1727 = vpop.f32.mrb[0].mxu0
      %v1728 = vpop.f32.mrb[0].mxu0
      %v1729 = vadd.f32 %v1568, %v1728
      %v1730 = vpop.f32.mrb[0].mxu0
      %1731 = vmatprep.mubr.bf16.mxu0 %v541
      %1732 = vmatmul.mubr.bf16.gmra.mrb[0].mxu0 %v834
      %v1733 = vpop.f32.mrb[0].mxu0
      %v1734 = vadd.f32 %v1573, %v1733
      %v1735 = vpop.f32.mrb[0].mxu0
      %v1736 = vpop.f32.mrb[0].mxu0
      %v1737 = vadd.f32 %v1576, %v1736
      %v1738 = vpop.f32.mrb[0].mxu0
      %1739 = vmatprep.mubr.bf16.mxu0 %v542
      %1740 = vmatmul.mubr.bf16.gmra.mrb[0].mxu0 %v837
      %v1741 = vpop.f32.mrb[0].mxu0
      %v1742 = vadd.f32 %v1581, %v1741
      %v1743 = vpop.f32.mrb[0].mxu0
      %v1744 = vpop.f32.mrb[0].mxu0
      %v1745 = vadd.f32 %v1584, %v1744
      %v1746 = vpop.f32.mrb[0].mxu0
      %1747 = vmatprep.mubr.bf16.mxu0 %v543
      %1748 = vmatmul.mubr.bf16.gmra.mrb[0].mxu0 %v840
      %v1749 = vpop.f32.mrb[0].mxu0
      %v1750 = vadd.f32 %v1589, %v1749
      %v1751 = vpop.f32.mrb[0].mxu0
      %v1752 = vpop.f32.mrb[0].mxu0
      %v1753 = vadd.f32 %v1592, %v1752
      %v1754 = vpop.f32.mrb[0].mxu0
      %1755 = vmatprep.mubr.bf16.mxu0 %v544
      %1756 = vmatmul.mubr.bf16.gmra.mrb[0].mxu0 %v843
      %v1757 = vpop.f32.mrb[0].mxu0
      %v1758 = vadd.f32 %v1597, %v1757
      %v1759 = vpop.f32.mrb[0].mxu0
      %v1760 = vpop.f32.mrb[0].mxu0
      %v1761 = vadd.f32 %v1600, %v1760
      %v1762 = vpop.f32.mrb[0].mxu0
      %1763 = vmatprep.mubr.bf16.mxu0 %v545
      %1764 = vmatmul.mubr.bf16.gmra.mrb[0].mxu0 %v846
      %v1765 = vpop.f32.mrb[0].mxu0
      %v1766 = vadd.f32 %v1605, %v1765
      %v1767 = vpop.f32.mrb[0].mxu0
      %v1768 = vpop.f32.mrb[0].mxu0
      %v1769 = vadd.f32 %v1608, %v1768
      %v1770 = vpop.f32.mrb[0].mxu0
      %1771 = vmatprep.mubr.bf16.mxu0 %v546
      %1772 = vmatmul.mubr.bf16.gmra.mrb[0].mxu0 %v849
      %v1773 = vpop.f32.mrb[0].mxu0
      %v1774 = vadd.f32 %v1613, %v1773
      %v1775 = vpop.f32.mrb[0].mxu0
      %v1776 = vpop.f32.mrb[0].mxu0
      %v1777 = vadd.f32 %v1616, %v1776
      %v1778 = vpop.f32.mrb[0].mxu0
      %1779 = vmatprep.mubr.bf16.mxu0 %v547
      %1780 = vmatmul.mubr.bf16.gmra.mrb[0].mxu0 %v852
      %v1781 = vpop.f32.mrb[0].mxu0
      %v1782 = vadd.f32 %v1621, %v1781
      %v1783 = vpop.f32.mrb[0].mxu0
      %v1784 = vpop.f32.mrb[0].mxu0
      %v1785 = vadd.f32 %v1624, %v1784
      %v1786 = vpop.f32.mrb[0].mxu0
      %1787 = vmatprep.mubr.bf16.mxu0 %v548
      %1788 = vmatmul.mubr.bf16.gmra.mrb[0].mxu0 %v855
      %v1789 = vpop.f32.mrb[0].mxu0
      %v1790 = vadd.f32 %v1629, %v1789
      %v1791 = vpop.f32.mrb[0].mxu0
      %v1792 = vpop.f32.mrb[0].mxu0
      %v1793 = vadd.f32 %v1632, %v1792
      %v1794 = vpop.f32.mrb[0].mxu0
      %1795 = vdwg.mxu0
      %1796 = vmatprep.subr.bf16.mxu0 0
      %1797 = vmatpush1.bf16.msra.mxu0 %v1362
      %1798 = vmatprep.subr.bf16.mxu0 0
      %1799 = vmatpush1.bf16.msra.mxu0 %v1363
      %1800 = vmatprep.subr.bf16.mxu0 0
      %1801 = vmatpush1.bf16.msra.mxu0 %v1364
      %1802 = vmatprep.subr.bf16.mxu0 0
      %1803 = vmatpush1.bf16.msra.mxu0 %v1365
      %1804 = vmatprep.subr.bf16.mxu0 0
      %1805 = vmatpush1.bf16.msra.mxu0 %v1366
      %1806 = vmatprep.subr.bf16.mxu0 0
      %1807 = vmatpush1.bf16.msra.mxu0 %v1367
      %1808 = vmatprep.subr.bf16.mxu0 0
      %1809 = vmatpush1.bf16.msra.mxu0 %v1368
      %1810 = vmatprep.subr.bf16.mxu0 0
      %1811 = vmatpush1.bf16.msra.mxu0 %v1369
      %1812 = vmatprep.subr.bf16.mxu0 0
      %1813 = vmatpush1.bf16.msra.mxu0 %v1370
      %1814 = vmatprep.subr.bf16.mxu0 0
      %1815 = vmatpush1.bf16.msra.mxu0 %v1371
      %1816 = vmatprep.subr.bf16.mxu0 0
      %1817 = vmatpush1.bf16.msra.mxu0 %v1372
      %1818 = vmatprep.subr.bf16.mxu0 0
      %1819 = vmatpush1.bf16.msra.mxu0 %v1373
      %1820 = vmatprep.subr.bf16.mxu0 0
      %1821 = vmatpush1.bf16.msra.mxu0 %v1374
      %1822 = vmatprep.subr.bf16.mxu0 0
      %1823 = vmatpush1.bf16.msra.mxu0 %v1375
      %1824 = vmatprep.subr.bf16.mxu0 0
      %1825 = vmatpush1.bf16.msra.mxu0 %v1376
      %1826 = vmatprep.subr.bf16.mxu0 0
      %1827 = vmatpush1.bf16.msra.mxu0 %v1377
      %1828 = vmatprep.mubr.bf16.mxu0 %v813
      %1829 = vmatmul.mubr.bf16.gmra.mrb[0].mxu0 %v590
      %v1830 = vpop.f32.mrb[0].mxu0
      %v1831 = vadd.f32 %v1670, %v1830
      %v1832 = vpop.f32.mrb[0].mxu0
      %v1833 = vpop.f32.mrb[0].mxu0
      %v1834 = vadd.f32 %v1673, %v1833
      %v1835 = vpop.f32.mrb[0].mxu0
      %1836 = vmatprep.mubr.bf16.mxu0 %v816
      %1837 = vmatmul.mubr.bf16.gmra.mrb[0].mxu0 %v602
      %v1838 = vpop.f32.mrb[0].mxu0
      %v1839 = vadd.f32 %v1678, %v1838
      %v1840 = vpop.f32.mrb[0].mxu0
      %v1841 = vpop.f32.mrb[0].mxu0
      %v1842 = vadd.f32 %v1681, %v1841
      %v1843 = vpop.f32.mrb[0].mxu0
      %1844 = vmatprep.mubr.bf16.mxu0 %v819
      %1845 = vmatmul.mubr.bf16.gmra.mrb[0].mxu0 %v614
      %v1846 = vpop.f32.mrb[0].mxu0
      %v1847 = vadd.f32 %v1686, %v1846
      %v1848 = vpop.f32.mrb[0].mxu0
      %v1849 = vpop.f32.mrb[0].mxu0
      %v1850 = vadd.f32 %v1689, %v1849
      %v1851 = vpop.f32.mrb[0].mxu0
      %1852 = vmatprep.mubr.bf16.mxu0 %v822
      %1853 = vmatmul.mubr.bf16.gmra.mrb[0].mxu0 %v626
      %v1854 = vpop.f32.mrb[0].mxu0
      %v1855 = vadd.f32 %v1694, %v1854
      %v1856 = vpop.f32.mrb[0].mxu0
      %v1857 = vpop.f32.mrb[0].mxu0
      %v1858 = vadd.f32 %v1697, %v1857
      %v1859 = vpop.f32.mrb[0].mxu0
      %1860 = vmatprep.mubr.bf16.mxu0 %v825
      %1861 = vmatmul.mubr.bf16.gmra.mrb[0].mxu0 %v638
      %v1862 = vpop.f32.mrb[0].mxu0
      %v1863 = vadd.f32 %v1702, %v1862
      %v1864 = vpop.f32.mrb[0].mxu0
      %v1865 = vpop.f32.mrb[0].mxu0
      %v1866 = vadd.f32 %v1705, %v1865
      %v1867 = vpop.f32.mrb[0].mxu0
      %1868 = vmatprep.mubr.bf16.mxu0 %v828
      %1869 = vmatmul.mubr.bf16.gmra.mrb[0].mxu0 %v650
      %v1870 = vpop.f32.mrb[0].mxu0
      %v1871 = vadd.f32 %v1710, %v1870
      %v1872 = vpop.f32.mrb[0].mxu0
      %v1873 = vpop.f32.mrb[0].mxu0
      %v1874 = vadd.f32 %v1713, %v1873
      %v1875 = vpop.f32.mrb[0].mxu0
      %1876 = vmatprep.mubr.bf16.mxu0 %v831
      %1877 = vmatmul.mubr.bf16.gmra.mrb[0].mxu0 %v662
      %v1878 = vpop.f32.mrb[0].mxu0
      %v1879 = vadd.f32 %v1718, %v1878
      %v1880 = vpop.f32.mrb[0].mxu0
      %v1881 = vpop.f32.mrb[0].mxu0
      %v1882 = vadd.f32 %v1721, %v1881
      %v1883 = vpop.f32.mrb[0].mxu0
      %1884 = vmatprep.mubr.bf16.mxu0 %v834
      %1885 = vmatmul.mubr.bf16.gmra.mrb[0].mxu0 %v674
      %v1886 = vpop.f32.mrb[0].mxu0
      %v1887 = vadd.f32 %v1726, %v1886
      %v1888 = vpop.f32.mrb[0].mxu0
      %v1889 = vpop.f32.mrb[0].mxu0
      %v1890 = vadd.f32 %v1729, %v1889
      %v1891 = vpop.f32.mrb[0].mxu0
      %1892 = vmatprep.mubr.bf16.mxu0 %v837
      %1893 = vmatmul.mubr.bf16.gmra.mrb[0].mxu0 %v686
      %v1894 = vpop.f32.mrb[0].mxu0
      %v1895 = vadd.f32 %v1734, %v1894
      %v1896 = vpop.f32.mrb[0].mxu0
      %v1897 = vpop.f32.mrb[0].mxu0
      %v1898 = vadd.f32 %v1737, %v1897
      %v1899 = vpop.f32.mrb[0].mxu0
      %1900 = vmatprep.mubr.bf16.mxu0 %v840
      %1901 = vmatmul.mubr.bf16.gmra.mrb[0].mxu0 %v698
      %v1902 = vpop.f32.mrb[0].mxu0
      %v1903 = vadd.f32 %v1742, %v1902
      %v1904 = vpop.f32.mrb[0].mxu0
      %v1905 = vpop.f32.mrb[0].mxu0
      %v1906 = vadd.f32 %v1745, %v1905
      %v1907 = vpop.f32.mrb[0].mxu0
      %1908 = vmatprep.mubr.bf16.mxu0 %v843
      %1909 = vmatmul.mubr.bf16.gmra.mrb[0].mxu0 %v710
      %v1910 = vpop.f32.mrb[0].mxu0
      %v1911 = vadd.f32 %v1750, %v1910
      %v1912 = vpop.f32.mrb[0].mxu0
      %v1913 = vpop.f32.mrb[0].mxu0
      %v1914 = vadd.f32 %v1753, %v1913
      %v1915 = vpop.f32.mrb[0].mxu0
      %1916 = vmatprep.mubr.bf16.mxu0 %v846
      %1917 = vmatmul.mubr.bf16.gmra.mrb[0].mxu0 %v722
      %v1918 = vpop.f32.mrb[0].mxu0
      %v1919 = vadd.f32 %v1758, %v1918
      %v1920 = vpop.f32.mrb[0].mxu0
      %v1921 = vpop.f32.mrb[0].mxu0
      %v1922 = vadd.f32 %v1761, %v1921
      %v1923 = vpop.f32.mrb[0].mxu0
      %1924 = vmatprep.mubr.bf16.mxu0 %v849
      %1925 = vmatmul.mubr.bf16.gmra.mrb[0].mxu0 %v734
      %v1926 = vpop.f32.mrb[0].mxu0
      %v1927 = vadd.f32 %v1766, %v1926
      %v1928 = vpop.f32.mrb[0].mxu0
      %v1929 = vpop.f32.mrb[0].mxu0
      %v1930 = vadd.f32 %v1769, %v1929
      %v1931 = vpop.f32.mrb[0].mxu0
      %1932 = vmatprep.mubr.bf16.mxu0 %v852
      %1933 = vmatmul.mubr.bf16.gmra.mrb[0].mxu0 %v746
      %v1934 = vpop.f32.mrb[0].mxu0
      %v1935 = vadd.f32 %v1774, %v1934
      %v1936 = vpop.f32.mrb[0].mxu0
      %v1937 = vpop.f32.mrb[0].mxu0
      %v1938 = vadd.f32 %v1777, %v1937
      %v1939 = vpop.f32.mrb[0].mxu0
      %1940 = vmatprep.mubr.bf16.mxu0 %v855
      %1941 = vmatmul.mubr.bf16.gmra.mrb[0].mxu0 %v758
      %v1942 = vpop.f32.mrb[0].mxu0
      %v1943 = vadd.f32 %v1782, %v1942
      %v1944 = vpop.f32.mrb[0].mxu0
      %v1945 = vpop.f32.mrb[0].mxu0
      %v1946 = vadd.f32 %v1785, %v1945
      %v1947 = vpop.f32.mrb[0].mxu0
      %1948 = vmatprep.mubr.bf16.mxu0 %v889
      %1949 = vmatmul.mubr.bf16.gmra.mrb[0].mxu0 %v883
      %v1950 = vpop.f32.mrb[0].mxu0
      %v1951 = vadd.f32 %v1790, %v1950
      %v1952 = vpop.f32.mrb[0].mxu0
      %v1953 = vpop.f32.mrb[0].mxu0
      %v1954 = vadd.f32 %v1793, %v1953
      %v1955 = vpop.f32.mrb[0].mxu0
      %1956 = vdwg.mxu0
      %1957 = vmatprep.subr.bf16.mxu0 0
      %1958 = vmatpush1.bf16.msra.mxu0 %v1378
      %1959 = vmatprep.subr.bf16.mxu0 0
      %1960 = vmatpush1.bf16.msra.mxu0 %v1379
      %1961 = vmatprep.subr.bf16.mxu0 0
      %1962 = vmatpush1.bf16.msra.mxu0 %v1380
      %1963 = vmatprep.subr.bf16.mxu0 0
      %1964 = vmatpush1.bf16.msra.mxu0 %v1381
      %1965 = vmatprep.subr.bf16.mxu0 0
      %1966 = vmatpush1.bf16.msra.mxu0 %v1382
      %1967 = vmatprep.subr.bf16.mxu0 0
      %1968 = vmatpush1.bf16.msra.mxu0 %v1383
      %1969 = vmatprep.subr.bf16.mxu0 0
      %1970 = vmatpush1.bf16.msra.mxu0 %v1384
      %1971 = vmatprep.subr.bf16.mxu0 0
      %1972 = vmatpush1.bf16.msra.mxu0 %v1385
      %1973 = vmatprep.subr.bf16.mxu0 0
      %1974 = vmatpush1.bf16.msra.mxu0 %v1386
      %1975 = vmatprep.subr.bf16.mxu0 0
      %1976 = vmatpush1.bf16.msra.mxu0 %v1387
      %1977 = vmatprep.subr.bf16.mxu0 0
      %1978 = vmatpush1.bf16.msra.mxu0 %v1388
      %1979 = vmatprep.subr.bf16.mxu0 0
      %1980 = vmatpush1.bf16.msra.mxu0 %v1389
      %1981 = vmatprep.subr.bf16.mxu0 0
      %1982 = vmatpush1.bf16.msra.mxu0 %v1390
      %1983 = vmatprep.subr.bf16.mxu0 0
      %1984 = vmatpush1.bf16.msra.mxu0 %v1391
      %1985 = vmatprep.subr.bf16.mxu0 0
      %1986 = vmatpush1.bf16.msra.mxu0 %v1392
      %1987 = vmatprep.subr.bf16.mxu0 0
      %1988 = vmatpush1.bf16.msra.mxu0 %v1393
      %1989 = vmatprep.mubr.bf16.mxu0 %v602
      %1990 = vmatmul.mubr.bf16.gmra.mrb[0].mxu0 %v534
      %v1991 = vpop.f32.mrb[0].mxu0
      %v1992 = vadd.f32 %v1831, %v1991
      %v1993 = vpop.f32.mrb[0].mxu0
      %v1994 = vpop.f32.mrb[0].mxu0
      %v1995 = vadd.f32 %v1834, %v1994
      %v1996 = vpop.f32.mrb[0].mxu0
      %1997 = vmatprep.mubr.bf16.mxu0 %v614
      %1998 = vmatmul.mubr.bf16.gmra.mrb[0].mxu0 %v535
      %v1999 = vpop.f32.mrb[0].mxu0
      %v2000 = vadd.f32 %v1839, %v1999
      %v2001 = vpop.f32.mrb[0].mxu0
      %v2002 = vpop.f32.mrb[0].mxu0
      %v2003 = vadd.f32 %v1842, %v2002
      %v2004 = vpop.f32.mrb[0].mxu0
      %2005 = vmatprep.mubr.bf16.mxu0 %v626
      %2006 = vmatmul.mubr.bf16.gmra.mrb[0].mxu0 %v536
      %v2007 = vpop.f32.mrb[0].mxu0
      %v2008 = vadd.f32 %v1847, %v2007
      %v2009 = vpop.f32.mrb[0].mxu0
      %v2010 = vpop.f32.mrb[0].mxu0
      %v2011 = vadd.f32 %v1850, %v2010
      %v2012 = vpop.f32.mrb[0].mxu0
      %2013 = vmatprep.mubr.bf16.mxu0 %v638
      %2014 = vmatmul.mubr.bf16.gmra.mrb[0].mxu0 %v537
      %v2015 = vpop.f32.mrb[0].mxu0
      %v2016 = vadd.f32 %v1855, %v2015
      %v2017 = vpop.f32.mrb[0].mxu0
      %v2018 = vpop.f32.mrb[0].mxu0
      %v2019 = vadd.f32 %v1858, %v2018
      %v2020 = vpop.f32.mrb[0].mxu0
      %2021 = vmatprep.mubr.bf16.mxu0 %v650
      %2022 = vmatmul.mubr.bf16.gmra.mrb[0].mxu0 %v538
      %v2023 = vpop.f32.mrb[0].mxu0
      %v2024 = vadd.f32 %v1863, %v2023
      %v2025 = vpop.f32.mrb[0].mxu0
      %v2026 = vpop.f32.mrb[0].mxu0
      %v2027 = vadd.f32 %v1866, %v2026
      %v2028 = vpop.f32.mrb[0].mxu0
      %2029 = vmatprep.mubr.bf16.mxu0 %v662
      %2030 = vmatmul.mubr.bf16.gmra.mrb[0].mxu0 %v539
      %v2031 = vpop.f32.mrb[0].mxu0
      %v2032 = vadd.f32 %v1871, %v2031
      %v2033 = vpop.f32.mrb[0].mxu0
      %v2034 = vpop.f32.mrb[0].mxu0
      %v2035 = vadd.f32 %v1874, %v2034
      %v2036 = vpop.f32.mrb[0].mxu0
      %2037 = vmatprep.mubr.bf16.mxu0 %v674
      %2038 = vmatmul.mubr.bf16.gmra.mrb[0].mxu0 %v540
      %v2039 = vpop.f32.mrb[0].mxu0
      %v2040 = vadd.f32 %v1879, %v2039
      %v2041 = vpop.f32.mrb[0].mxu0
      %v2042 = vpop.f32.mrb[0].mxu0
      %v2043 = vadd.f32 %v1882, %v2042
      %v2044 = vpop.f32.mrb[0].mxu0
      %2045 = vmatprep.mubr.bf16.mxu0 %v686
      %2046 = vmatmul.mubr.bf16.gmra.mrb[0].mxu0 %v541
      %v2047 = vpop.f32.mrb[0].mxu0
      %v2048 = vadd.f32 %v1887, %v2047
      %v2049 = vpop.f32.mrb[0].mxu0
      %v2050 = vpop.f32.mrb[0].mxu0
      %v2051 = vadd.f32 %v1890, %v2050
      %v2052 = vpop.f32.mrb[0].mxu0
      %2053 = vmatprep.mubr.bf16.mxu0 %v698
      %2054 = vmatmul.mubr.bf16.gmra.mrb[0].mxu0 %v542
      %v2055 = vpop.f32.mrb[0].mxu0
      %v2056 = vadd.f32 %v1895, %v2055
      %v2057 = vpop.f32.mrb[0].mxu0
      %v2058 = vpop.f32.mrb[0].mxu0
      %v2059 = vadd.f32 %v1898, %v2058
      %v2060 = vpop.f32.mrb[0].mxu0
      %2061 = vmatprep.mubr.bf16.mxu0 %v710
      %2062 = vmatmul.mubr.bf16.gmra.mrb[0].mxu0 %v543
      %v2063 = vpop.f32.mrb[0].mxu0
      %v2064 = vadd.f32 %v1903, %v2063
      %v2065 = vpop.f32.mrb[0].mxu0
      %v2066 = vpop.f32.mrb[0].mxu0
      %v2067 = vadd.f32 %v1906, %v2066
      %v2068 = vpop.f32.mrb[0].mxu0
      %2069 = vmatprep.mubr.bf16.mxu0 %v722
      %2070 = vmatmul.mubr.bf16.gmra.mrb[0].mxu0 %v544
      %v2071 = vpop.f32.mrb[0].mxu0
      %v2072 = vadd.f32 %v1911, %v2071
      %v2073 = vpop.f32.mrb[0].mxu0
      %v2074 = vpop.f32.mrb[0].mxu0
      %v2075 = vadd.f32 %v1914, %v2074
      %v2076 = vpop.f32.mrb[0].mxu0
      %2077 = vmatprep.mubr.bf16.mxu0 %v734
      %2078 = vmatmul.mubr.bf16.gmra.mrb[0].mxu0 %v545
      %v2079 = vpop.f32.mrb[0].mxu0
      %v2080 = vadd.f32 %v1919, %v2079
      %v2081 = vpop.f32.mrb[0].mxu0
      %v2082 = vpop.f32.mrb[0].mxu0
      %v2083 = vadd.f32 %v1922, %v2082
      %v2084 = vpop.f32.mrb[0].mxu0
      %2085 = vmatprep.mubr.bf16.mxu0 %v746
      %2086 = vmatmul.mubr.bf16.gmra.mrb[0].mxu0 %v546
      %v2087 = vpop.f32.mrb[0].mxu0
      %v2088 = vadd.f32 %v1927, %v2087
      %v2089 = vpop.f32.mrb[0].mxu0
      %v2090 = vpop.f32.mrb[0].mxu0
      %v2091 = vadd.f32 %v1930, %v2090
      %v2092 = vpop.f32.mrb[0].mxu0
      %2093 = vmatprep.mubr.bf16.mxu0 %v758
      %2094 = vmatmul.mubr.bf16.gmra.mrb[0].mxu0 %v547
      %v2095 = vpop.f32.mrb[0].mxu0
      %v2096 = vadd.f32 %v1935, %v2095
      %v2097 = vpop.f32.mrb[0].mxu0
      %v2098 = vpop.f32.mrb[0].mxu0
      %v2099 = vadd.f32 %v1938, %v2098
      %v2100 = vpop.f32.mrb[0].mxu0
      %2101 = vmatprep.mubr.bf16.mxu0 %v883
      %2102 = vmatmul.mubr.bf16.gmra.mrb[0].mxu0 %v548
      %v2103 = vpop.f32.mrb[0].mxu0
      %v2104 = vadd.f32 %v1943, %v2103
      %v2105 = vpop.f32.mrb[0].mxu0
      %v2106 = vpop.f32.mrb[0].mxu0
      %v2107 = vadd.f32 %v1946, %v2106
      %v2108 = vpop.f32.mrb[0].mxu0
      %2109 = vmatprep.mubr.bf16.mxu0 %v578
      %2110 = vmatmul.mubr.bf16.gmra.mrb[0].mxu0 %v532
      %v2111 = vpop.f32.mrb[0].mxu0
      %v2112 = vadd.f32 %v1951, %v2111
      %v2113 = vpop.f32.mrb[0].mxu0
      %v2114 = vpop.f32.mrb[0].mxu0
      %v2115 = vadd.f32 %v1954, %v2114
      %v2116 = vpop.f32.mrb[0].mxu0
      %2117 = vdwg.mxu0
      %2118 = vmatprep.subr.bf16.mxu0 0
      %2119 = vmatpush1.bf16.msra.mxu0 %v1394
      %2120 = vmatprep.subr.bf16.mxu0 0
      %2121 = vmatpush1.bf16.msra.mxu0 %v1395
      %2122 = vmatprep.subr.bf16.mxu0 0
      %2123 = vmatpush1.bf16.msra.mxu0 %v1396
      %2124 = vmatprep.subr.bf16.mxu0 0
      %2125 = vmatpush1.bf16.msra.mxu0 %v1397
      %2126 = vmatprep.subr.bf16.mxu0 0
      %2127 = vmatpush1.bf16.msra.mxu0 %v1398
      %2128 = vmatprep.subr.bf16.mxu0 0
      %2129 = vmatpush1.bf16.msra.mxu0 %v1399
      %2130 = vmatprep.subr.bf16.mxu0 0
      %2131 = vmatpush1.bf16.msra.mxu0 %v1400
      %2132 = vmatprep.subr.bf16.mxu0 0
      %2133 = vmatpush1.bf16.msra.mxu0 %v1401
      %2134 = vmatprep.subr.bf16.mxu0 0
      %2135 = vmatpush1.bf16.msra.mxu0 0
      %2136 = vmatprep.subr.bf16.mxu0 0
      %2137 = vmatpush1.bf16.msra.mxu0 0
      %2138 = vmatprep.subr.bf16.mxu0 0
      %2139 = vmatpush1.bf16.msra.mxu0 0
      %2140 = vmatprep.subr.bf16.mxu0 0
      %2141 = vmatpush1.bf16.msra.mxu0 0
      %2142 = vmatprep.subr.bf16.mxu0 0
      %2143 = vmatpush1.bf16.msra.mxu0 0
      %2144 = vmatprep.subr.bf16.mxu0 0
      %2145 = vmatpush1.bf16.msra.mxu0 0
      %2146 = vmatprep.subr.bf16.mxu0 0
      %2147 = vmatpush1.bf16.msra.mxu0 0
      %2148 = vmatprep.subr.bf16.mxu0 0
      %2149 = vmatpush1.bf16.msra.mxu0 0
      %2150 = vmatprep.mubr.bf16.mxu0 0
      %2151 = vmatmul.mubr.bf16.gmra.mrb[0].mxu0 %v816
      %v2152 = vpop.f32.mrb[0].mxu0
      %v2153 = vadd.f32 %v1992, %v2152
      %v2154 = vpop.f32.mrb[0].mxu0
      %v2155 = vpop.f32.mrb[0].mxu0
      %v2156 = vadd.f32 %v1995, %v2155
      %v2157 = vpop.f32.mrb[0].mxu0
      %2158 = vmatprep.mubr.bf16.mxu0 0
      %2159 = vmatmul.mubr.bf16.gmra.mrb[0].mxu0 %v819
      %v2160 = vpop.f32.mrb[0].mxu0
      %v2161 = vadd.f32 %v2000, %v2160
      %v2162 = vpop.f32.mrb[0].mxu0
      %v2163 = vpop.f32.mrb[0].mxu0
      %v2164 = vadd.f32 %v2003, %v2163
      %v2165 = vpop.f32.mrb[0].mxu0
      %2166 = vmatprep.mubr.bf16.mxu0 0
      %2167 = vmatmul.mubr.bf16.gmra.mrb[0].mxu0 %v822
      %v2168 = vpop.f32.mrb[0].mxu0
      %v2169 = vadd.f32 %v2008, %v2168
      %v2170 = vpop.f32.mrb[0].mxu0
      %v2171 = vpop.f32.mrb[0].mxu0
      %v2172 = vadd.f32 %v2011, %v2171
      %v2173 = vpop.f32.mrb[0].mxu0
      %2174 = vmatprep.mubr.bf16.mxu0 0
      %2175 = vmatmul.mubr.bf16.gmra.mrb[0].mxu0 %v825
      %v2176 = vpop.f32.mrb[0].mxu0
      %v2177 = vadd.f32 %v2016, %v2176
      %v2178 = vpop.f32.mrb[0].mxu0
      %v2179 = vpop.f32.mrb[0].mxu0
      %v2180 = vadd.f32 %v2019, %v2179
      %v2181 = vpop.f32.mrb[0].mxu0
      %2182 = vmatprep.mubr.bf16.mxu0 0
      %2183 = vmatmul.mubr.bf16.gmra.mrb[0].mxu0 %v828
      %v2184 = vpop.f32.mrb[0].mxu0
      %v2185 = vadd.f32 %v2024, %v2184
      %v2186 = vpop.f32.mrb[0].mxu0
      %v2187 = vpop.f32.mrb[0].mxu0
      %v2188 = vadd.f32 %v2027, %v2187
      %v2189 = vpop.f32.mrb[0].mxu0
      %2190 = vmatprep.mubr.bf16.mxu0 0
      %2191 = vmatmul.mubr.bf16.gmra.mrb[0].mxu0 %v831
      %v2192 = vpop.f32.mrb[0].mxu0
      %v2193 = vadd.f32 %v2032, %v2192
      %v2194 = vpop.f32.mrb[0].mxu0
      %v2195 = vpop.f32.mrb[0].mxu0
      %v2196 = vadd.f32 %v2035, %v2195
      %v2197 = vpop.f32.mrb[0].mxu0
      %2198 = vmatprep.mubr.bf16.mxu0 0
      %2199 = vmatmul.mubr.bf16.gmra.mrb[0].mxu0 %v834
      %v2200 = vpop.f32.mrb[0].mxu0
      %v2201 = vadd.f32 %v2040, %v2200
      %v2202 = vpop.f32.mrb[0].mxu0
      %v2203 = vpop.f32.mrb[0].mxu0
      %v2204 = vadd.f32 %v2043, %v2203
      %v2205 = vpop.f32.mrb[0].mxu0
      %2206 = vmatprep.mubr.bf16.mxu0 0
      %2207 = vmatmul.mubr.bf16.gmra.mrb[0].mxu0 %v837
      %v2208 = vpop.f32.mrb[0].mxu0
      %v2209 = vadd.f32 %v2048, %v2208
      %v2210 = vpop.f32.mrb[0].mxu0
      %v2211 = vpop.f32.mrb[0].mxu0
      %v2212 = vadd.f32 %v2051, %v2211
      %v2213 = vpop.f32.mrb[0].mxu0
      %2214 = vmatprep.mubr.bf16.mxu0 0
      %2215 = vmatmul.mubr.bf16.gmra.mrb[0].mxu0 %v840
      %v2216 = vpop.f32.mrb[0].mxu0
      %v2217 = vadd.f32 %v2056, %v2216
      %v2218 = vpop.f32.mrb[0].mxu0
      %v2219 = vpop.f32.mrb[0].mxu0
      %v2220 = vadd.f32 %v2059, %v2219
      %v2221 = vpop.f32.mrb[0].mxu0
      %2222 = vmatprep.mubr.bf16.mxu0 0
      %2223 = vmatmul.mubr.bf16.gmra.mrb[0].mxu0 %v843
      %v2224 = vpop.f32.mrb[0].mxu0
      %v2225 = vadd.f32 %v2064, %v2224
      %v2226 = vpop.f32.mrb[0].mxu0
      %v2227 = vpop.f32.mrb[0].mxu0
      %v2228 = vadd.f32 %v2067, %v2227
      %v2229 = vpop.f32.mrb[0].mxu0
      %2230 = vmatprep.mubr.bf16.mxu0 0
      %2231 = vmatmul.mubr.bf16.gmra.mrb[0].mxu0 %v846
      %v2232 = vpop.f32.mrb[0].mxu0
      %v2233 = vadd.f32 %v2072, %v2232
      %v2234 = vpop.f32.mrb[0].mxu0
      %v2235 = vpop.f32.mrb[0].mxu0
      %v2236 = vadd.f32 %v2075, %v2235
      %v2237 = vpop.f32.mrb[0].mxu0
      %2238 = vmatprep.mubr.bf16.mxu0 0
      %2239 = vmatmul.mubr.bf16.gmra.mrb[0].mxu0 %v849
      %v2240 = vpop.f32.mrb[0].mxu0
      %v2241 = vadd.f32 %v2080, %v2240
      %v2242 = vpop.f32.mrb[0].mxu0
      %v2243 = vpop.f32.mrb[0].mxu0
      %v2244 = vadd.f32 %v2083, %v2243
      %v2245 = vpop.f32.mrb[0].mxu0
      %2246 = vmatprep.mubr.bf16.mxu0 0
      %2247 = vmatmul.mubr.bf16.gmra.mrb[0].mxu0 %v852
      %v2248 = vpop.f32.mrb[0].mxu0
      %v2249 = vadd.f32 %v2088, %v2248
      %v2250 = vpop.f32.mrb[0].mxu0
      %v2251 = vpop.f32.mrb[0].mxu0
      %v2252 = vadd.f32 %v2091, %v2251
      %v2253 = vpop.f32.mrb[0].mxu0
      %2254 = vmatprep.mubr.bf16.mxu0 0
      %2255 = vmatmul.mubr.bf16.gmra.mrb[0].mxu0 %v855
      %v2256 = vpop.f32.mrb[0].mxu0
      %v2257 = vadd.f32 %v2096, %v2256
      %v2258 = vpop.f32.mrb[0].mxu0
      %v2259 = vpop.f32.mrb[0].mxu0
      %v2260 = vadd.f32 %v2099, %v2259
      %v2261 = vpop.f32.mrb[0].mxu0
      %2262 = vmatprep.mubr.bf16.mxu0 0
      %2263 = vmatmul.mubr.bf16.gmra.mrb[0].mxu0 %v889
      %v2264 = vpop.f32.mrb[0].mxu0
      %v2265 = vadd.f32 %v2104, %v2264
      %v2266 = vpop.f32.mrb[0].mxu0
      %v2267 = vpop.f32.mrb[0].mxu0
      %v2268 = vadd.f32 %v2107, %v2267
      %v2269 = vpop.f32.mrb[0].mxu0
      %2270 = vmatprep.mubr.bf16.mxu0 0
      %2271 = vmatmul.mubr.bf16.gmra.mrb[0].mxu0 %v810
      %v2272 = vpop.f32.mrb[0].mxu0
      %v2273 = vadd.f32 %v2112, %v2272
      %v2274 = vpop.f32.mrb[0].mxu0
      %v2275 = vpop.f32.mrb[0].mxu0
      %v2276 = vadd.f32 %v2115, %v2275
      %v2277 = vpop.f32.mrb[0].mxu0
      %2278 = vdwg.mxu0
      %v2279 = vpack.c.bf16 %v2156, %v2153
      %v2280 = vpack.c.bf16 %v2164, %v2161
      %v2281 = vpack.c.bf16 %v2172, %v2169
      %v2282 = vpack.c.bf16 %v2180, %v2177
      %v2283 = vpack.c.bf16 %v2188, %v2185
      %v2284 = vpack.c.bf16 %v2196, %v2193
      %v2285 = vpack.c.bf16 %v2204, %v2201
      %v2286 = vpack.c.bf16 %v2212, %v2209
      %v2287 = vpack.c.bf16 %v2220, %v2217
      %v2288 = vpack.c.bf16 %v2228, %v2225
      %v2289 = vpack.c.bf16 %v2236, %v2233
      %v2290 = vpack.c.bf16 %v2244, %v2241
      %v2291 = vpack.c.bf16 %v2252, %v2249
      %v2292 = vpack.c.bf16 %v2260, %v2257
      %v2293 = vpack.c.bf16 %v2268, %v2265
      %v2294 = vpack.c.bf16 %v2276, %v2273
      %v2311 = vunpack.c.l.b16 %v2279
      %v2312 = vunpack.c.h.b16 %v2279
      %v2313 = vunpack.c.l.b16 %v2280
      %v2314 = vunpack.c.h.b16 %v2280
      %v2315 = vunpack.c.l.b16 %v2281
      %v2316 = vunpack.c.h.b16 %v2281
      %v2317 = vunpack.c.l.b16 %v2282
      %v2318 = vunpack.c.h.b16 %v2282
      %v2319 = vunpack.c.l.b16 %v2283
      %v2320 = vunpack.c.h.b16 %v2283
      %v2321 = vunpack.c.l.b16 %v2284
      %v2322 = vunpack.c.h.b16 %v2284
      %v2323 = vunpack.c.l.b16 %v2285
      %v2324 = vunpack.c.h.b16 %v2285
      %v2325 = vunpack.c.l.b16 %v2286
      %v2326 = vunpack.c.h.b16 %v2286
      %v2327 = vunpack.c.l.b16 %v2287
      %v2328 = vunpack.c.h.b16 %v2287
      %v2329 = vunpack.c.l.b16 %v2288
      %v2330 = vunpack.c.h.b16 %v2288
      %v2331 = vunpack.c.l.b16 %v2289
      %v2332 = vunpack.c.h.b16 %v2289
      %v2333 = vunpack.c.l.b16 %v2290
      %v2334 = vunpack.c.h.b16 %v2290
      %v2335 = vunpack.c.l.b16 %v2291
      %v2336 = vunpack.c.h.b16 %v2291
      %v2337 = vunpack.c.l.b16 %v2292
      %v2338 = vunpack.c.h.b16 %v2292
      %v2339 = vunpack.c.l.b16 %v2293
      %v2340 = vunpack.c.h.b16 %v2293
      %v2341 = vunpack.c.l.b16 %v2294
      %v2342 = vunpack.c.h.b16 %v2294
      %v2343 = vpack.c.b16 %v2311, %v2311
      %v2344 = vpack.c.b16 %v2312, %v2312
      %v2345 = vpack.c.b16 %v2313, %v2313
      %v2346 = vpack.c.b16 %v2314, %v2314
      %v2347 = vpack.c.b16 %v2315, %v2315
      %v2348 = vpack.c.b16 %v2316, %v2316
      %v2349 = vpack.c.b16 %v2317, %v2317
      %v2350 = vpack.c.b16 %v2318, %v2318
      %v2351 = vpack.c.b16 %v2319, %v2319
      %v2352 = vpack.c.b16 %v2320, %v2320
      %v2353 = vpack.c.b16 %v2321, %v2321
      %v2354 = vpack.c.b16 %v2322, %v2322
      %v2355 = vpack.c.b16 %v2323, %v2323
      %v2356 = vpack.c.b16 %v2324, %v2324
      %v2357 = vpack.c.b16 %v2325, %v2325
      %v2358 = vpack.c.b16 %v2326, %v2326
      %v2359 = vpack.c.b16 %v2327, %v2327
      %v2360 = vpack.c.b16 %v2328, %v2328
      %v2361 = vpack.c.b16 %v2329, %v2329
      %v2362 = vpack.c.b16 %v2330, %v2330
      %v2363 = vpack.c.b16 %v2331, %v2331
      %v2364 = vpack.c.b16 %v2332, %v2332
      %v2365 = vpack.c.b16 %v2333, %v2333
      %v2366 = vpack.c.b16 %v2334, %v2334
      %v2367 = vpack.c.b16 %v2335, %v2335
      %v2368 = vpack.c.b16 %v2336, %v2336
      %v2369 = vpack.c.b16 %v2337, %v2337
      %v2370 = vpack.c.b16 %v2338, %v2338
      %v2371 = vpack.c.b16 %v2339, %v2339
      %v2372 = vpack.c.b16 %v2340, %v2340
      %v2373 = vpack.c.b16 %v2341, %v2341
      %v2374 = vpack.c.b16 %v2342, %v2342
      %2407 = vst [vmem:[%s258] sm:$0xf] %v2343
      %2408 = vst [vmem:[%s258 + $0x4] sm:$0xf] %v2344
      %2409 = vst [vmem:[%s258 + $0x8] sm:$0xf] %v2345
      %2410 = vst [vmem:[%s258 + $0xc] sm:$0xf] %v2346
      %2411 = vst [vmem:[%s258 + $0x10] sm:$0xf] %v2347
      %2412 = vst [vmem:[%s258 + $0x14] sm:$0xf] %v2348
      %2413 = vst [vmem:[%s258 + $0x18] sm:$0xf] %v2349
      %2414 = vst [vmem:[%s258 + $0x1c] sm:$0xf] %v2350
      %2415 = vst [vmem:[%s258 + $0x20] sm:$0xf] %v2351
      %2416 = vst [vmem:[%s258 + $0x24] sm:$0xf] %v2352
      %2417 = vst [vmem:[%s258 + $0x28] sm:$0xf] %v2353
      %2418 = vst [vmem:[%s258 + $0x2c] sm:$0xf] %v2354
      %2419 = vst [vmem:[%s258 + $0x30] sm:$0xf] %v2355
      %2420 = vst [vmem:[%s258 + $0x34] sm:$0xf] %v2356
      %2421 = vst [vmem:[%s258 + $0x38] sm:$0xf] %v2357
      %2422 = vst [vmem:[%s258 + $0x3c] sm:$0xf] %v2358
      %2423 = vst [vmem:[%s258 + $0x40] sm:$0xf] %v2359
      %2424 = vst [vmem:[%s258 + $0x44] sm:$0xf] %v2360
      %2425 = vst [vmem:[%s258 + $0x48] sm:$0xf] %v2361
      %2426 = vst [vmem:[%s258 + $0x4c] sm:$0xf] %v2362
      %2427 = vst [vmem:[%s258 + $0x50] sm:$0xf] %v2363
      %2428 = vst [vmem:[%s258 + $0x54] sm:$0xf] %v2364
      %2429 = vst [vmem:[%s258 + $0x58] sm:$0xf] %v2365
      %2430 = vst [vmem:[%s258 + $0x5c] sm:$0xf] %v2366
      %2431 = vst [vmem:[%s258 + $0x60] sm:$0xf] %v2367
      %2432 = vst [vmem:[%s258 + $0x64] sm:$0xf] %v2368
      %2433 = vst [vmem:[%s258 + $0x68] sm:$0xf] %v2369
      %2434 = vst [vmem:[%s258 + $0x6c] sm:$0xf] %v2370
      %2435 = vst [vmem:[%s258 + $0x70] sm:$0xf] %v2371
      %2436 = vst [vmem:[%s258 + $0x74] sm:$0xf] %v2372
      %2437 = vst [vmem:[%s258 + $0x78] sm:$0xf] %v2373
      %2438 = vst [vmem:[%s258 + $0x7c] sm:$0xf] %v2374
      %v2439 = vadd.f32 %v2153, %v2156
      %v2440 = vadd.f32 %v2439, %v2161
      %v2441 = vadd.f32 %v2440, %v2164
      %v2442 = vadd.f32 %v2441, %v2169
      %v2443 = vadd.f32 %v2442, %v2172
      %v2444 = vadd.f32 %v2443, %v2177
      %v2445 = vadd.f32 %v2444, %v2180
      %v2446 = vadd.f32 %v2445, %v2185
      %v2447 = vadd.f32 %v2446, %v2188
      %v2448 = vadd.f32 %v2447, %v2193
      %v2449 = vadd.f32 %v2448, %v2196
      %v2450 = vadd.f32 %v2449, %v2201
      %v2451 = vadd.f32 %v2450, %v2204
      %v2452 = vadd.f32 %v2451, %v2209
      %v2453 = vadd.f32 %v2452, %v2212
      %v2454 = vadd.f32 %v2453, %v2217
      %v2455 = vadd.f32 %v2454, %v2220
      %v2456 = vadd.f32 %v2455, %v2225
      %v2457 = vadd.f32 %v2456, %v2228
      %v2458 = vadd.f32 %v2457, %v2233
      %v2459 = vadd.f32 %v2458, %v2236
      %v2460 = vadd.f32 %v2459, %v2241
      %v2461 = vadd.f32 %v2460, %v2244
      %v2462 = vadd.f32 %v2461, %v2249
      %v2463 = vadd.f32 %v2462, %v2252
      %v2464 = vadd.f32 %v2463, %v2257
      %v2465 = vadd.f32 %v2464, %v2260
      %v2466 = vadd.f32 %v2465, %v2265
      %v2467 = vadd.f32 %v2466, %v2268
      %v2468 = vadd.f32 %v2467, %v2273
      %v2469 = vadd.f32 %v2468, %v2276
      %v2470 = vrot.slane %v2469, 4
      %v2471 = vadd.f32 %v2469, %v2470
      %v2472 = vrot.slane %v2471, 2
      %v2473 = vadd.f32 %v2471, %v2472
      %v2474 = vrot.slane %v2473, 1
      %v2475 = vadd.f32 %v2473, %v2474
      %v2476 = vmul.f32 %v2153, %v2153
      %v2477 = vmul.f32 %v2156, %v2156
      %v2478 = vmul.f32 %v2161, %v2161
      %v2479 = vmul.f32 %v2164, %v2164
      %v2480 = vmul.f32 %v2169, %v2169
      %v2481 = vmul.f32 %v2172, %v2172
      %v2482 = vmul.f32 %v2177, %v2177
      %v2483 = vmul.f32 %v2180, %v2180
      %v2484 = vmul.f32 %v2185, %v2185
      %v2485 = vmul.f32 %v2188, %v2188
      %v2486 = vmul.f32 %v2193, %v2193
      %v2487 = vmul.f32 %v2196, %v2196
      %v2488 = vmul.f32 %v2201, %v2201
      %v2489 = vmul.f32 %v2204, %v2204
      %v2490 = vmul.f32 %v2209, %v2209
      %v2491 = vmul.f32 %v2212, %v2212
      %v2492 = vmul.f32 %v2217, %v2217
      %v2493 = vmul.f32 %v2220, %v2220
      %v2494 = vmul.f32 %v2225, %v2225
      %v2495 = vmul.f32 %v2228, %v2228
      %v2496 = vmul.f32 %v2233, %v2233
      %v2497 = vmul.f32 %v2236, %v2236
      %v2498 = vmul.f32 %v2241, %v2241
      %v2499 = vmul.f32 %v2244, %v2244
      %v2500 = vmul.f32 %v2249, %v2249
      %v2501 = vmul.f32 %v2252, %v2252
      %v2502 = vmul.f32 %v2257, %v2257
      %v2503 = vmul.f32 %v2260, %v2260
      %v2504 = vmul.f32 %v2265, %v2265
      %v2505 = vmul.f32 %v2268, %v2268
      %v2506 = vmul.f32 %v2273, %v2273
      %v2507 = vmul.f32 %v2276, %v2276
      %v2508 = vadd.f32 %v2476, %v2477
      %v2509 = vadd.f32 %v2508, %v2478
      %v2510 = vadd.f32 %v2509, %v2479
      %v2511 = vadd.f32 %v2510, %v2480
      %v2512 = vadd.f32 %v2511, %v2481
      %v2513 = vadd.f32 %v2512, %v2482
      %v2514 = vadd.f32 %v2513, %v2483
      %v2515 = vadd.f32 %v2514, %v2484
      %v2516 = vadd.f32 %v2515, %v2485
      %v2517 = vadd.f32 %v2516, %v2486
      %v2518 = vadd.f32 %v2517, %v2487
      %v2519 = vadd.f32 %v2518, %v2488
      %v2520 = vadd.f32 %v2519, %v2489
      %v2521 = vadd.f32 %v2520, %v2490
      %v2522 = vadd.f32 %v2521, %v2491
      %v2523 = vadd.f32 %v2522, %v2492
      %v2524 = vadd.f32 %v2523, %v2493
      %v2525 = vadd.f32 %v2524, %v2494
      %v2526 = vadd.f32 %v2525, %v2495
      %v2527 = vadd.f32 %v2526, %v2496
      %v2528 = vadd.f32 %v2527, %v2497
      %v2529 = vadd.f32 %v2528, %v2498
      %v2530 = vadd.f32 %v2529, %v2499
      %v2531 = vadd.f32 %v2530, %v2500
      %v2532 = vadd.f32 %v2531, %v2501
      %v2533 = vadd.f32 %v2532, %v2502
      %v2534 = vadd.f32 %v2533, %v2503
      %v2535 = vadd.f32 %v2534, %v2504
      %v2536 = vadd.f32 %v2535, %v2505
      %v2537 = vadd.f32 %v2536, %v2506
      %v2538 = vadd.f32 %v2537, %v2507
      %v2539 = vrot.slane %v2538, 4
      %v2540 = vadd.f32 %v2538, %v2539
      %v2541 = vrot.slane %v2540, 2
      %v2542 = vadd.f32 %v2540, %v2541
      %v2543 = vrot.slane %v2542, 1
      %v2544 = vadd.f32 %v2542, %v2543
      %vm2545 = vcmask 1040384
      %v2546 = vsel %vm2545, %v2475, %v2544
      %vm2547 = vcmask 1041408
      %v2548 = vsel %vm2547, %v2546, 0.0
      %2549 = vst [vmem:[%s262] sm:$0xff] %v2548
      %p2550 = scmp.lt.s32.totalorder %s18, 1
      %s2551 = scalar_select %p2550, %s18, 1
      %s2552 = smul.addr %s2551, 32
      %s2553 = smul.addr %s2552, 4
      %s2554 = scalar_lea.vmem %s5, %s2553
      %p2555 = scmp.lt.s32.totalorder %s18, 1
      %s2556 = scalar_select %p2555, %s18, 1
      %s2557 = smul.addr %s2556, 8
      %s2558 = scalar_lea.vmem %s6, %s2557
      // Predicated region
      $region41: #{encoder_block_forward.4} parent=39 // pred_check
        %p2559 = pneg %p146
      $region42: #{encoder_block_forward.4} parent=39 // pred_check_branch
        %2561 = sbr.rel (%p2559) target = $region44
      $region43: #{encoder_block_forward.4} parent=39 // pred_region
        _
      $region44: #{encoder_block_forward.4} parent=39 // pred_fallthru
        _
      // Predicated region
      $region45: #{encoder_block_forward.4} parent=39 // pred_check
        %p2562 = pneg %p172
      $region46: #{encoder_block_forward.4} parent=39 // pred_check_branch
        %2564 = sbr.rel (%p2562) target = $region48
      $region47: #{encoder_block_forward.4} parent=39 // pred_region
        _
      $region48: #{encoder_block_forward.4} parent=39 // pred_fallthru
        _
    $region40: #{encoder_block_forward.4} parent=5 // pred_fallthru
      _
    %p2565 = scmp.le.s32.totalorder 2, %s13
    // Predicated region
    $region49: #{encoder_block_forward.4} parent=5 // pred_check
      %p2566 = pneg %p2565
    $region50: #{encoder_block_forward.4} parent=5 // pred_check_branch
      %2568 = sbr.rel (%p2566) target = $region52
    $region51: #{encoder_block_forward.4} parent=5 // pred_region
      %s2569 = ssub.s32 %s13, 2
      // Predicated region
      $region53: #{encoder_block_forward.4} parent=51 // pred_check
        %p2570 = pneg %p152
      $region54: #{encoder_block_forward.4} parent=51 // pred_check_branch
        %2572 = sbr.rel (%p2570) target = $region56
      $region55: #{encoder_block_forward.4} parent=51 // pred_region
        %p2573 = scmp.lt.s32.totalorder %s19, 1
        %s2574 = scalar_select %p2573, %s19, 1
        %s2575 = smul.addr %s2574, 32
        %s2576 = smul.addr %s2575, 4
        %s2577 = scalar_lea.vmem %s5, %s2576
      $region56: #{encoder_block_forward.4} parent=51 // pred_fallthru
        _
      // Predicated region
      $region57: #{encoder_block_forward.4} parent=51 // pred_check
        %p2578 = pneg %p178
      $region58: #{encoder_block_forward.4} parent=51 // pred_check_branch
        %2580 = sbr.rel (%p2578) target = $region60
      $region59: #{encoder_block_forward.4} parent=51 // pred_region
        %p2581 = scmp.lt.s32.totalorder %s19, 1
        %s2582 = scalar_select %p2581, %s19, 1
        %s2583 = smul.addr %s2582, 8
        %s2584 = scalar_lea.vmem %s6, %s2583
      $region60: #{encoder_block_forward.4} parent=51 // pred_fallthru
        _
    $region52: #{encoder_block_forward.4} parent=5 // pred_fallthru
      _
  $region6: #{encoder_block_forward.4} parent=0 // loop_footer
    %s17 = sadd.s32 1, %s13
  $region7: #{encoder_block_forward.4} parent=0 // loop_footer_branch
    %12 = sbr.rel target = $region3
  $region8: #{encoder_block_forward.4} parent=0 // loop_exit
    _

</llo_original>
